<compile_context>
chip_gen: v6e
topology: v6e:2x2x1
jax: 0.10.0
libtpu: 0.0.40
codegen_flags: <defaults>
</compile_context>

<pallas_src>
import math
from functools import partial

import jax
import jax.numpy as jnp
import numpy as np
from jax.experimental import pallas as pl
from jax.experimental.pallas import tpu as pltpu


# ----------------------------- fused network kernel -----------------------------
def _make_fused_kernel(T, BP, layer_dims):
    """layer_dims: list of (d_in, H) per flattened LSTM layer (d_in of layer 0 = input_len)."""
    L = len(layer_dims)
    Hs = [h for (_, h) in layer_dims]

    def kernel(*args):
        # ---- unpack refs: inputs ..., output ----
        x_ref = args[0]
        w0_ref = args[1]                       # folded attention + layer-0 W_ih^T  (D, 4H0)
        pos = 2
        wih_refs = [None] * L
        whh_refs = [None] * L
        b_refs = [None] * L
        whh_refs[0] = args[pos]; b_refs[0] = args[pos + 1]; pos += 2
        for l in range(1, L):
            wih_refs[l] = args[pos]; whh_refs[l] = args[pos + 1]; b_refs[l] = args[pos + 2]
            pos += 3
        wfc_ref, bfc_ref = args[pos], args[pos + 1]; pos += 2
        out_ref = args[pos]

        # ---- hoisted layer-0 input projection (self-attention already folded in) ----
        # One big MXU matmul over all T timesteps at once.
        gx0 = (jnp.dot(x_ref[...], w0_ref[...], preferred_element_type=jnp.float32)
               + b_refs[0][...])

        # Load per-layer weights once (stay resident in vregs/VMEM).
        whh = [whh_refs[l][...] for l in range(L)]
        wih = [None] + [wih_refs[l][...] for l in range(1, L)]
        bias = [None] + [b_refs[l][...] for l in range(1, L)]

        h = [jnp.zeros((BP, Hs[l]), jnp.float32) for l in range(L)]
        c = [jnp.zeros((BP, Hs[l]), jnp.float32) for l in range(L)]
        outs = [[None] * T for _ in range(L)]

        # ---- wavefront over (layer, time): at wave w, layer l processes t = w - l ----
        # Statically unrolled (T, L small & static); up to L independent recurrence
        # chains per wave keep the MXU/EUP pipelines busy.
        for w in range(T + L - 1):
            for l in range(L):
                t = w - l
                if t < 0 or t >= T:
                    continue
                Hl = Hs[l]
                rec = jnp.dot(h[l], whh[l], preferred_element_type=jnp.float32)
                if l == 0:
                    gates = gx0[t * BP:(t + 1) * BP, :] + rec
                else:
                    gates = (jnp.dot(outs[l - 1][t], wih[l],
                                     preferred_element_type=jnp.float32)
                             + rec + bias[l])
                sg = jax.nn.sigmoid(gates)                 # ONE EUP pass over all 4 gates
                i_g = sg[:, 0 * Hl:1 * Hl]
                f_g = sg[:, 1 * Hl:2 * Hl]
                g_g = 2.0 * sg[:, 2 * Hl:3 * Hl] - 1.0     # tanh(g) = 2*sigmoid(2g)-1 (g cols pre-scaled x2)
                o_g = sg[:, 3 * Hl:4 * Hl]
                c[l] = f_g * c[l] + i_g * g_g
                h[l] = o_g * jnp.tanh(c[l])
                outs[l][t] = h[l]

        # ---- fc1 + sigmoid on the whole last-layer sequence, lane-dense padded output ----
        h_last = jnp.concatenate(outs[L - 1], axis=0)      # (T*BP, H_last), stays on-chip
        y = (jnp.dot(h_last, wfc_ref[...], preferred_element_type=jnp.float32)
             + bfc_ref[...])
        out_ref[...] = jax.nn.sigmoid(y).astype(out_ref.dtype)

    return kernel


def _full_spec(shape):
    n = len(shape)
    return pl.BlockSpec(shape, lambda i, _n=n: (0,) * _n)


# ---------------------------------- forward ----------------------------------
@partial(jax.jit, static_argnames=("out_len",))
def forward_self_attention_lstm(kparams, x, *, out_len):
    """x: (B, T, input_len) batch_first. Returns (out, hidden=None); out: (B, T, out_len)."""
    B, T, D = x.shape
    BP = ((B + 7) // 8) * 8                  # pad batch to a sublane multiple

    layers_k = kparams["layers"]             # layer 0: (w0t (D,4H), whh_t (H,4H), b (1,4H))
    wfc_p, bfc_p = kparams["fc1"]            # (H_last, O_pad), (1, O_pad)
    O_pad = wfc_p.shape[1]
    L = len(layers_k)
    layer_dims = [(wih_t.shape[0], whh_t.shape[0]) for (wih_t, whh_t, _) in layers_k]

    # batch-pad + time-major flatten: row index = t*BP + b
    # TODO(synk): at large B*T*D, read x in (B,T,D) layout inside the kernel to avoid this
    # HBM-side transposed copy; negligible at these shapes.
    xp = jnp.pad(x, ((0, BP - B), (0, 0), (0, 0)))
    xt = jnp.transpose(xp, (1, 0, 2)).reshape(T * BP, D).astype(jnp.float32)

    kernel = _make_fused_kernel(T, BP, layer_dims)

    in_arrays = [xt, layers_k[0][0], layers_k[0][1], layers_k[0][2]]
    for l in range(1, L):
        in_arrays += [layers_k[l][0], layers_k[l][1], layers_k[l][2]]
    in_arrays += [wfc_p, bfc_p]
    in_specs = [_full_spec(a.shape) for a in in_arrays]

    out2d = pl.pallas_call(
        kernel,
        out_shape=jax.ShapeDtypeStruct((T * BP, O_pad), jnp.float32),
        grid=(1,),
        in_specs=in_specs,
        out_specs=_full_spec((T * BP, O_pad)),
        compiler_params=pltpu.CompilerParams(dimension_semantics=("arbitrary",)),
    )(*in_arrays)

    out = out2d.reshape(T, BP, O_pad)[:, :B, :out_len]
    out = jnp.transpose(out, (1, 0, 2))      # back to (B, T, out_len)
    return out, None                         # self.hidden is never set -> None


# ------------------------------ parameter init --------------------------------
def init_params(key, input_len, hidden_units, num_layers, out_len):
    """PyTorch-equivalent parameters (nn.Linear / nn.LSTM default uniform init)."""
    params = {}

    # self_attention: nn.Linear(input_len, input_len, bias=False); y = x @ W^T
    s = 1.0 / math.sqrt(input_len)
    key, k = jax.random.split(key)
    params["w_att"] = jax.random.uniform(k, (input_len, input_len), jnp.float32, -s, s)

    # flattened LSTM stacks (encoder + decoder lstms, each possibly multi-layer)
    layers = []
    prev = input_len
    for stack_idx, H in enumerate(hidden_units):
        for l in range(num_layers[stack_idx]):
            d_in = prev if l == 0 else H
            s = 1.0 / math.sqrt(H)
            key, k1, k2, k3, k4 = jax.random.split(key, 5)
            w_ih = jax.random.uniform(k1, (4 * H, d_in), jnp.float32, -s, s)
            w_hh = jax.random.uniform(k2, (4 * H, H), jnp.float32, -s, s)
            b_ih = jax.random.uniform(k3, (4 * H,), jnp.float32, -s, s)
            b_hh = jax.random.uniform(k4, (4 * H,), jnp.float32, -s, s)
            layers.append((w_ih, w_hh, b_ih, b_hh))
        prev = H
    params["lstm"] = layers

    # fc1: nn.Linear(hidden_units[-1], out_len, bias=True)
    H_last = hidden_units[-1]
    s = 1.0 / math.sqrt(H_last)
    key, kw, kb = jax.random.split(key, 3)
    params["w_fc"] = jax.random.uniform(kw, (out_len, H_last), jnp.float32, -s, s)
    params["b_fc"] = jax.random.uniform(kb, (out_len,), jnp.float32, -s, s)
    return params


def prepare_kernel_params(params):
    """One-time preprocessing: transpose, fold attention into layer 0, scale g-gate
    columns by 2 (single-sigmoid trick), pad fc1 to a lane-dense 128-wide slab."""
    w_att = params["w_att"]

    def g_scale(a, H):
        return a.at[..., 2 * H:3 * H].multiply(2.0)

    klayers = []
    for idx, (w_ih, w_hh, b_ih, b_hh) in enumerate(params["lstm"]):
        H = w_hh.shape[1]
        wih_t = g_scale(jnp.transpose(w_ih), H)               # (d_in, 4H)
        whh_t = g_scale(jnp.transpose(w_hh), H)               # (H, 4H)
        b = g_scale((b_ih + b_hh).reshape(1, 4 * H), H)       # (1, 4H)
        if idx == 0:
            # fold bias-free self-attention: x @ W_att^T @ W_ih0^T == x @ (W_att^T @ W_ih0^T)
            wih_t = jnp.dot(jnp.transpose(w_att), wih_t)      # (D, 4H)
        klayers.append((wih_t, whh_t, b))

    H_last = params["lstm"][-1][1].shape[1]
    out_len = params["w_fc"].shape[0]
    o_pad = ((out_len + 127) // 128) * 128
    wfc_p = jnp.zeros((H_last, o_pad), jnp.float32).at[:, :out_len].set(
        jnp.transpose(params["w_fc"]))
    bfc_p = jnp.zeros((1, o_pad), jnp.float32).at[:, :out_len].set(params["b_fc"])

    return {"layers": klayers, "fc1": (wfc_p, bfc_p)}


# ------------------------------ pure-JAX reference -----------------------------
def _reference_forward(params, x, out_len):
    """Faithful f32 re-implementation of the PyTorch module (eval mode)."""
    hp = jax.lax.Precision.HIGHEST
    h = jnp.einsum("btd,ed->bte", x, params["w_att"], precision=hp)   # x @ W_att^T
    for (w_ih, w_hh, b_ih, b_hh) in params["lstm"]:
        B = h.shape[0]
        H = w_hh.shape[1]
        wih_t = jnp.transpose(w_ih)
        whh_t = jnp.transpose(w_hh)
        b = (b_ih + b_hh).reshape(1, 4 * H)

        def step(carry, x_t, wih_t=wih_t, whh_t=whh_t, b=b, H=H):
            hh, cc = carry
            gates = (jnp.dot(x_t, wih_t, precision=hp)
                     + jnp.dot(hh, whh_t, precision=hp) + b)
            i = jax.nn.sigmoid(gates[:, 0 * H:1 * H])
            f = jax.nn.sigmoid(gates[:, 1 * H:2 * H])
            g = jnp.tanh(gates[:, 2 * H:3 * H])
            o = jax.nn.sigmoid(gates[:, 3 * H:4 * H])
            cc = f * cc + i * g
            hh = o * jnp.tanh(cc)
            return (hh, cc), hh

        init = (jnp.zeros((B, H), jnp.float32), jnp.zeros((B, H), jnp.float32))
        _, hs = jax.lax.scan(step, init, jnp.transpose(h, (1, 0, 2)))
        h = jnp.transpose(hs, (1, 0, 2))
    y = jnp.einsum("bth,oh->bto", h, params["w_fc"], precision=hp) + params["b_fc"]
    return jax.nn.sigmoid(y)


# ------------------------------------ main --------------------------------------
if __name__ == "__main__":
    key = jax.random.PRNGKey(0)

    # small shapes consistent with the module
    B, T = 2, 8
    input_len = 16
    hidden_units = [32, 32]
    num_layers = [1, 2]
    out_len = 4

    key, kp, kx = jax.random.split(key, 3)
    params = init_params(kp, input_len, hidden_units, num_layers, out_len)
    kparams = prepare_kernel_params(params)
    x = jax.random.normal(kx, (B, T, input_len), dtype=jnp.float32)

    out, hidden = forward_self_attention_lstm(kparams, x, out_len=out_len)
    out = jax.block_until_ready(out)

    assert out.shape == (B, T, out_len)
    assert hidden is None
    assert bool(jnp.all(jnp.isfinite(out)))
    assert bool(jnp.all((out >= 0.0) & (out <= 1.0)))        # sigmoid range

    # Only deltas vs the f32 reference: MXU rounding, attention fold, tanh-via-sigmoid identity.
    ref = _reference_forward(params, x, out_len)
    np.testing.assert_allclose(np.asarray(out), np.asarray(ref), rtol=2e-3, atol=2e-3)

    print("KERNEL_OK")
</pallas_src>

<mosaic_0001>
module attributes {stable_mosaic.version = 11 : i64} {
  func.func @kernel(%arg0: i32, %arg1: memref<64x16xf32, #tpu.memory_space<vmem>>, %arg2: memref<16x128xf32, #tpu.memory_space<vmem>>, %arg3: memref<32x128xf32, #tpu.memory_space<vmem>>, %arg4: memref<1x128xf32, #tpu.memory_space<vmem>>, %arg5: memref<32x128xf32, #tpu.memory_space<vmem>>, %arg6: memref<32x128xf32, #tpu.memory_space<vmem>>, %arg7: memref<1x128xf32, #tpu.memory_space<vmem>>, %arg8: memref<32x128xf32, #tpu.memory_space<vmem>>, %arg9: memref<32x128xf32, #tpu.memory_space<vmem>>, %arg10: memref<1x128xf32, #tpu.memory_space<vmem>>, %arg11: memref<32x128xf32, #tpu.memory_space<vmem>>, %arg12: memref<1x128xf32, #tpu.memory_space<vmem>>, %arg13: memref<64x128xf32, #tpu.memory_space<vmem>>) attributes {dimension_semantics = [#tpu.dimension_semantics<arbitrary>], iteration_bounds = array<i64: 1>, scalar_prefetch = 0 : i64, scratch_operands = 0 : i64, tpu.core_type = #tpu.core_type<tc>, window_params = [{pipeline_mode = #tpu.pipeline_mode<synchronous>, transform_indices = @transform_0, window_bounds = array<i64: 64, 16>}, {pipeline_mode = #tpu.pipeline_mode<synchronous>, transform_indices = @transform_1, window_bounds = array<i64: 16, 128>}, {pipeline_mode = #tpu.pipeline_mode<synchronous>, transform_indices = @transform_2, window_bounds = array<i64: 32, 128>}, {pipeline_mode = #tpu.pipeline_mode<synchronous>, transform_indices = @transform_3, window_bounds = array<i64: 1, 128>}, {pipeline_mode = #tpu.pipeline_mode<synchronous>, transform_indices = @transform_4, window_bounds = array<i64: 32, 128>}, {pipeline_mode = #tpu.pipeline_mode<synchronous>, transform_indices = @transform_5, window_bounds = array<i64: 32, 128>}, {pipeline_mode = #tpu.pipeline_mode<synchronous>, transform_indices = @transform_6, window_bounds = array<i64: 1, 128>}, {pipeline_mode = #tpu.pipeline_mode<synchronous>, transform_indices = @transform_7, window_bounds = array<i64: 32, 128>}, {pipeline_mode = #tpu.pipeline_mode<synchronous>, transform_indices = @transform_8, window_bounds = array<i64: 32, 128>}, {pipeline_mode = #tpu.pipeline_mode<synchronous>, transform_indices = @transform_9, window_bounds = array<i64: 1, 128>}, {pipeline_mode = #tpu.pipeline_mode<synchronous>, transform_indices = @transform_10, window_bounds = array<i64: 32, 128>}, {pipeline_mode = #tpu.pipeline_mode<synchronous>, transform_indices = @transform_11, window_bounds = array<i64: 1, 128>}, {pipeline_mode = #tpu.pipeline_mode<synchronous>, transform_indices = @transform_12, window_bounds = array<i64: 64, 128>}]} {
    %c0 = arith.constant 0 : index
    %c0_0 = arith.constant 0 : index
    %0 = vector.load %arg1[%c0, %c0_0] : memref<64x16xf32, #tpu.memory_space<vmem>>, vector<64x16xf32>
    %c0_1 = arith.constant 0 : index
    %c0_2 = arith.constant 0 : index
    %1 = vector.load %arg2[%c0_1, %c0_2] : memref<16x128xf32, #tpu.memory_space<vmem>>, vector<16x128xf32>
    %cst = arith.constant dense<0.000000e+00> : vector<64x128xf32>
    %2 = tpu.matmul %0, %1, %cst {dimension_numbers = #tpu.dot_dimension_numbers<[1], [0], [0], [1], [0, 0, 1, 1], [], []>} : vector<64x16xf32>, vector<16x128xf32>, vector<64x128xf32> -> vector<64x128xf32>
    %c0_3 = arith.constant 0 : index
    %c0_4 = arith.constant 0 : index
    %3 = vector.load %arg4[%c0_3, %c0_4] : memref<1x128xf32, #tpu.memory_space<vmem>>, vector<1x128xf32>
    %4 = vector.broadcast %3 : vector<1x128xf32> to vector<64x128xf32>
    %5 = arith.addf %2, %4 : vector<64x128xf32>
    %c0_5 = arith.constant 0 : index
    %c0_6 = arith.constant 0 : index
    %6 = vector.load %arg3[%c0_5, %c0_6] : memref<32x128xf32, #tpu.memory_space<vmem>>, vector<32x128xf32>
    %c0_7 = arith.constant 0 : index
    %c0_8 = arith.constant 0 : index
    %7 = vector.load %arg6[%c0_7, %c0_8] : memref<32x128xf32, #tpu.memory_space<vmem>>, vector<32x128xf32>
    %c0_9 = arith.constant 0 : index
    %c0_10 = arith.constant 0 : index
    %8 = vector.load %arg9[%c0_9, %c0_10] : memref<32x128xf32, #tpu.memory_space<vmem>>, vector<32x128xf32>
    %c0_11 = arith.constant 0 : index
    %c0_12 = arith.constant 0 : index
    %9 = vector.load %arg5[%c0_11, %c0_12] : memref<32x128xf32, #tpu.memory_space<vmem>>, vector<32x128xf32>
    %c0_13 = arith.constant 0 : index
    %c0_14 = arith.constant 0 : index
    %10 = vector.load %arg8[%c0_13, %c0_14] : memref<32x128xf32, #tpu.memory_space<vmem>>, vector<32x128xf32>
    %c0_15 = arith.constant 0 : index
    %c0_16 = arith.constant 0 : index
    %11 = vector.load %arg7[%c0_15, %c0_16] : memref<1x128xf32, #tpu.memory_space<vmem>>, vector<1x128xf32>
    %c0_17 = arith.constant 0 : index
    %c0_18 = arith.constant 0 : index
    %12 = vector.load %arg10[%c0_17, %c0_18] : memref<1x128xf32, #tpu.memory_space<vmem>>, vector<1x128xf32>
    %cst_19 = arith.constant 0.000000e+00 : f32
    %13 = vector.broadcast %cst_19 : f32 to vector<8x32xf32>
    %cst_20 = arith.constant 0.000000e+00 : f32
    %14 = vector.broadcast %cst_20 : f32 to vector<8x32xf32>
    %cst_21 = arith.constant 0.000000e+00 : f32
    %15 = vector.broadcast %cst_21 : f32 to vector<8x32xf32>
    %cst_22 = arith.constant 0.000000e+00 : f32
    %16 = vector.broadcast %cst_22 : f32 to vector<8x32xf32>
    %cst_23 = arith.constant 0.000000e+00 : f32
    %17 = vector.broadcast %cst_23 : f32 to vector<8x32xf32>
    %cst_24 = arith.constant 0.000000e+00 : f32
    %18 = vector.broadcast %cst_24 : f32 to vector<8x32xf32>
    %cst_25 = arith.constant dense<0.000000e+00> : vector<8x128xf32>
    %19 = tpu.matmul %13, %6, %cst_25 {dimension_numbers = #tpu.dot_dimension_numbers<[1], [0], [0], [1], [0, 0, 1, 1], [], []>} : vector<8x32xf32>, vector<32x128xf32>, vector<8x128xf32> -> vector<8x128xf32>
    %20 = vector.extract_strided_slice %5 {offsets = [0, 0], sizes = [8, 128], strides = [1, 1]} : vector<64x128xf32> to vector<8x128xf32>
    %21 = arith.addf %20, %19 : vector<8x128xf32>
    %22 = arith.negf %21 : vector<8x128xf32>
    %23 = math.exp %22 : vector<8x128xf32>
    %cst_26 = arith.constant 1.000000e+00 : f32
    %24 = vector.broadcast %cst_26 : f32 to vector<8x128xf32>
    %25 = arith.addf %24, %23 : vector<8x128xf32>
    %26 = arith.divf %24, %25 : vector<8x128xf32>
    %27 = vector.extract_strided_slice %26 {offsets = [0, 0], sizes = [8, 32], strides = [1, 1]} : vector<8x128xf32> to vector<8x32xf32>
    %28 = vector.extract_strided_slice %26 {offsets = [0, 32], sizes = [8, 32], strides = [1, 1]} : vector<8x128xf32> to vector<8x32xf32>
    %29 = vector.extract_strided_slice %26 {offsets = [0, 64], sizes = [8, 32], strides = [1, 1]} : vector<8x128xf32> to vector<8x32xf32>
    %cst_27 = arith.constant 2.000000e+00 : f32
    %30 = vector.broadcast %cst_27 : f32 to vector<8x32xf32>
    %31 = arith.mulf %30, %29 : vector<8x32xf32>
    %cst_28 = arith.constant 1.000000e+00 : f32
    %32 = vector.broadcast %cst_28 : f32 to vector<8x32xf32>
    %33 = arith.subf %31, %32 : vector<8x32xf32>
    %34 = vector.extract_strided_slice %26 {offsets = [0, 96], sizes = [8, 32], strides = [1, 1]} : vector<8x128xf32> to vector<8x32xf32>
    %35 = arith.mulf %28, %16 : vector<8x32xf32>
    %36 = arith.mulf %27, %33 : vector<8x32xf32>
    %37 = arith.addf %35, %36 : vector<8x32xf32>
    %38 = math.tanh %37 : vector<8x32xf32>
    %39 = arith.mulf %34, %38 : vector<8x32xf32>
    %cst_29 = arith.constant dense<0.000000e+00> : vector<8x128xf32>
    %40 = tpu.matmul %39, %6, %cst_29 {dimension_numbers = #tpu.dot_dimension_numbers<[1], [0], [0], [1], [0, 0, 1, 1], [], []>} : vector<8x32xf32>, vector<32x128xf32>, vector<8x128xf32> -> vector<8x128xf32>
    %41 = vector.extract_strided_slice %5 {offsets = [8, 0], sizes = [8, 128], strides = [1, 1]} : vector<64x128xf32> to vector<8x128xf32>
    %42 = arith.addf %41, %40 : vector<8x128xf32>
    %43 = arith.negf %42 : vector<8x128xf32>
    %44 = math.exp %43 : vector<8x128xf32>
    %cst_30 = arith.constant 1.000000e+00 : f32
    %45 = vector.broadcast %cst_30 : f32 to vector<8x128xf32>
    %46 = arith.addf %45, %44 : vector<8x128xf32>
    %47 = arith.divf %45, %46 : vector<8x128xf32>
    %48 = vector.extract_strided_slice %47 {offsets = [0, 0], sizes = [8, 32], strides = [1, 1]} : vector<8x128xf32> to vector<8x32xf32>
    %49 = vector.extract_strided_slice %47 {offsets = [0, 32], sizes = [8, 32], strides = [1, 1]} : vector<8x128xf32> to vector<8x32xf32>
    %50 = vector.extract_strided_slice %47 {offsets = [0, 64], sizes = [8, 32], strides = [1, 1]} : vector<8x128xf32> to vector<8x32xf32>
    %cst_31 = arith.constant 2.000000e+00 : f32
    %51 = vector.broadcast %cst_31 : f32 to vector<8x32xf32>
    %52 = arith.mulf %51, %50 : vector<8x32xf32>
    %cst_32 = arith.constant 1.000000e+00 : f32
    %53 = vector.broadcast %cst_32 : f32 to vector<8x32xf32>
    %54 = arith.subf %52, %53 : vector<8x32xf32>
    %55 = vector.extract_strided_slice %47 {offsets = [0, 96], sizes = [8, 32], strides = [1, 1]} : vector<8x128xf32> to vector<8x32xf32>
    %56 = arith.mulf %49, %37 : vector<8x32xf32>
    %57 = arith.mulf %48, %54 : vector<8x32xf32>
    %58 = arith.addf %56, %57 : vector<8x32xf32>
    %59 = math.tanh %58 : vector<8x32xf32>
    %60 = arith.mulf %55, %59 : vector<8x32xf32>
    %cst_33 = arith.constant dense<0.000000e+00> : vector<8x128xf32>
    %61 = tpu.matmul %14, %7, %cst_33 {dimension_numbers = #tpu.dot_dimension_numbers<[1], [0], [0], [1], [0, 0, 1, 1], [], []>} : vector<8x32xf32>, vector<32x128xf32>, vector<8x128xf32> -> vector<8x128xf32>
    %cst_34 = arith.constant dense<0.000000e+00> : vector<8x128xf32>
    %62 = tpu.matmul %39, %9, %cst_34 {dimension_numbers = #tpu.dot_dimension_numbers<[1], [0], [0], [1], [0, 0, 1, 1], [], []>} : vector<8x32xf32>, vector<32x128xf32>, vector<8x128xf32> -> vector<8x128xf32>
    %63 = arith.addf %62, %61 : vector<8x128xf32>
    %64 = vector.broadcast %11 : vector<1x128xf32> to vector<8x128xf32>
    %65 = arith.addf %63, %64 : vector<8x128xf32>
    %66 = arith.negf %65 : vector<8x128xf32>
    %67 = math.exp %66 : vector<8x128xf32>
    %cst_35 = arith.constant 1.000000e+00 : f32
    %68 = vector.broadcast %cst_35 : f32 to vector<8x128xf32>
    %69 = arith.addf %68, %67 : vector<8x128xf32>
    %70 = arith.divf %68, %69 : vector<8x128xf32>
    %71 = vector.extract_strided_slice %70 {offsets = [0, 0], sizes = [8, 32], strides = [1, 1]} : vector<8x128xf32> to vector<8x32xf32>
    %72 = vector.extract_strided_slice %70 {offsets = [0, 32], sizes = [8, 32], strides = [1, 1]} : vector<8x128xf32> to vector<8x32xf32>
    %73 = vector.extract_strided_slice %70 {offsets = [0, 64], sizes = [8, 32], strides = [1, 1]} : vector<8x128xf32> to vector<8x32xf32>
    %cst_36 = arith.constant 2.000000e+00 : f32
    %74 = vector.broadcast %cst_36 : f32 to vector<8x32xf32>
    %75 = arith.mulf %74, %73 : vector<8x32xf32>
    %cst_37 = arith.constant 1.000000e+00 : f32
    %76 = vector.broadcast %cst_37 : f32 to vector<8x32xf32>
    %77 = arith.subf %75, %76 : vector<8x32xf32>
    %78 = vector.extract_strided_slice %70 {offsets = [0, 96], sizes = [8, 32], strides = [1, 1]} : vector<8x128xf32> to vector<8x32xf32>
    %79 = arith.mulf %72, %17 : vector<8x32xf32>
    %80 = arith.mulf %71, %77 : vector<8x32xf32>
    %81 = arith.addf %79, %80 : vector<8x32xf32>
    %82 = math.tanh %81 : vector<8x32xf32>
    %83 = arith.mulf %78, %82 : vector<8x32xf32>
    %cst_38 = arith.constant dense<0.000000e+00> : vector<8x128xf32>
    %84 = tpu.matmul %60, %6, %cst_38 {dimension_numbers = #tpu.dot_dimension_numbers<[1], [0], [0], [1], [0, 0, 1, 1], [], []>} : vector<8x32xf32>, vector<32x128xf32>, vector<8x128xf32> -> vector<8x128xf32>
    %85 = vector.extract_strided_slice %5 {offsets = [16, 0], sizes = [8, 128], strides = [1, 1]} : vector<64x128xf32> to vector<8x128xf32>
    %86 = arith.addf %85, %84 : vector<8x128xf32>
    %87 = arith.negf %86 : vector<8x128xf32>
    %88 = math.exp %87 : vector<8x128xf32>
    %cst_39 = arith.constant 1.000000e+00 : f32
    %89 = vector.broadcast %cst_39 : f32 to vector<8x128xf32>
    %90 = arith.addf %89, %88 : vector<8x128xf32>
    %91 = arith.divf %89, %90 : vector<8x128xf32>
    %92 = vector.extract_strided_slice %91 {offsets = [0, 0], sizes = [8, 32], strides = [1, 1]} : vector<8x128xf32> to vector<8x32xf32>
    %93 = vector.extract_strided_slice %91 {offsets = [0, 32], sizes = [8, 32], strides = [1, 1]} : vector<8x128xf32> to vector<8x32xf32>
    %94 = vector.extract_strided_slice %91 {offsets = [0, 64], sizes = [8, 32], strides = [1, 1]} : vector<8x128xf32> to vector<8x32xf32>
    %cst_40 = arith.constant 2.000000e+00 : f32
    %95 = vector.broadcast %cst_40 : f32 to vector<8x32xf32>
    %96 = arith.mulf %95, %94 : vector<8x32xf32>
    %cst_41 = arith.constant 1.000000e+00 : f32
    %97 = vector.broadcast %cst_41 : f32 to vector<8x32xf32>
    %98 = arith.subf %96, %97 : vector<8x32xf32>
    %99 = vector.extract_strided_slice %91 {offsets = [0, 96], sizes = [8, 32], strides = [1, 1]} : vector<8x128xf32> to vector<8x32xf32>
    %100 = arith.mulf %93, %58 : vector<8x32xf32>
    %101 = arith.mulf %92, %98 : vector<8x32xf32>
    %102 = arith.addf %100, %101 : vector<8x32xf32>
    %103 = math.tanh %102 : vector<8x32xf32>
    %104 = arith.mulf %99, %103 : vector<8x32xf32>
    %cst_42 = arith.constant dense<0.000000e+00> : vector<8x128xf32>
    %105 = tpu.matmul %83, %7, %cst_42 {dimension_numbers = #tpu.dot_dimension_numbers<[1], [0], [0], [1], [0, 0, 1, 1], [], []>} : vector<8x32xf32>, vector<32x128xf32>, vector<8x128xf32> -> vector<8x128xf32>
    %cst_43 = arith.constant dense<0.000000e+00> : vector<8x128xf32>
    %106 = tpu.matmul %60, %9, %cst_43 {dimension_numbers = #tpu.dot_dimension_numbers<[1], [0], [0], [1], [0, 0, 1, 1], [], []>} : vector<8x32xf32>, vector<32x128xf32>, vector<8x128xf32> -> vector<8x128xf32>
    %107 = arith.addf %106, %105 : vector<8x128xf32>
    %108 = vector.broadcast %11 : vector<1x128xf32> to vector<8x128xf32>
    %109 = arith.addf %107, %108 : vector<8x128xf32>
    %110 = arith.negf %109 : vector<8x128xf32>
    %111 = math.exp %110 : vector<8x128xf32>
    %cst_44 = arith.constant 1.000000e+00 : f32
    %112 = vector.broadcast %cst_44 : f32 to vector<8x128xf32>
    %113 = arith.addf %112, %111 : vector<8x128xf32>
    %114 = arith.divf %112, %113 : vector<8x128xf32>
    %115 = vector.extract_strided_slice %114 {offsets = [0, 0], sizes = [8, 32], strides = [1, 1]} : vector<8x128xf32> to vector<8x32xf32>
    %116 = vector.extract_strided_slice %114 {offsets = [0, 32], sizes = [8, 32], strides = [1, 1]} : vector<8x128xf32> to vector<8x32xf32>
    %117 = vector.extract_strided_slice %114 {offsets = [0, 64], sizes = [8, 32], strides = [1, 1]} : vector<8x128xf32> to vector<8x32xf32>
    %cst_45 = arith.constant 2.000000e+00 : f32
    %118 = vector.broadcast %cst_45 : f32 to vector<8x32xf32>
    %119 = arith.mulf %118, %117 : vector<8x32xf32>
    %cst_46 = arith.constant 1.000000e+00 : f32
    %120 = vector.broadcast %cst_46 : f32 to vector<8x32xf32>
    %121 = arith.subf %119, %120 : vector<8x32xf32>
    %122 = vector.extract_strided_slice %114 {offsets = [0, 96], sizes = [8, 32], strides = [1, 1]} : vector<8x128xf32> to vector<8x32xf32>
    %123 = arith.mulf %116, %81 : vector<8x32xf32>
    %124 = arith.mulf %115, %121 : vector<8x32xf32>
    %125 = arith.addf %123, %124 : vector<8x32xf32>
    %126 = math.tanh %125 : vector<8x32xf32>
    %127 = arith.mulf %122, %126 : vector<8x32xf32>
    %cst_47 = arith.constant dense<0.000000e+00> : vector<8x128xf32>
    %128 = tpu.matmul %15, %8, %cst_47 {dimension_numbers = #tpu.dot_dimension_numbers<[1], [0], [0], [1], [0, 0, 1, 1], [], []>} : vector<8x32xf32>, vector<32x128xf32>, vector<8x128xf32> -> vector<8x128xf32>
    %cst_48 = arith.constant dense<0.000000e+00> : vector<8x128xf32>
    %129 = tpu.matmul %83, %10, %cst_48 {dimension_numbers = #tpu.dot_dimension_numbers<[1], [0], [0], [1], [0, 0, 1, 1], [], []>} : vector<8x32xf32>, vector<32x128xf32>, vector<8x128xf32> -> vector<8x128xf32>
    %130 = arith.addf %129, %128 : vector<8x128xf32>
    %131 = vector.broadcast %12 : vector<1x128xf32> to vector<8x128xf32>
    %132 = arith.addf %130, %131 : vector<8x128xf32>
    %133 = arith.negf %132 : vector<8x128xf32>
    %134 = math.exp %133 : vector<8x128xf32>
    %cst_49 = arith.constant 1.000000e+00 : f32
    %135 = vector.broadcast %cst_49 : f32 to vector<8x128xf32>
    %136 = arith.addf %135, %134 : vector<8x128xf32>
    %137 = arith.divf %135, %136 : vector<8x128xf32>
    %138 = vector.extract_strided_slice %137 {offsets = [0, 0], sizes = [8, 32], strides = [1, 1]} : vector<8x128xf32> to vector<8x32xf32>
    %139 = vector.extract_strided_slice %137 {offsets = [0, 32], sizes = [8, 32], strides = [1, 1]} : vector<8x128xf32> to vector<8x32xf32>
    %140 = vector.extract_strided_slice %137 {offsets = [0, 64], sizes = [8, 32], strides = [1, 1]} : vector<8x128xf32> to vector<8x32xf32>
    %cst_50 = arith.constant 2.000000e+00 : f32
    %141 = vector.broadcast %cst_50 : f32 to vector<8x32xf32>
    %142 = arith.mulf %141, %140 : vector<8x32xf32>
    %cst_51 = arith.constant 1.000000e+00 : f32
    %143 = vector.broadcast %cst_51 : f32 to vector<8x32xf32>
    %144 = arith.subf %142, %143 : vector<8x32xf32>
    %145 = vector.extract_strided_slice %137 {offsets = [0, 96], sizes = [8, 32], strides = [1, 1]} : vector<8x128xf32> to vector<8x32xf32>
    %146 = arith.mulf %139, %18 : vector<8x32xf32>
    %147 = arith.mulf %138, %144 : vector<8x32xf32>
    %148 = arith.addf %146, %147 : vector<8x32xf32>
    %149 = math.tanh %148 : vector<8x32xf32>
    %150 = arith.mulf %145, %149 : vector<8x32xf32>
    %cst_52 = arith.constant dense<0.000000e+00> : vector<8x128xf32>
    %151 = tpu.matmul %104, %6, %cst_52 {dimension_numbers = #tpu.dot_dimension_numbers<[1], [0], [0], [1], [0, 0, 1, 1], [], []>} : vector<8x32xf32>, vector<32x128xf32>, vector<8x128xf32> -> vector<8x128xf32>
    %152 = vector.extract_strided_slice %5 {offsets = [24, 0], sizes = [8, 128], strides = [1, 1]} : vector<64x128xf32> to vector<8x128xf32>
    %153 = arith.addf %152, %151 : vector<8x128xf32>
    %154 = arith.negf %153 : vector<8x128xf32>
    %155 = math.exp %154 : vector<8x128xf32>
    %cst_53 = arith.constant 1.000000e+00 : f32
    %156 = vector.broadcast %cst_53 : f32 to vector<8x128xf32>
    %157 = arith.addf %156, %155 : vector<8x128xf32>
    %158 = arith.divf %156, %157 : vector<8x128xf32>
    %159 = vector.extract_strided_slice %158 {offsets = [0, 0], sizes = [8, 32], strides = [1, 1]} : vector<8x128xf32> to vector<8x32xf32>
    %160 = vector.extract_strided_slice %158 {offsets = [0, 32], sizes = [8, 32], strides = [1, 1]} : vector<8x128xf32> to vector<8x32xf32>
    %161 = vector.extract_strided_slice %158 {offsets = [0, 64], sizes = [8, 32], strides = [1, 1]} : vector<8x128xf32> to vector<8x32xf32>
    %cst_54 = arith.constant 2.000000e+00 : f32
    %162 = vector.broadcast %cst_54 : f32 to vector<8x32xf32>
    %163 = arith.mulf %162, %161 : vector<8x32xf32>
    %cst_55 = arith.constant 1.000000e+00 : f32
    %164 = vector.broadcast %cst_55 : f32 to vector<8x32xf32>
    %165 = arith.subf %163, %164 : vector<8x32xf32>
    %166 = vector.extract_strided_slice %158 {offsets = [0, 96], sizes = [8, 32], strides = [1, 1]} : vector<8x128xf32> to vector<8x32xf32>
    %167 = arith.mulf %160, %102 : vector<8x32xf32>
    %168 = arith.mulf %159, %165 : vector<8x32xf32>
    %169 = arith.addf %167, %168 : vector<8x32xf32>
    %170 = math.tanh %169 : vector<8x32xf32>
    %171 = arith.mulf %166, %170 : vector<8x32xf32>
    %cst_56 = arith.constant dense<0.000000e+00> : vector<8x128xf32>
    %172 = tpu.matmul %127, %7, %cst_56 {dimension_numbers = #tpu.dot_dimension_numbers<[1], [0], [0], [1], [0, 0, 1, 1], [], []>} : vector<8x32xf32>, vector<32x128xf32>, vector<8x128xf32> -> vector<8x128xf32>
    %cst_57 = arith.constant dense<0.000000e+00> : vector<8x128xf32>
    %173 = tpu.matmul %104, %9, %cst_57 {dimension_numbers = #tpu.dot_dimension_numbers<[1], [0], [0], [1], [0, 0, 1, 1], [], []>} : vector<8x32xf32>, vector<32x128xf32>, vector<8x128xf32> -> vector<8x128xf32>
    %174 = arith.addf %173, %172 : vector<8x128xf32>
    %175 = vector.broadcast %11 : vector<1x128xf32> to vector<8x128xf32>
    %176 = arith.addf %174, %175 : vector<8x128xf32>
    %177 = arith.negf %176 : vector<8x128xf32>
    %178 = math.exp %177 : vector<8x128xf32>
    %cst_58 = arith.constant 1.000000e+00 : f32
    %179 = vector.broadcast %cst_58 : f32 to vector<8x128xf32>
    %180 = arith.addf %179, %178 : vector<8x128xf32>
    %181 = arith.divf %179, %180 : vector<8x128xf32>
    %182 = vector.extract_strided_slice %181 {offsets = [0, 0], sizes = [8, 32], strides = [1, 1]} : vector<8x128xf32> to vector<8x32xf32>
    %183 = vector.extract_strided_slice %181 {offsets = [0, 32], sizes = [8, 32], strides = [1, 1]} : vector<8x128xf32> to vector<8x32xf32>
    %184 = vector.extract_strided_slice %181 {offsets = [0, 64], sizes = [8, 32], strides = [1, 1]} : vector<8x128xf32> to vector<8x32xf32>
    %cst_59 = arith.constant 2.000000e+00 : f32
    %185 = vector.broadcast %cst_59 : f32 to vector<8x32xf32>
    %186 = arith.mulf %185, %184 : vector<8x32xf32>
    %cst_60 = arith.constant 1.000000e+00 : f32
    %187 = vector.broadcast %cst_60 : f32 to vector<8x32xf32>
    %188 = arith.subf %186, %187 : vector<8x32xf32>
    %189 = vector.extract_strided_slice %181 {offsets = [0, 96], sizes = [8, 32], strides = [1, 1]} : vector<8x128xf32> to vector<8x32xf32>
    %190 = arith.mulf %183, %125 : vector<8x32xf32>
    %191 = arith.mulf %182, %188 : vector<8x32xf32>
    %192 = arith.addf %190, %191 : vector<8x32xf32>
    %193 = math.tanh %192 : vector<8x32xf32>
    %194 = arith.mulf %189, %193 : vector<8x32xf32>
    %cst_61 = arith.constant dense<0.000000e+00> : vector<8x128xf32>
    %195 = tpu.matmul %150, %8, %cst_61 {dimension_numbers = #tpu.dot_dimension_numbers<[1], [0], [0], [1], [0, 0, 1, 1], [], []>} : vector<8x32xf32>, vector<32x128xf32>, vector<8x128xf32> -> vector<8x128xf32>
    %cst_62 = arith.constant dense<0.000000e+00> : vector<8x128xf32>
    %196 = tpu.matmul %127, %10, %cst_62 {dimension_numbers = #tpu.dot_dimension_numbers<[1], [0], [0], [1], [0, 0, 1, 1], [], []>} : vector<8x32xf32>, vector<32x128xf32>, vector<8x128xf32> -> vector<8x128xf32>
    %197 = arith.addf %196, %195 : vector<8x128xf32>
    %198 = vector.broadcast %12 : vector<1x128xf32> to vector<8x128xf32>
    %199 = arith.addf %197, %198 : vector<8x128xf32>
    %200 = arith.negf %199 : vector<8x128xf32>
    %201 = math.exp %200 : vector<8x128xf32>
    %cst_63 = arith.constant 1.000000e+00 : f32
    %202 = vector.broadcast %cst_63 : f32 to vector<8x128xf32>
    %203 = arith.addf %202, %201 : vector<8x128xf32>
    %204 = arith.divf %202, %203 : vector<8x128xf32>
    %205 = vector.extract_strided_slice %204 {offsets = [0, 0], sizes = [8, 32], strides = [1, 1]} : vector<8x128xf32> to vector<8x32xf32>
    %206 = vector.extract_strided_slice %204 {offsets = [0, 32], sizes = [8, 32], strides = [1, 1]} : vector<8x128xf32> to vector<8x32xf32>
    %207 = vector.extract_strided_slice %204 {offsets = [0, 64], sizes = [8, 32], strides = [1, 1]} : vector<8x128xf32> to vector<8x32xf32>
    %cst_64 = arith.constant 2.000000e+00 : f32
    %208 = vector.broadcast %cst_64 : f32 to vector<8x32xf32>
    %209 = arith.mulf %208, %207 : vector<8x32xf32>
    %cst_65 = arith.constant 1.000000e+00 : f32
    %210 = vector.broadcast %cst_65 : f32 to vector<8x32xf32>
    %211 = arith.subf %209, %210 : vector<8x32xf32>
    %212 = vector.extract_strided_slice %204 {offsets = [0, 96], sizes = [8, 32], strides = [1, 1]} : vector<8x128xf32> to vector<8x32xf32>
    %213 = arith.mulf %206, %148 : vector<8x32xf32>
    %214 = arith.mulf %205, %211 : vector<8x32xf32>
    %215 = arith.addf %213, %214 : vector<8x32xf32>
    %216 = math.tanh %215 : vector<8x32xf32>
    %217 = arith.mulf %212, %216 : vector<8x32xf32>
    %cst_66 = arith.constant dense<0.000000e+00> : vector<8x128xf32>
    %218 = tpu.matmul %171, %6, %cst_66 {dimension_numbers = #tpu.dot_dimension_numbers<[1], [0], [0], [1], [0, 0, 1, 1], [], []>} : vector<8x32xf32>, vector<32x128xf32>, vector<8x128xf32> -> vector<8x128xf32>
    %219 = vector.extract_strided_slice %5 {offsets = [32, 0], sizes = [8, 128], strides = [1, 1]} : vector<64x128xf32> to vector<8x128xf32>
    %220 = arith.addf %219, %218 : vector<8x128xf32>
    %221 = arith.negf %220 : vector<8x128xf32>
    %222 = math.exp %221 : vector<8x128xf32>
    %cst_67 = arith.constant 1.000000e+00 : f32
    %223 = vector.broadcast %cst_67 : f32 to vector<8x128xf32>
    %224 = arith.addf %223, %222 : vector<8x128xf32>
    %225 = arith.divf %223, %224 : vector<8x128xf32>
    %226 = vector.extract_strided_slice %225 {offsets = [0, 0], sizes = [8, 32], strides = [1, 1]} : vector<8x128xf32> to vector<8x32xf32>
    %227 = vector.extract_strided_slice %225 {offsets = [0, 32], sizes = [8, 32], strides = [1, 1]} : vector<8x128xf32> to vector<8x32xf32>
    %228 = vector.extract_strided_slice %225 {offsets = [0, 64], sizes = [8, 32], strides = [1, 1]} : vector<8x128xf32> to vector<8x32xf32>
    %cst_68 = arith.constant 2.000000e+00 : f32
    %229 = vector.broadcast %cst_68 : f32 to vector<8x32xf32>
    %230 = arith.mulf %229, %228 : vector<8x32xf32>
    %cst_69 = arith.constant 1.000000e+00 : f32
    %231 = vector.broadcast %cst_69 : f32 to vector<8x32xf32>
    %232 = arith.subf %230, %231 : vector<8x32xf32>
    %233 = vector.extract_strided_slice %225 {offsets = [0, 96], sizes = [8, 32], strides = [1, 1]} : vector<8x128xf32> to vector<8x32xf32>
    %234 = arith.mulf %227, %169 : vector<8x32xf32>
    %235 = arith.mulf %226, %232 : vector<8x32xf32>
    %236 = arith.addf %234, %235 : vector<8x32xf32>
    %237 = math.tanh %236 : vector<8x32xf32>
    %238 = arith.mulf %233, %237 : vector<8x32xf32>
    %cst_70 = arith.constant dense<0.000000e+00> : vector<8x128xf32>
    %239 = tpu.matmul %194, %7, %cst_70 {dimension_numbers = #tpu.dot_dimension_numbers<[1], [0], [0], [1], [0, 0, 1, 1], [], []>} : vector<8x32xf32>, vector<32x128xf32>, vector<8x128xf32> -> vector<8x128xf32>
    %cst_71 = arith.constant dense<0.000000e+00> : vector<8x128xf32>
    %240 = tpu.matmul %171, %9, %cst_71 {dimension_numbers = #tpu.dot_dimension_numbers<[1], [0], [0], [1], [0, 0, 1, 1], [], []>} : vector<8x32xf32>, vector<32x128xf32>, vector<8x128xf32> -> vector<8x128xf32>
    %241 = arith.addf %240, %239 : vector<8x128xf32>
    %242 = vector.broadcast %11 : vector<1x128xf32> to vector<8x128xf32>
    %243 = arith.addf %241, %242 : vector<8x128xf32>
    %244 = arith.negf %243 : vector<8x128xf32>
    %245 = math.exp %244 : vector<8x128xf32>
    %cst_72 = arith.constant 1.000000e+00 : f32
    %246 = vector.broadcast %cst_72 : f32 to vector<8x128xf32>
    %247 = arith.addf %246, %245 : vector<8x128xf32>
    %248 = arith.divf %246, %247 : vector<8x128xf32>
    %249 = vector.extract_strided_slice %248 {offsets = [0, 0], sizes = [8, 32], strides = [1, 1]} : vector<8x128xf32> to vector<8x32xf32>
    %250 = vector.extract_strided_slice %248 {offsets = [0, 32], sizes = [8, 32], strides = [1, 1]} : vector<8x128xf32> to vector<8x32xf32>
    %251 = vector.extract_strided_slice %248 {offsets = [0, 64], sizes = [8, 32], strides = [1, 1]} : vector<8x128xf32> to vector<8x32xf32>
    %cst_73 = arith.constant 2.000000e+00 : f32
    %252 = vector.broadcast %cst_73 : f32 to vector<8x32xf32>
    %253 = arith.mulf %252, %251 : vector<8x32xf32>
    %cst_74 = arith.constant 1.000000e+00 : f32
    %254 = vector.broadcast %cst_74 : f32 to vector<8x32xf32>
    %255 = arith.subf %253, %254 : vector<8x32xf32>
    %256 = vector.extract_strided_slice %248 {offsets = [0, 96], sizes = [8, 32], strides = [1, 1]} : vector<8x128xf32> to vector<8x32xf32>
    %257 = arith.mulf %250, %192 : vector<8x32xf32>
    %258 = arith.mulf %249, %255 : vector<8x32xf32>
    %259 = arith.addf %257, %258 : vector<8x32xf32>
    %260 = math.tanh %259 : vector<8x32xf32>
    %261 = arith.mulf %256, %260 : vector<8x32xf32>
    %cst_75 = arith.constant dense<0.000000e+00> : vector<8x128xf32>
    %262 = tpu.matmul %217, %8, %cst_75 {dimension_numbers = #tpu.dot_dimension_numbers<[1], [0], [0], [1], [0, 0, 1, 1], [], []>} : vector<8x32xf32>, vector<32x128xf32>, vector<8x128xf32> -> vector<8x128xf32>
    %cst_76 = arith.constant dense<0.000000e+00> : vector<8x128xf32>
    %263 = tpu.matmul %194, %10, %cst_76 {dimension_numbers = #tpu.dot_dimension_numbers<[1], [0], [0], [1], [0, 0, 1, 1], [], []>} : vector<8x32xf32>, vector<32x128xf32>, vector<8x128xf32> -> vector<8x128xf32>
    %264 = arith.addf %263, %262 : vector<8x128xf32>
    %265 = vector.broadcast %12 : vector<1x128xf32> to vector<8x128xf32>
    %266 = arith.addf %264, %265 : vector<8x128xf32>
    %267 = arith.negf %266 : vector<8x128xf32>
    %268 = math.exp %267 : vector<8x128xf32>
    %cst_77 = arith.constant 1.000000e+00 : f32
    %269 = vector.broadcast %cst_77 : f32 to vector<8x128xf32>
    %270 = arith.addf %269, %268 : vector<8x128xf32>
    %271 = arith.divf %269, %270 : vector<8x128xf32>
    %272 = vector.extract_strided_slice %271 {offsets = [0, 0], sizes = [8, 32], strides = [1, 1]} : vector<8x128xf32> to vector<8x32xf32>
    %273 = vector.extract_strided_slice %271 {offsets = [0, 32], sizes = [8, 32], strides = [1, 1]} : vector<8x128xf32> to vector<8x32xf32>
    %274 = vector.extract_strided_slice %271 {offsets = [0, 64], sizes = [8, 32], strides = [1, 1]} : vector<8x128xf32> to vector<8x32xf32>
    %cst_78 = arith.constant 2.000000e+00 : f32
    %275 = vector.broadcast %cst_78 : f32 to vector<8x32xf32>
    %276 = arith.mulf %275, %274 : vector<8x32xf32>
    %cst_79 = arith.constant 1.000000e+00 : f32
    %277 = vector.broadcast %cst_79 : f32 to vector<8x32xf32>
    %278 = arith.subf %276, %277 : vector<8x32xf32>
    %279 = vector.extract_strided_slice %271 {offsets = [0, 96], sizes = [8, 32], strides = [1, 1]} : vector<8x128xf32> to vector<8x32xf32>
    %280 = arith.mulf %273, %215 : vector<8x32xf32>
    %281 = arith.mulf %272, %278 : vector<8x32xf32>
    %282 = arith.addf %280, %281 : vector<8x32xf32>
    %283 = math.tanh %282 : vector<8x32xf32>
    %284 = arith.mulf %279, %283 : vector<8x32xf32>
    %cst_80 = arith.constant dense<0.000000e+00> : vector<8x128xf32>
    %285 = tpu.matmul %238, %6, %cst_80 {dimension_numbers = #tpu.dot_dimension_numbers<[1], [0], [0], [1], [0, 0, 1, 1], [], []>} : vector<8x32xf32>, vector<32x128xf32>, vector<8x128xf32> -> vector<8x128xf32>
    %286 = vector.extract_strided_slice %5 {offsets = [40, 0], sizes = [8, 128], strides = [1, 1]} : vector<64x128xf32> to vector<8x128xf32>
    %287 = arith.addf %286, %285 : vector<8x128xf32>
    %288 = arith.negf %287 : vector<8x128xf32>
    %289 = math.exp %288 : vector<8x128xf32>
    %cst_81 = arith.constant 1.000000e+00 : f32
    %290 = vector.broadcast %cst_81 : f32 to vector<8x128xf32>
    %291 = arith.addf %290, %289 : vector<8x128xf32>
    %292 = arith.divf %290, %291 : vector<8x128xf32>
    %293 = vector.extract_strided_slice %292 {offsets = [0, 0], sizes = [8, 32], strides = [1, 1]} : vector<8x128xf32> to vector<8x32xf32>
    %294 = vector.extract_strided_slice %292 {offsets = [0, 32], sizes = [8, 32], strides = [1, 1]} : vector<8x128xf32> to vector<8x32xf32>
    %295 = vector.extract_strided_slice %292 {offsets = [0, 64], sizes = [8, 32], strides = [1, 1]} : vector<8x128xf32> to vector<8x32xf32>
    %cst_82 = arith.constant 2.000000e+00 : f32
    %296 = vector.broadcast %cst_82 : f32 to vector<8x32xf32>
    %297 = arith.mulf %296, %295 : vector<8x32xf32>
    %cst_83 = arith.constant 1.000000e+00 : f32
    %298 = vector.broadcast %cst_83 : f32 to vector<8x32xf32>
    %299 = arith.subf %297, %298 : vector<8x32xf32>
    %300 = vector.extract_strided_slice %292 {offsets = [0, 96], sizes = [8, 32], strides = [1, 1]} : vector<8x128xf32> to vector<8x32xf32>
    %301 = arith.mulf %294, %236 : vector<8x32xf32>
    %302 = arith.mulf %293, %299 : vector<8x32xf32>
    %303 = arith.addf %301, %302 : vector<8x32xf32>
    %304 = math.tanh %303 : vector<8x32xf32>
    %305 = arith.mulf %300, %304 : vector<8x32xf32>
    %cst_84 = arith.constant dense<0.000000e+00> : vector<8x128xf32>
    %306 = tpu.matmul %261, %7, %cst_84 {dimension_numbers = #tpu.dot_dimension_numbers<[1], [0], [0], [1], [0, 0, 1, 1], [], []>} : vector<8x32xf32>, vector<32x128xf32>, vector<8x128xf32> -> vector<8x128xf32>
    %cst_85 = arith.constant dense<0.000000e+00> : vector<8x128xf32>
    %307 = tpu.matmul %238, %9, %cst_85 {dimension_numbers = #tpu.dot_dimension_numbers<[1], [0], [0], [1], [0, 0, 1, 1], [], []>} : vector<8x32xf32>, vector<32x128xf32>, vector<8x128xf32> -> vector<8x128xf32>
    %308 = arith.addf %307, %306 : vector<8x128xf32>
    %309 = vector.broadcast %11 : vector<1x128xf32> to vector<8x128xf32>
    %310 = arith.addf %308, %309 : vector<8x128xf32>
    %311 = arith.negf %310 : vector<8x128xf32>
    %312 = math.exp %311 : vector<8x128xf32>
    %cst_86 = arith.constant 1.000000e+00 : f32
    %313 = vector.broadcast %cst_86 : f32 to vector<8x128xf32>
    %314 = arith.addf %313, %312 : vector<8x128xf32>
    %315 = arith.divf %313, %314 : vector<8x128xf32>
    %316 = vector.extract_strided_slice %315 {offsets = [0, 0], sizes = [8, 32], strides = [1, 1]} : vector<8x128xf32> to vector<8x32xf32>
    %317 = vector.extract_strided_slice %315 {offsets = [0, 32], sizes = [8, 32], strides = [1, 1]} : vector<8x128xf32> to vector<8x32xf32>
    %318 = vector.extract_strided_slice %315 {offsets = [0, 64], sizes = [8, 32], strides = [1, 1]} : vector<8x128xf32> to vector<8x32xf32>
    %cst_87 = arith.constant 2.000000e+00 : f32
    %319 = vector.broadcast %cst_87 : f32 to vector<8x32xf32>
    %320 = arith.mulf %319, %318 : vector<8x32xf32>
    %cst_88 = arith.constant 1.000000e+00 : f32
    %321 = vector.broadcast %cst_88 : f32 to vector<8x32xf32>
    %322 = arith.subf %320, %321 : vector<8x32xf32>
    %323 = vector.extract_strided_slice %315 {offsets = [0, 96], sizes = [8, 32], strides = [1, 1]} : vector<8x128xf32> to vector<8x32xf32>
    %324 = arith.mulf %317, %259 : vector<8x32xf32>
    %325 = arith.mulf %316, %322 : vector<8x32xf32>
    %326 = arith.addf %324, %325 : vector<8x32xf32>
    %327 = math.tanh %326 : vector<8x32xf32>
    %328 = arith.mulf %323, %327 : vector<8x32xf32>
    %cst_89 = arith.constant dense<0.000000e+00> : vector<8x128xf32>
    %329 = tpu.matmul %284, %8, %cst_89 {dimension_numbers = #tpu.dot_dimension_numbers<[1], [0], [0], [1], [0, 0, 1, 1], [], []>} : vector<8x32xf32>, vector<32x128xf32>, vector<8x128xf32> -> vector<8x128xf32>
    %cst_90 = arith.constant dense<0.000000e+00> : vector<8x128xf32>
    %330 = tpu.matmul %261, %10, %cst_90 {dimension_numbers = #tpu.dot_dimension_numbers<[1], [0], [0], [1], [0, 0, 1, 1], [], []>} : vector<8x32xf32>, vector<32x128xf32>, vector<8x128xf32> -> vector<8x128xf32>
    %331 = arith.addf %330, %329 : vector<8x128xf32>
    %332 = vector.broadcast %12 : vector<1x128xf32> to vector<8x128xf32>
    %333 = arith.addf %331, %332 : vector<8x128xf32>
    %334 = arith.negf %333 : vector<8x128xf32>
    %335 = math.exp %334 : vector<8x128xf32>
    %cst_91 = arith.constant 1.000000e+00 : f32
    %336 = vector.broadcast %cst_91 : f32 to vector<8x128xf32>
    %337 = arith.addf %336, %335 : vector<8x128xf32>
    %338 = arith.divf %336, %337 : vector<8x128xf32>
    %339 = vector.extract_strided_slice %338 {offsets = [0, 0], sizes = [8, 32], strides = [1, 1]} : vector<8x128xf32> to vector<8x32xf32>
    %340 = vector.extract_strided_slice %338 {offsets = [0, 32], sizes = [8, 32], strides = [1, 1]} : vector<8x128xf32> to vector<8x32xf32>
    %341 = vector.extract_strided_slice %338 {offsets = [0, 64], sizes = [8, 32], strides = [1, 1]} : vector<8x128xf32> to vector<8x32xf32>
    %cst_92 = arith.constant 2.000000e+00 : f32
    %342 = vector.broadcast %cst_92 : f32 to vector<8x32xf32>
    %343 = arith.mulf %342, %341 : vector<8x32xf32>
    %cst_93 = arith.constant 1.000000e+00 : f32
    %344 = vector.broadcast %cst_93 : f32 to vector<8x32xf32>
    %345 = arith.subf %343, %344 : vector<8x32xf32>
    %346 = vector.extract_strided_slice %338 {offsets = [0, 96], sizes = [8, 32], strides = [1, 1]} : vector<8x128xf32> to vector<8x32xf32>
    %347 = arith.mulf %340, %282 : vector<8x32xf32>
    %348 = arith.mulf %339, %345 : vector<8x32xf32>
    %349 = arith.addf %347, %348 : vector<8x32xf32>
    %350 = math.tanh %349 : vector<8x32xf32>
    %351 = arith.mulf %346, %350 : vector<8x32xf32>
    %cst_94 = arith.constant dense<0.000000e+00> : vector<8x128xf32>
    %352 = tpu.matmul %305, %6, %cst_94 {dimension_numbers = #tpu.dot_dimension_numbers<[1], [0], [0], [1], [0, 0, 1, 1], [], []>} : vector<8x32xf32>, vector<32x128xf32>, vector<8x128xf32> -> vector<8x128xf32>
    %353 = vector.extract_strided_slice %5 {offsets = [48, 0], sizes = [8, 128], strides = [1, 1]} : vector<64x128xf32> to vector<8x128xf32>
    %354 = arith.addf %353, %352 : vector<8x128xf32>
    %355 = arith.negf %354 : vector<8x128xf32>
    %356 = math.exp %355 : vector<8x128xf32>
    %cst_95 = arith.constant 1.000000e+00 : f32
    %357 = vector.broadcast %cst_95 : f32 to vector<8x128xf32>
    %358 = arith.addf %357, %356 : vector<8x128xf32>
    %359 = arith.divf %357, %358 : vector<8x128xf32>
    %360 = vector.extract_strided_slice %359 {offsets = [0, 0], sizes = [8, 32], strides = [1, 1]} : vector<8x128xf32> to vector<8x32xf32>
    %361 = vector.extract_strided_slice %359 {offsets = [0, 32], sizes = [8, 32], strides = [1, 1]} : vector<8x128xf32> to vector<8x32xf32>
    %362 = vector.extract_strided_slice %359 {offsets = [0, 64], sizes = [8, 32], strides = [1, 1]} : vector<8x128xf32> to vector<8x32xf32>
    %cst_96 = arith.constant 2.000000e+00 : f32
    %363 = vector.broadcast %cst_96 : f32 to vector<8x32xf32>
    %364 = arith.mulf %363, %362 : vector<8x32xf32>
    %cst_97 = arith.constant 1.000000e+00 : f32
    %365 = vector.broadcast %cst_97 : f32 to vector<8x32xf32>
    %366 = arith.subf %364, %365 : vector<8x32xf32>
    %367 = vector.extract_strided_slice %359 {offsets = [0, 96], sizes = [8, 32], strides = [1, 1]} : vector<8x128xf32> to vector<8x32xf32>
    %368 = arith.mulf %361, %303 : vector<8x32xf32>
    %369 = arith.mulf %360, %366 : vector<8x32xf32>
    %370 = arith.addf %368, %369 : vector<8x32xf32>
    %371 = math.tanh %370 : vector<8x32xf32>
    %372 = arith.mulf %367, %371 : vector<8x32xf32>
    %cst_98 = arith.constant dense<0.000000e+00> : vector<8x128xf32>
    %373 = tpu.matmul %328, %7, %cst_98 {dimension_numbers = #tpu.dot_dimension_numbers<[1], [0], [0], [1], [0, 0, 1, 1], [], []>} : vector<8x32xf32>, vector<32x128xf32>, vector<8x128xf32> -> vector<8x128xf32>
    %cst_99 = arith.constant dense<0.000000e+00> : vector<8x128xf32>
    %374 = tpu.matmul %305, %9, %cst_99 {dimension_numbers = #tpu.dot_dimension_numbers<[1], [0], [0], [1], [0, 0, 1, 1], [], []>} : vector<8x32xf32>, vector<32x128xf32>, vector<8x128xf32> -> vector<8x128xf32>
    %375 = arith.addf %374, %373 : vector<8x128xf32>
    %376 = vector.broadcast %11 : vector<1x128xf32> to vector<8x128xf32>
    %377 = arith.addf %375, %376 : vector<8x128xf32>
    %378 = arith.negf %377 : vector<8x128xf32>
    %379 = math.exp %378 : vector<8x128xf32>
    %cst_100 = arith.constant 1.000000e+00 : f32
    %380 = vector.broadcast %cst_100 : f32 to vector<8x128xf32>
    %381 = arith.addf %380, %379 : vector<8x128xf32>
    %382 = arith.divf %380, %381 : vector<8x128xf32>
    %383 = vector.extract_strided_slice %382 {offsets = [0, 0], sizes = [8, 32], strides = [1, 1]} : vector<8x128xf32> to vector<8x32xf32>
    %384 = vector.extract_strided_slice %382 {offsets = [0, 32], sizes = [8, 32], strides = [1, 1]} : vector<8x128xf32> to vector<8x32xf32>
    %385 = vector.extract_strided_slice %382 {offsets = [0, 64], sizes = [8, 32], strides = [1, 1]} : vector<8x128xf32> to vector<8x32xf32>
    %cst_101 = arith.constant 2.000000e+00 : f32
    %386 = vector.broadcast %cst_101 : f32 to vector<8x32xf32>
    %387 = arith.mulf %386, %385 : vector<8x32xf32>
    %cst_102 = arith.constant 1.000000e+00 : f32
    %388 = vector.broadcast %cst_102 : f32 to vector<8x32xf32>
    %389 = arith.subf %387, %388 : vector<8x32xf32>
    %390 = vector.extract_strided_slice %382 {offsets = [0, 96], sizes = [8, 32], strides = [1, 1]} : vector<8x128xf32> to vector<8x32xf32>
    %391 = arith.mulf %384, %326 : vector<8x32xf32>
    %392 = arith.mulf %383, %389 : vector<8x32xf32>
    %393 = arith.addf %391, %392 : vector<8x32xf32>
    %394 = math.tanh %393 : vector<8x32xf32>
    %395 = arith.mulf %390, %394 : vector<8x32xf32>
    %cst_103 = arith.constant dense<0.000000e+00> : vector<8x128xf32>
    %396 = tpu.matmul %351, %8, %cst_103 {dimension_numbers = #tpu.dot_dimension_numbers<[1], [0], [0], [1], [0, 0, 1, 1], [], []>} : vector<8x32xf32>, vector<32x128xf32>, vector<8x128xf32> -> vector<8x128xf32>
    %cst_104 = arith.constant dense<0.000000e+00> : vector<8x128xf32>
    %397 = tpu.matmul %328, %10, %cst_104 {dimension_numbers = #tpu.dot_dimension_numbers<[1], [0], [0], [1], [0, 0, 1, 1], [], []>} : vector<8x32xf32>, vector<32x128xf32>, vector<8x128xf32> -> vector<8x128xf32>
    %398 = arith.addf %397, %396 : vector<8x128xf32>
    %399 = vector.broadcast %12 : vector<1x128xf32> to vector<8x128xf32>
    %400 = arith.addf %398, %399 : vector<8x128xf32>
    %401 = arith.negf %400 : vector<8x128xf32>
    %402 = math.exp %401 : vector<8x128xf32>
    %cst_105 = arith.constant 1.000000e+00 : f32
    %403 = vector.broadcast %cst_105 : f32 to vector<8x128xf32>
    %404 = arith.addf %403, %402 : vector<8x128xf32>
    %405 = arith.divf %403, %404 : vector<8x128xf32>
    %406 = vector.extract_strided_slice %405 {offsets = [0, 0], sizes = [8, 32], strides = [1, 1]} : vector<8x128xf32> to vector<8x32xf32>
    %407 = vector.extract_strided_slice %405 {offsets = [0, 32], sizes = [8, 32], strides = [1, 1]} : vector<8x128xf32> to vector<8x32xf32>
    %408 = vector.extract_strided_slice %405 {offsets = [0, 64], sizes = [8, 32], strides = [1, 1]} : vector<8x128xf32> to vector<8x32xf32>
    %cst_106 = arith.constant 2.000000e+00 : f32
    %409 = vector.broadcast %cst_106 : f32 to vector<8x32xf32>
    %410 = arith.mulf %409, %408 : vector<8x32xf32>
    %cst_107 = arith.constant 1.000000e+00 : f32
    %411 = vector.broadcast %cst_107 : f32 to vector<8x32xf32>
    %412 = arith.subf %410, %411 : vector<8x32xf32>
    %413 = vector.extract_strided_slice %405 {offsets = [0, 96], sizes = [8, 32], strides = [1, 1]} : vector<8x128xf32> to vector<8x32xf32>
    %414 = arith.mulf %407, %349 : vector<8x32xf32>
    %415 = arith.mulf %406, %412 : vector<8x32xf32>
    %416 = arith.addf %414, %415 : vector<8x32xf32>
    %417 = math.tanh %416 : vector<8x32xf32>
    %418 = arith.mulf %413, %417 : vector<8x32xf32>
    %cst_108 = arith.constant dense<0.000000e+00> : vector<8x128xf32>
    %419 = tpu.matmul %372, %6, %cst_108 {dimension_numbers = #tpu.dot_dimension_numbers<[1], [0], [0], [1], [0, 0, 1, 1], [], []>} : vector<8x32xf32>, vector<32x128xf32>, vector<8x128xf32> -> vector<8x128xf32>
    %420 = vector.extract_strided_slice %5 {offsets = [56, 0], sizes = [8, 128], strides = [1, 1]} : vector<64x128xf32> to vector<8x128xf32>
    %421 = arith.addf %420, %419 : vector<8x128xf32>
    %422 = arith.negf %421 : vector<8x128xf32>
    %423 = math.exp %422 : vector<8x128xf32>
    %cst_109 = arith.constant 1.000000e+00 : f32
    %424 = vector.broadcast %cst_109 : f32 to vector<8x128xf32>
    %425 = arith.addf %424, %423 : vector<8x128xf32>
    %426 = arith.divf %424, %425 : vector<8x128xf32>
    %427 = vector.extract_strided_slice %426 {offsets = [0, 0], sizes = [8, 32], strides = [1, 1]} : vector<8x128xf32> to vector<8x32xf32>
    %428 = vector.extract_strided_slice %426 {offsets = [0, 32], sizes = [8, 32], strides = [1, 1]} : vector<8x128xf32> to vector<8x32xf32>
    %429 = vector.extract_strided_slice %426 {offsets = [0, 64], sizes = [8, 32], strides = [1, 1]} : vector<8x128xf32> to vector<8x32xf32>
    %cst_110 = arith.constant 2.000000e+00 : f32
    %430 = vector.broadcast %cst_110 : f32 to vector<8x32xf32>
    %431 = arith.mulf %430, %429 : vector<8x32xf32>
    %cst_111 = arith.constant 1.000000e+00 : f32
    %432 = vector.broadcast %cst_111 : f32 to vector<8x32xf32>
    %433 = arith.subf %431, %432 : vector<8x32xf32>
    %434 = vector.extract_strided_slice %426 {offsets = [0, 96], sizes = [8, 32], strides = [1, 1]} : vector<8x128xf32> to vector<8x32xf32>
    %435 = arith.mulf %428, %370 : vector<8x32xf32>
    %436 = arith.mulf %427, %433 : vector<8x32xf32>
    %437 = arith.addf %435, %436 : vector<8x32xf32>
    %438 = math.tanh %437 : vector<8x32xf32>
    %439 = arith.mulf %434, %438 : vector<8x32xf32>
    %cst_112 = arith.constant dense<0.000000e+00> : vector<8x128xf32>
    %440 = tpu.matmul %395, %7, %cst_112 {dimension_numbers = #tpu.dot_dimension_numbers<[1], [0], [0], [1], [0, 0, 1, 1], [], []>} : vector<8x32xf32>, vector<32x128xf32>, vector<8x128xf32> -> vector<8x128xf32>
    %cst_113 = arith.constant dense<0.000000e+00> : vector<8x128xf32>
    %441 = tpu.matmul %372, %9, %cst_113 {dimension_numbers = #tpu.dot_dimension_numbers<[1], [0], [0], [1], [0, 0, 1, 1], [], []>} : vector<8x32xf32>, vector<32x128xf32>, vector<8x128xf32> -> vector<8x128xf32>
    %442 = arith.addf %441, %440 : vector<8x128xf32>
    %443 = vector.broadcast %11 : vector<1x128xf32> to vector<8x128xf32>
    %444 = arith.addf %442, %443 : vector<8x128xf32>
    %445 = arith.negf %444 : vector<8x128xf32>
    %446 = math.exp %445 : vector<8x128xf32>
    %cst_114 = arith.constant 1.000000e+00 : f32
    %447 = vector.broadcast %cst_114 : f32 to vector<8x128xf32>
    %448 = arith.addf %447, %446 : vector<8x128xf32>
    %449 = arith.divf %447, %448 : vector<8x128xf32>
    %450 = vector.extract_strided_slice %449 {offsets = [0, 0], sizes = [8, 32], strides = [1, 1]} : vector<8x128xf32> to vector<8x32xf32>
    %451 = vector.extract_strided_slice %449 {offsets = [0, 32], sizes = [8, 32], strides = [1, 1]} : vector<8x128xf32> to vector<8x32xf32>
    %452 = vector.extract_strided_slice %449 {offsets = [0, 64], sizes = [8, 32], strides = [1, 1]} : vector<8x128xf32> to vector<8x32xf32>
    %cst_115 = arith.constant 2.000000e+00 : f32
    %453 = vector.broadcast %cst_115 : f32 to vector<8x32xf32>
    %454 = arith.mulf %453, %452 : vector<8x32xf32>
    %cst_116 = arith.constant 1.000000e+00 : f32
    %455 = vector.broadcast %cst_116 : f32 to vector<8x32xf32>
    %456 = arith.subf %454, %455 : vector<8x32xf32>
    %457 = vector.extract_strided_slice %449 {offsets = [0, 96], sizes = [8, 32], strides = [1, 1]} : vector<8x128xf32> to vector<8x32xf32>
    %458 = arith.mulf %451, %393 : vector<8x32xf32>
    %459 = arith.mulf %450, %456 : vector<8x32xf32>
    %460 = arith.addf %458, %459 : vector<8x32xf32>
    %461 = math.tanh %460 : vector<8x32xf32>
    %462 = arith.mulf %457, %461 : vector<8x32xf32>
    %cst_117 = arith.constant dense<0.000000e+00> : vector<8x128xf32>
    %463 = tpu.matmul %418, %8, %cst_117 {dimension_numbers = #tpu.dot_dimension_numbers<[1], [0], [0], [1], [0, 0, 1, 1], [], []>} : vector<8x32xf32>, vector<32x128xf32>, vector<8x128xf32> -> vector<8x128xf32>
    %cst_118 = arith.constant dense<0.000000e+00> : vector<8x128xf32>
    %464 = tpu.matmul %395, %10, %cst_118 {dimension_numbers = #tpu.dot_dimension_numbers<[1], [0], [0], [1], [0, 0, 1, 1], [], []>} : vector<8x32xf32>, vector<32x128xf32>, vector<8x128xf32> -> vector<8x128xf32>
    %465 = arith.addf %464, %463 : vector<8x128xf32>
    %466 = vector.broadcast %12 : vector<1x128xf32> to vector<8x128xf32>
    %467 = arith.addf %465, %466 : vector<8x128xf32>
    %468 = arith.negf %467 : vector<8x128xf32>
    %469 = math.exp %468 : vector<8x128xf32>
    %cst_119 = arith.constant 1.000000e+00 : f32
    %470 = vector.broadcast %cst_119 : f32 to vector<8x128xf32>
    %471 = arith.addf %470, %469 : vector<8x128xf32>
    %472 = arith.divf %470, %471 : vector<8x128xf32>
    %473 = vector.extract_strided_slice %472 {offsets = [0, 0], sizes = [8, 32], strides = [1, 1]} : vector<8x128xf32> to vector<8x32xf32>
    %474 = vector.extract_strided_slice %472 {offsets = [0, 32], sizes = [8, 32], strides = [1, 1]} : vector<8x128xf32> to vector<8x32xf32>
    %475 = vector.extract_strided_slice %472 {offsets = [0, 64], sizes = [8, 32], strides = [1, 1]} : vector<8x128xf32> to vector<8x32xf32>
    %cst_120 = arith.constant 2.000000e+00 : f32
    %476 = vector.broadcast %cst_120 : f32 to vector<8x32xf32>
    %477 = arith.mulf %476, %475 : vector<8x32xf32>
    %cst_121 = arith.constant 1.000000e+00 : f32
    %478 = vector.broadcast %cst_121 : f32 to vector<8x32xf32>
    %479 = arith.subf %477, %478 : vector<8x32xf32>
    %480 = vector.extract_strided_slice %472 {offsets = [0, 96], sizes = [8, 32], strides = [1, 1]} : vector<8x128xf32> to vector<8x32xf32>
    %481 = arith.mulf %474, %416 : vector<8x32xf32>
    %482 = arith.mulf %473, %479 : vector<8x32xf32>
    %483 = arith.addf %481, %482 : vector<8x32xf32>
    %484 = math.tanh %483 : vector<8x32xf32>
    %485 = arith.mulf %480, %484 : vector<8x32xf32>
    %cst_122 = arith.constant dense<0.000000e+00> : vector<8x128xf32>
    %486 = tpu.matmul %462, %7, %cst_122 {dimension_numbers = #tpu.dot_dimension_numbers<[1], [0], [0], [1], [0, 0, 1, 1], [], []>} : vector<8x32xf32>, vector<32x128xf32>, vector<8x128xf32> -> vector<8x128xf32>
    %cst_123 = arith.constant dense<0.000000e+00> : vector<8x128xf32>
    %487 = tpu.matmul %439, %9, %cst_123 {dimension_numbers = #tpu.dot_dimension_numbers<[1], [0], [0], [1], [0, 0, 1, 1], [], []>} : vector<8x32xf32>, vector<32x128xf32>, vector<8x128xf32> -> vector<8x128xf32>
    %488 = arith.addf %487, %486 : vector<8x128xf32>
    %489 = vector.broadcast %11 : vector<1x128xf32> to vector<8x128xf32>
    %490 = arith.addf %488, %489 : vector<8x128xf32>
    %491 = arith.negf %490 : vector<8x128xf32>
    %492 = math.exp %491 : vector<8x128xf32>
    %cst_124 = arith.constant 1.000000e+00 : f32
    %493 = vector.broadcast %cst_124 : f32 to vector<8x128xf32>
    %494 = arith.addf %493, %492 : vector<8x128xf32>
    %495 = arith.divf %493, %494 : vector<8x128xf32>
    %496 = vector.extract_strided_slice %495 {offsets = [0, 0], sizes = [8, 32], strides = [1, 1]} : vector<8x128xf32> to vector<8x32xf32>
    %497 = vector.extract_strided_slice %495 {offsets = [0, 32], sizes = [8, 32], strides = [1, 1]} : vector<8x128xf32> to vector<8x32xf32>
    %498 = vector.extract_strided_slice %495 {offsets = [0, 64], sizes = [8, 32], strides = [1, 1]} : vector<8x128xf32> to vector<8x32xf32>
    %cst_125 = arith.constant 2.000000e+00 : f32
    %499 = vector.broadcast %cst_125 : f32 to vector<8x32xf32>
    %500 = arith.mulf %499, %498 : vector<8x32xf32>
    %cst_126 = arith.constant 1.000000e+00 : f32
    %501 = vector.broadcast %cst_126 : f32 to vector<8x32xf32>
    %502 = arith.subf %500, %501 : vector<8x32xf32>
    %503 = vector.extract_strided_slice %495 {offsets = [0, 96], sizes = [8, 32], strides = [1, 1]} : vector<8x128xf32> to vector<8x32xf32>
    %504 = arith.mulf %497, %460 : vector<8x32xf32>
    %505 = arith.mulf %496, %502 : vector<8x32xf32>
    %506 = arith.addf %504, %505 : vector<8x32xf32>
    %507 = math.tanh %506 : vector<8x32xf32>
    %508 = arith.mulf %503, %507 : vector<8x32xf32>
    %cst_127 = arith.constant dense<0.000000e+00> : vector<8x128xf32>
    %509 = tpu.matmul %485, %8, %cst_127 {dimension_numbers = #tpu.dot_dimension_numbers<[1], [0], [0], [1], [0, 0, 1, 1], [], []>} : vector<8x32xf32>, vector<32x128xf32>, vector<8x128xf32> -> vector<8x128xf32>
    %cst_128 = arith.constant dense<0.000000e+00> : vector<8x128xf32>
    %510 = tpu.matmul %462, %10, %cst_128 {dimension_numbers = #tpu.dot_dimension_numbers<[1], [0], [0], [1], [0, 0, 1, 1], [], []>} : vector<8x32xf32>, vector<32x128xf32>, vector<8x128xf32> -> vector<8x128xf32>
    %511 = arith.addf %510, %509 : vector<8x128xf32>
    %512 = vector.broadcast %12 : vector<1x128xf32> to vector<8x128xf32>
    %513 = arith.addf %511, %512 : vector<8x128xf32>
    %514 = arith.negf %513 : vector<8x128xf32>
    %515 = math.exp %514 : vector<8x128xf32>
    %cst_129 = arith.constant 1.000000e+00 : f32
    %516 = vector.broadcast %cst_129 : f32 to vector<8x128xf32>
    %517 = arith.addf %516, %515 : vector<8x128xf32>
    %518 = arith.divf %516, %517 : vector<8x128xf32>
    %519 = vector.extract_strided_slice %518 {offsets = [0, 0], sizes = [8, 32], strides = [1, 1]} : vector<8x128xf32> to vector<8x32xf32>
    %520 = vector.extract_strided_slice %518 {offsets = [0, 32], sizes = [8, 32], strides = [1, 1]} : vector<8x128xf32> to vector<8x32xf32>
    %521 = vector.extract_strided_slice %518 {offsets = [0, 64], sizes = [8, 32], strides = [1, 1]} : vector<8x128xf32> to vector<8x32xf32>
    %cst_130 = arith.constant 2.000000e+00 : f32
    %522 = vector.broadcast %cst_130 : f32 to vector<8x32xf32>
    %523 = arith.mulf %522, %521 : vector<8x32xf32>
    %cst_131 = arith.constant 1.000000e+00 : f32
    %524 = vector.broadcast %cst_131 : f32 to vector<8x32xf32>
    %525 = arith.subf %523, %524 : vector<8x32xf32>
    %526 = vector.extract_strided_slice %518 {offsets = [0, 96], sizes = [8, 32], strides = [1, 1]} : vector<8x128xf32> to vector<8x32xf32>
    %527 = arith.mulf %520, %483 : vector<8x32xf32>
    %528 = arith.mulf %519, %525 : vector<8x32xf32>
    %529 = arith.addf %527, %528 : vector<8x32xf32>
    %530 = math.tanh %529 : vector<8x32xf32>
    %531 = arith.mulf %526, %530 : vector<8x32xf32>
    %cst_132 = arith.constant dense<0.000000e+00> : vector<8x128xf32>
    %532 = tpu.matmul %531, %8, %cst_132 {dimension_numbers = #tpu.dot_dimension_numbers<[1], [0], [0], [1], [0, 0, 1, 1], [], []>} : vector<8x32xf32>, vector<32x128xf32>, vector<8x128xf32> -> vector<8x128xf32>
    %cst_133 = arith.constant dense<0.000000e+00> : vector<8x128xf32>
    %533 = tpu.matmul %508, %10, %cst_133 {dimension_numbers = #tpu.dot_dimension_numbers<[1], [0], [0], [1], [0, 0, 1, 1], [], []>} : vector<8x32xf32>, vector<32x128xf32>, vector<8x128xf32> -> vector<8x128xf32>
    %534 = arith.addf %533, %532 : vector<8x128xf32>
    %535 = vector.broadcast %12 : vector<1x128xf32> to vector<8x128xf32>
    %536 = arith.addf %534, %535 : vector<8x128xf32>
    %537 = arith.negf %536 : vector<8x128xf32>
    %538 = math.exp %537 : vector<8x128xf32>
    %cst_134 = arith.constant 1.000000e+00 : f32
    %539 = vector.broadcast %cst_134 : f32 to vector<8x128xf32>
    %540 = arith.addf %539, %538 : vector<8x128xf32>
    %541 = arith.divf %539, %540 : vector<8x128xf32>
    %542 = vector.extract_strided_slice %541 {offsets = [0, 0], sizes = [8, 32], strides = [1, 1]} : vector<8x128xf32> to vector<8x32xf32>
    %543 = vector.extract_strided_slice %541 {offsets = [0, 32], sizes = [8, 32], strides = [1, 1]} : vector<8x128xf32> to vector<8x32xf32>
    %544 = vector.extract_strided_slice %541 {offsets = [0, 64], sizes = [8, 32], strides = [1, 1]} : vector<8x128xf32> to vector<8x32xf32>
    %cst_135 = arith.constant 2.000000e+00 : f32
    %545 = vector.broadcast %cst_135 : f32 to vector<8x32xf32>
    %546 = arith.mulf %545, %544 : vector<8x32xf32>
    %cst_136 = arith.constant 1.000000e+00 : f32
    %547 = vector.broadcast %cst_136 : f32 to vector<8x32xf32>
    %548 = arith.subf %546, %547 : vector<8x32xf32>
    %549 = vector.extract_strided_slice %541 {offsets = [0, 96], sizes = [8, 32], strides = [1, 1]} : vector<8x128xf32> to vector<8x32xf32>
    %550 = arith.mulf %543, %529 : vector<8x32xf32>
    %551 = arith.mulf %542, %548 : vector<8x32xf32>
    %552 = arith.addf %550, %551 : vector<8x32xf32>
    %553 = math.tanh %552 : vector<8x32xf32>
    %554 = arith.mulf %549, %553 : vector<8x32xf32>
    %555 = tpu.concatenate %150, %217, %284, %351, %418, %485, %531, %554 in 0 : vector<8x32xf32>, vector<8x32xf32>, vector<8x32xf32>, vector<8x32xf32>, vector<8x32xf32>, vector<8x32xf32>, vector<8x32xf32>, vector<8x32xf32> -> vector<64x32xf32>
    %c0_137 = arith.constant 0 : index
    %c0_138 = arith.constant 0 : index
    %556 = vector.load %arg11[%c0_137, %c0_138] : memref<32x128xf32, #tpu.memory_space<vmem>>, vector<32x128xf32>
    %cst_139 = arith.constant dense<0.000000e+00> : vector<64x128xf32>
    %557 = tpu.matmul %555, %556, %cst_139 {dimension_numbers = #tpu.dot_dimension_numbers<[1], [0], [0], [1], [0, 0, 1, 1], [], []>} : vector<64x32xf32>, vector<32x128xf32>, vector<64x128xf32> -> vector<64x128xf32>
    %c0_140 = arith.constant 0 : index
    %c0_141 = arith.constant 0 : index
    %558 = vector.load %arg12[%c0_140, %c0_141] : memref<1x128xf32, #tpu.memory_space<vmem>>, vector<1x128xf32>
    %559 = vector.broadcast %558 : vector<1x128xf32> to vector<64x128xf32>
    %560 = arith.addf %557, %559 : vector<64x128xf32>
    %561 = arith.negf %560 : vector<64x128xf32>
    %562 = math.exp %561 : vector<64x128xf32>
    %cst_142 = arith.constant 1.000000e+00 : f32
    %563 = vector.broadcast %cst_142 : f32 to vector<64x128xf32>
    %564 = arith.addf %563, %562 : vector<64x128xf32>
    %565 = arith.divf %563, %564 : vector<64x128xf32>
    %c0_143 = arith.constant 0 : index
    %c0_144 = arith.constant 0 : index
    %566 = vector.load %arg13[%c0_143, %c0_144] : memref<64x128xf32, #tpu.memory_space<vmem>>, vector<64x128xf32>
    tpu.vector_store %arg13[%c0_143, %c0_144], %565 {strides = array<i32>} : memref<64x128xf32, #tpu.memory_space<vmem>>, vector<64x128xf32>,
    return
  }
  func.func @transform_0(%arg0: i32) -> (i32, i32) {
    %c0_i32 = arith.constant 0 : i32
    %c0_i32_0 = arith.constant 0 : i32
    %c0_i32_1 = arith.constant 0 : i32
    return %c0_i32, %c0_i32_0 : i32, i32
  }
  func.func @transform_1(%arg0: i32) -> (i32, i32) {
    %c0_i32 = arith.constant 0 : i32
    %c0_i32_0 = arith.constant 0 : i32
    %c0_i32_1 = arith.constant 0 : i32
    return %c0_i32, %c0_i32_0 : i32, i32
  }
  func.func @transform_2(%arg0: i32) -> (i32, i32) {
    %c0_i32 = arith.constant 0 : i32
    %c0_i32_0 = arith.constant 0 : i32
    %c0_i32_1 = arith.constant 0 : i32
    return %c0_i32, %c0_i32_0 : i32, i32
  }
  func.func @transform_3(%arg0: i32) -> (i32, i32) {
    %c0_i32 = arith.constant 0 : i32
    %c0_i32_0 = arith.constant 0 : i32
    %c0_i32_1 = arith.constant 0 : i32
    return %c0_i32, %c0_i32_0 : i32, i32
  }
  func.func @transform_4(%arg0: i32) -> (i32, i32) {
    %c0_i32 = arith.constant 0 : i32
    %c0_i32_0 = arith.constant 0 : i32
    %c0_i32_1 = arith.constant 0 : i32
    return %c0_i32, %c0_i32_0 : i32, i32
  }
  func.func @transform_5(%arg0: i32) -> (i32, i32) {
    %c0_i32 = arith.constant 0 : i32
    %c0_i32_0 = arith.constant 0 : i32
    %c0_i32_1 = arith.constant 0 : i32
    return %c0_i32, %c0_i32_0 : i32, i32
  }
  func.func @transform_6(%arg0: i32) -> (i32, i32) {
    %c0_i32 = arith.constant 0 : i32
    %c0_i32_0 = arith.constant 0 : i32
    %c0_i32_1 = arith.constant 0 : i32
    return %c0_i32, %c0_i32_0 : i32, i32
  }
  func.func @transform_7(%arg0: i32) -> (i32, i32) {
    %c0_i32 = arith.constant 0 : i32
    %c0_i32_0 = arith.constant 0 : i32
    %c0_i32_1 = arith.constant 0 : i32
    return %c0_i32, %c0_i32_0 : i32, i32
  }
  func.func @transform_8(%arg0: i32) -> (i32, i32) {
    %c0_i32 = arith.constant 0 : i32
    %c0_i32_0 = arith.constant 0 : i32
    %c0_i32_1 = arith.constant 0 : i32
    return %c0_i32, %c0_i32_0 : i32, i32
  }
  func.func @transform_9(%arg0: i32) -> (i32, i32) {
    %c0_i32 = arith.constant 0 : i32
    %c0_i32_0 = arith.constant 0 : i32
    %c0_i32_1 = arith.constant 0 : i32
    return %c0_i32, %c0_i32_0 : i32, i32
  }
  func.func @transform_10(%arg0: i32) -> (i32, i32) {
    %c0_i32 = arith.constant 0 : i32
    %c0_i32_0 = arith.constant 0 : i32
    %c0_i32_1 = arith.constant 0 : i32
    return %c0_i32, %c0_i32_0 : i32, i32
  }
  func.func @transform_11(%arg0: i32) -> (i32, i32) {
    %c0_i32 = arith.constant 0 : i32
    %c0_i32_0 = arith.constant 0 : i32
    %c0_i32_1 = arith.constant 0 : i32
    return %c0_i32, %c0_i32_0 : i32, i32
  }
  func.func @transform_12(%arg0: i32) -> (i32, i32) {
    %c0_i32 = arith.constant 0 : i32
    %c0_i32_0 = arith.constant 0 : i32
    %c0_i32_1 = arith.constant 0 : i32
    return %c0_i32, %c0_i32_0 : i32, i32
  }
}

</mosaic_0001>

<llo_original>
// kernel: forward_self_attention_lstm.1
$region0: #{forward_self_attention_lstm.1}
  #allocation0 [shape = 'u32[]', space=smem, size = 0x4, offset = 0x4, fixed_abs, tag = 'smem constant byte address 0x4 - core index']
  #allocation1 [shape = 'u32[144,128]{1,0:T(1,128)}', space=vmem, size = 0x12000, scoped, tag = 'internal scratch']
  %s0 = inlined_call_operand.vmem [shape: f32[64,16], index: 0, kind: input, shape index: {}]
  %s1 = inlined_call_operand.vmem [shape: f32[16,128], index: 1, kind: input, shape index: {}]
  %s2 = inlined_call_operand.vmem [shape: f32[32,128], index: 2, kind: input, shape index: {}]
  %s3 = inlined_call_operand.vmem [shape: f32[1,128], index: 3, kind: input, shape index: {}]
  %s4 = inlined_call_operand.vmem [shape: f32[32,128], index: 4, kind: input, shape index: {}]
  %s5 = inlined_call_operand.vmem [shape: f32[32,128], index: 5, kind: input, shape index: {}]
  %s6 = inlined_call_operand.vmem [shape: f32[1,128], index: 6, kind: input, shape index: {}]
  %s7 = inlined_call_operand.vmem [shape: f32[32,128], index: 7, kind: input, shape index: {}]
  %s8 = inlined_call_operand.vmem [shape: f32[32,128], index: 8, kind: input, shape index: {}]
  %s9 = inlined_call_operand.vmem [shape: f32[1,128], index: 9, kind: input, shape index: {}]
  %s10 = inlined_call_operand.vmem [shape: f32[32,128], index: 10, kind: input, shape index: {}]
  %s11 = inlined_call_operand.hbm [shape: f32[1,128], index: 11, kind: input, shape index: {}]
  %s12 = inlined_call_operand.vmem [shape: f32[64,128], index: 12, kind: output, shape index: {}]
  %s13 = sld [smem:[#allocation0]]
  $region62: #{forward_self_attention_lstm.1} parent=0
    _
  %s15 = ssub.s32 1, %s13
  %s16 = scalar_select 0, %s15, %s13
  $region1: #{forward_self_attention_lstm.1} parent=0
    #allocation2 [shape = 'u8[512]{0}', space=vmem, size = 0x400, scoped, tag = 'input window, operand 11, single buffered']
    #allocation3 [shape = 's32[1]{0}', space=sflag, size = 0x4, scoped, tag = 'scoped memory for forward_self_attention_lstm.1']
    %17 = vsyncpa [#allocation3], 0
    // Predicated region
    $region2: #{forward_self_attention_lstm.1} parent=1 // pred_check
      _
    $region3: #{forward_self_attention_lstm.1} parent=1 // pred_check_branch
      %19 = sbr.rel (0) target = $region5
    $region4: #{forward_self_attention_lstm.1} parent=1 // pred_region
      _
    $region5: #{forward_self_attention_lstm.1} parent=1 // pred_fallthru
      _
    // Predicated region
    $region6: #{forward_self_attention_lstm.1} parent=1 // pred_check
      _
    $region7: #{forward_self_attention_lstm.1} parent=1 // pred_check_branch
      %21 = sbr.rel (0) target = $region9
    $region8: #{forward_self_attention_lstm.1} parent=1 // pred_region
      _
    $region9: #{forward_self_attention_lstm.1} parent=1 // pred_fallthru
      _
    // Predicated region
    $region10: #{forward_self_attention_lstm.1} parent=1 // pred_check
      _
    $region11: #{forward_self_attention_lstm.1} parent=1 // pred_check_branch
      %23 = sbr.rel (0) target = $region13
    $region12: #{forward_self_attention_lstm.1} parent=1 // pred_region
      _
    $region13: #{forward_self_attention_lstm.1} parent=1 // pred_fallthru
      _
    // Predicated region
    $region14: #{forward_self_attention_lstm.1} parent=1 // pred_check
      _
    $region15: #{forward_self_attention_lstm.1} parent=1 // pred_check_branch
      %25 = sbr.rel (0) target = $region17
    $region16: #{forward_self_attention_lstm.1} parent=1 // pred_region
      _
    $region17: #{forward_self_attention_lstm.1} parent=1 // pred_fallthru
      _
    // Predicated region
    $region18: #{forward_self_attention_lstm.1} parent=1 // pred_check
      _
    $region19: #{forward_self_attention_lstm.1} parent=1 // pred_check_branch
      %27 = sbr.rel (0) target = $region21
    $region20: #{forward_self_attention_lstm.1} parent=1 // pred_region
      _
    $region21: #{forward_self_attention_lstm.1} parent=1 // pred_fallthru
      _
    // Predicated region
    $region22: #{forward_self_attention_lstm.1} parent=1 // pred_check
      _
    $region23: #{forward_self_attention_lstm.1} parent=1 // pred_check_branch
      %29 = sbr.rel (0) target = $region25
    $region24: #{forward_self_attention_lstm.1} parent=1 // pred_region
      _
    $region25: #{forward_self_attention_lstm.1} parent=1 // pred_fallthru
      _
    // Predicated region
    $region26: #{forward_self_attention_lstm.1} parent=1 // pred_check
      _
    $region27: #{forward_self_attention_lstm.1} parent=1 // pred_check_branch
      %31 = sbr.rel (0) target = $region29
    $region28: #{forward_self_attention_lstm.1} parent=1 // pred_region
      _
    $region29: #{forward_self_attention_lstm.1} parent=1 // pred_fallthru
      _
    // Predicated region
    $region30: #{forward_self_attention_lstm.1} parent=1 // pred_check
      _
    $region31: #{forward_self_attention_lstm.1} parent=1 // pred_check_branch
      %33 = sbr.rel (0) target = $region33
    $region32: #{forward_self_attention_lstm.1} parent=1 // pred_region
      _
    $region33: #{forward_self_attention_lstm.1} parent=1 // pred_fallthru
      _
    // Predicated region
    $region34: #{forward_self_attention_lstm.1} parent=1 // pred_check
      _
    $region35: #{forward_self_attention_lstm.1} parent=1 // pred_check_branch
      %35 = sbr.rel (0) target = $region37
    $region36: #{forward_self_attention_lstm.1} parent=1 // pred_region
      _
    $region37: #{forward_self_attention_lstm.1} parent=1 // pred_fallthru
      _
    // Predicated region
    $region38: #{forward_self_attention_lstm.1} parent=1 // pred_check
      _
    $region39: #{forward_self_attention_lstm.1} parent=1 // pred_check_branch
      %37 = sbr.rel (0) target = $region41
    $region40: #{forward_self_attention_lstm.1} parent=1 // pred_region
      _
    $region41: #{forward_self_attention_lstm.1} parent=1 // pred_fallthru
      _
    // Predicated region
    $region42: #{forward_self_attention_lstm.1} parent=1 // pred_check
      _
    $region43: #{forward_self_attention_lstm.1} parent=1 // pred_check_branch
      %39 = sbr.rel (0) target = $region45
    $region44: #{forward_self_attention_lstm.1} parent=1 // pred_region
      _
    $region45: #{forward_self_attention_lstm.1} parent=1 // pred_fallthru
      _
    // Predicated region
    $region46: #{forward_self_attention_lstm.1} parent=1 // pred_check
      _
    $region47: #{forward_self_attention_lstm.1} parent=1 // pred_check_branch
      %41 = sbr.rel (0) target = $region49
    $region48: #{forward_self_attention_lstm.1} parent=1 // pred_region
      %s43 = ssub.s32 16, 16
      %44 = vsyncadd [#allocation3], %s43
      %s46 = sshll.u32 [#allocation2], 4
      %s47 = int_to_ptr.vmem [resolvable:$true] %s46
      %49 = dma.hbm_to_vmem [thread:$0]  %s11, 16, %s47, [#allocation3]
    $region49: #{forward_self_attention_lstm.1} parent=1 // pred_fallthru
      _
    // Predicated region
    $region50: #{forward_self_attention_lstm.1} parent=1 // pred_check
      _
    $region51: #{forward_self_attention_lstm.1} parent=1 // pred_check_branch
      %51 = sbr.rel (0) target = $region53
    $region52: #{forward_self_attention_lstm.1} parent=1 // pred_region
      %52 = dma.done [#allocation3], 16
    $region53: #{forward_self_attention_lstm.1} parent=1 // pred_fallthru
      _
    %v53 = vld [vmem:[%s0] sm:$0xff]
    %v54 = vld [vmem:[%s0 + $0x8] sm:$0xff]
    %v55 = vld [vmem:[%s0 + $0x10] sm:$0xff]
    %v56 = vld [vmem:[%s0 + $0x18] sm:$0xff]
    %v57 = vld [vmem:[%s0 + $0x20] sm:$0xff]
    %v58 = vld [vmem:[%s0 + $0x28] sm:$0xff]
    %v59 = vld [vmem:[%s0 + $0x30] sm:$0xff]
    %v60 = vld [vmem:[%s0 + $0x38] sm:$0xff]
    %v61 = vld [vmem:[%s1] sm:$0xff]
    %v62 = vld [vmem:[%s1 + $0x8] sm:$0xff]
    %v63 = vld [vmem:[%s3] sm:$0x1]
    %v65 = vlaneseq
    %v66 = vshrl.u32 %v65, 7
    %v67 = vsub.s32 0, %v66
    %v68 = vrot.slane %v63, %v67
    %vm70 = vcmask 130048
    %v72 = vsel %vm70, %v53, 0
    %v75 = vsel %vm70, %v54, 0
    %v78 = vsel %vm70, %v55, 0
    %v81 = vsel %vm70, %v56, 0
    %v84 = vsel %vm70, %v57, 0
    %v87 = vsel %vm70, %v58, 0
    %v90 = vsel %vm70, %v59, 0
    %v93 = vsel %vm70, %v60, 0
    %95 = vmatprep.subr.mxu0 0.0
    %96 = vmatpush1.msra.mxu0 0.0
    %97 = vmatprep.subr.mxu0 0.0
    %98 = vmatpush1.msra.mxu0 0.0
    %99 = vmatprep.subr.mxu0 0.0
    %100 = vmatpush1.msra.mxu0 0.0
    %101 = vmatprep.subr.mxu0 0.0
    %102 = vmatpush1.msra.mxu0 0.0
    %103 = vmatprep.subr.mxu0 0.0
    %104 = vmatpush1.msra.mxu0 0.0
    %105 = vmatprep.subr.mxu0 0.0
    %106 = vmatpush1.msra.mxu0 0.0
    %107 = vmatprep.subr.mxu0 0.0
    %108 = vmatpush1.msra.mxu0 0.0
    %109 = vmatprep.subr.mxu0 0.0
    %110 = vmatpush1.msra.mxu0 0.0
    %111 = vmatprep.subr.mxu0 0.0
    %112 = vmatpush1.msra.mxu0 0.0
    %113 = vmatprep.subr.mxu0 0.0
    %114 = vmatpush1.msra.mxu0 0.0
    %115 = vmatprep.subr.mxu0 0.0
    %116 = vmatpush1.msra.mxu0 0.0
    %117 = vmatprep.subr.mxu0 0.0
    %118 = vmatpush1.msra.mxu0 0.0
    %119 = vmatprep.subr.mxu0 0.0
    %120 = vmatpush1.msra.mxu0 0.0
    %121 = vmatprep.subr.mxu0 0.0
    %122 = vmatpush1.msra.mxu0 0.0
    %123 = vmatprep.subr.mxu0 0.0
    %124 = vmatpush1.msra.mxu0 %v62
    %125 = vmatprep.subr.mxu0 0.0
    %126 = vmatpush1.msra.mxu0 %v61
    %127 = vmatprep.subr.mxu0 0.0
    %128 = vmatpush2.msra.mxu0 0.0
    %129 = vmatprep.subr.mxu0 0.0
    %130 = vmatpush2.msra.mxu0 0.0
    %131 = vmatprep.subr.mxu0 0.0
    %132 = vmatpush2.msra.mxu0 0.0
    %133 = vmatprep.subr.mxu0 0.0
    %134 = vmatpush2.msra.mxu0 0.0
    %135 = vmatprep.subr.mxu0 0.0
    %136 = vmatpush2.msra.mxu0 0.0
    %137 = vmatprep.subr.mxu0 0.0
    %138 = vmatpush2.msra.mxu0 0.0
    %139 = vmatprep.subr.mxu0 0.0
    %140 = vmatpush2.msra.mxu0 0.0
    %141 = vmatprep.subr.mxu0 0.0
    %142 = vmatpush2.msra.mxu0 0.0
    %143 = vmatprep.subr.mxu0 0.0
    %144 = vmatpush2.msra.mxu0 0.0
    %145 = vmatprep.subr.mxu0 0.0
    %146 = vmatpush2.msra.mxu0 0.0
    %147 = vmatprep.subr.mxu0 0.0
    %148 = vmatpush2.msra.mxu0 0.0
    %149 = vmatprep.subr.mxu0 0.0
    %150 = vmatpush2.msra.mxu0 0.0
    %151 = vmatprep.subr.mxu0 0.0
    %152 = vmatpush2.msra.mxu0 0.0
    %153 = vmatprep.subr.mxu0 0.0
    %154 = vmatpush2.msra.mxu0 0.0
    %155 = vmatprep.subr.mxu0 0.0
    %156 = vmatpush2.msra.mxu0 0.0
    %157 = vmatprep.subr.mxu0 0.0
    %158 = vmatpush2.msra.mxu0 0.0
    %159 = vmatprep.mubr.f32.mxu0 0.0
    %160 = vmatmul.mubr.f32.gmra.mxu0 %v72
    %v161 = vpop.f32.mrf.mxu0
    %v162 = vadd.f32 %v68, %v161
    %v163 = vpop.f32.mrf.mxu0
    %164 = vmatprep.mubr.f32.mxu0 0.0
    %165 = vmatmul.mubr.f32.gmra.mxu0 %v75
    %v166 = vpop.f32.mrf.mxu0
    %v167 = vadd.f32 %v68, %v166
    %v168 = vpop.f32.mrf.mxu0
    %169 = vmatprep.mubr.f32.mxu0 0.0
    %170 = vmatmul.mubr.f32.gmra.mxu0 %v78
    %v171 = vpop.f32.mrf.mxu0
    %v172 = vadd.f32 %v68, %v171
    %v173 = vpop.f32.mrf.mxu0
    %174 = vmatprep.mubr.f32.mxu0 0.0
    %175 = vmatmul.mubr.f32.gmra.mxu0 %v81
    %v176 = vpop.f32.mrf.mxu0
    %v177 = vadd.f32 %v68, %v176
    %v178 = vpop.f32.mrf.mxu0
    %179 = vmatprep.mubr.f32.mxu0 0.0
    %180 = vmatmul.mubr.f32.gmra.mxu0 %v84
    %v181 = vpop.f32.mrf.mxu0
    %v182 = vadd.f32 %v68, %v181
    %v183 = vpop.f32.mrf.mxu0
    %184 = vmatprep.mubr.f32.mxu0 0.0
    %185 = vmatmul.mubr.f32.gmra.mxu0 %v87
    %v186 = vpop.f32.mrf.mxu0
    %v187 = vadd.f32 %v68, %v186
    %v188 = vpop.f32.mrf.mxu0
    %189 = vmatprep.mubr.f32.mxu0 0.0
    %190 = vmatmul.mubr.f32.gmra.mxu0 %v90
    %v191 = vpop.f32.mrf.mxu0
    %v192 = vadd.f32 %v68, %v191
    %v193 = vpop.f32.mrf.mxu0
    %194 = vmatprep.mubr.f32.mxu0 0.0
    %195 = vmatmul.mubr.f32.gmra.mxu0 %v93
    %v196 = vpop.f32.mrf.mxu0
    %v197 = vadd.f32 %v68, %v196
    %v198 = vpop.f32.mrf.mxu0
    %199 = vdwg.mxu0
    %v200 = vld [vmem:[%s2] sm:$0xff]
    %v201 = vld [vmem:[%s2 + $0x8] sm:$0xff]
    %v202 = vld [vmem:[%s2 + $0x10] sm:$0xff]
    %v203 = vld [vmem:[%s2 + $0x18] sm:$0xff]
    %v204 = vld [vmem:[%s5] sm:$0xff]
    %v205 = vld [vmem:[%s5 + $0x8] sm:$0xff]
    %v206 = vld [vmem:[%s5 + $0x10] sm:$0xff]
    %v207 = vld [vmem:[%s5 + $0x18] sm:$0xff]
    %v208 = vld [vmem:[%s8] sm:$0xff]
    %v209 = vld [vmem:[%s8 + $0x8] sm:$0xff]
    %v210 = vld [vmem:[%s8 + $0x10] sm:$0xff]
    %v211 = vld [vmem:[%s8 + $0x18] sm:$0xff]
    %v212 = vld [vmem:[%s4] sm:$0xff]
    %v213 = vld [vmem:[%s4 + $0x8] sm:$0xff]
    %v214 = vld [vmem:[%s4 + $0x10] sm:$0xff]
    %v215 = vld [vmem:[%s4 + $0x18] sm:$0xff]
    %v216 = vld [vmem:[%s7] sm:$0xff]
    %v217 = vld [vmem:[%s7 + $0x8] sm:$0xff]
    %v218 = vld [vmem:[%s7 + $0x10] sm:$0xff]
    %v219 = vld [vmem:[%s7 + $0x18] sm:$0xff]
    %v220 = vld [vmem:[%s6] sm:$0x1]
    %v221 = vld [vmem:[%s9] sm:$0x1]
    %vm222 = vcmask 261120
    %v224 = vsel %vm222, 0.0, 0
    %226 = vmatprep.subr.mxu0 0.0
    %227 = vmatpush1.msra.mxu0 0.0
    %228 = vmatprep.subr.mxu0 0.0
    %229 = vmatpush1.msra.mxu0 0.0
    %230 = vmatprep.subr.mxu0 0.0
    %231 = vmatpush1.msra.mxu0 0.0
    %232 = vmatprep.subr.mxu0 0.0
    %233 = vmatpush1.msra.mxu0 0.0
    %234 = vmatprep.subr.mxu0 0.0
    %235 = vmatpush1.msra.mxu0 0.0
    %236 = vmatprep.subr.mxu0 0.0
    %237 = vmatpush1.msra.mxu0 0.0
    %238 = vmatprep.subr.mxu0 0.0
    %239 = vmatpush1.msra.mxu0 0.0
    %240 = vmatprep.subr.mxu0 0.0
    %241 = vmatpush1.msra.mxu0 0.0
    %242 = vmatprep.subr.mxu0 0.0
    %243 = vmatpush1.msra.mxu0 0.0
    %244 = vmatprep.subr.mxu0 0.0
    %245 = vmatpush1.msra.mxu0 0.0
    %246 = vmatprep.subr.mxu0 0.0
    %247 = vmatpush1.msra.mxu0 0.0
    %248 = vmatprep.subr.mxu0 0.0
    %249 = vmatpush1.msra.mxu0 0.0
    %250 = vmatprep.subr.mxu0 0.0
    %251 = vmatpush1.msra.mxu0 %v203
    %252 = vmatprep.subr.mxu0 0.0
    %253 = vmatpush1.msra.mxu0 %v202
    %254 = vmatprep.subr.mxu0 0.0
    %255 = vmatpush1.msra.mxu0 %v201
    %256 = vmatprep.subr.mxu0 0.0
    %257 = vmatpush1.msra.mxu0 %v200
    %258 = vmatprep.subr.mxu0 0.0
    %259 = vmatpush2.msra.mxu0 0.0
    %260 = vmatprep.subr.mxu0 0.0
    %261 = vmatpush2.msra.mxu0 0.0
    %262 = vmatprep.subr.mxu0 0.0
    %263 = vmatpush2.msra.mxu0 0.0
    %264 = vmatprep.subr.mxu0 0.0
    %265 = vmatpush2.msra.mxu0 0.0
    %266 = vmatprep.subr.mxu0 0.0
    %267 = vmatpush2.msra.mxu0 0.0
    %268 = vmatprep.subr.mxu0 0.0
    %269 = vmatpush2.msra.mxu0 0.0
    %270 = vmatprep.subr.mxu0 0.0
    %271 = vmatpush2.msra.mxu0 0.0
    %272 = vmatprep.subr.mxu0 0.0
    %273 = vmatpush2.msra.mxu0 0.0
    %274 = vmatprep.subr.mxu0 0.0
    %275 = vmatpush2.msra.mxu0 0.0
    %276 = vmatprep.subr.mxu0 0.0
    %277 = vmatpush2.msra.mxu0 0.0
    %278 = vmatprep.subr.mxu0 0.0
    %279 = vmatpush2.msra.mxu0 0.0
    %280 = vmatprep.subr.mxu0 0.0
    %281 = vmatpush2.msra.mxu0 0.0
    %282 = vmatprep.subr.mxu0 0.0
    %283 = vmatpush2.msra.mxu0 0.0
    %284 = vmatprep.subr.mxu0 0.0
    %285 = vmatpush2.msra.mxu0 0.0
    %286 = vmatprep.subr.mxu0 0.0
    %287 = vmatpush2.msra.mxu0 0.0
    %288 = vmatprep.subr.mxu0 0.0
    %289 = vmatpush2.msra.mxu0 0.0
    %290 = vmatprep.mubr.f32.mxu0 0.0
    %291 = vmatmul.mubr.f32.gmra.mxu0 %v224
    %v292 = vpop.f32.mrf.mxu0
    %v293 = vadd.f32 0.0, %v292
    %v294 = vpop.f32.mrf.mxu0
    %295 = vdwg.mxu0
    %v296 = vadd.f32 %v162, %v293
    %v297 = vxor.u32 %v296, 2147483648
    %v298 = vmul.f32 %v297, 1.442695
    %v299 = vpow.pop %v298
    %v300 = vadd.f32 %v299, 1.0
    %v301 = vrcp.pop %v300
    %v302 = vmul.f32 1.0, %v301
    %v303 = vmul.f32 %v302, 2.0
    %v304 = vsub.f32 %v303, 1.0
    %v305 = vmul.f32 %v302, 0.0
    %307 = vrot.lane.b32.xlu0 %v304, 64
    %v308 = vpop.permute.xlu0 %307
    %v310 = vmul.f32 %v302, %v308
    %312 = vrot.lane.b32.xlu0 %v310, 32
    %v313 = vpop.permute.xlu0 %312
    %v315 = vadd.f32 %v305, %v313
    %v316 = vtanh.pop %v315
    %318 = vrot.lane.b32.xlu0 %v316, 64
    %v319 = vpop.permute.xlu0 %318
    %v321 = vmul.f32 %v302, %v319
    %323 = vrot.lane.b32.xlu0 %v321, 32
    %v324 = vpop.permute.xlu0 %323
    %v325 = vsel %vm222, %v324, 0
    %327 = vmatprep.subr.mxu0 0.0
    %328 = vmatpush1.msra.mxu0 0.0
    %329 = vmatprep.subr.mxu0 0.0
    %330 = vmatpush1.msra.mxu0 0.0
    %331 = vmatprep.subr.mxu0 0.0
    %332 = vmatpush1.msra.mxu0 0.0
    %333 = vmatprep.subr.mxu0 0.0
    %334 = vmatpush1.msra.mxu0 0.0
    %335 = vmatprep.subr.mxu0 0.0
    %336 = vmatpush1.msra.mxu0 0.0
    %337 = vmatprep.subr.mxu0 0.0
    %338 = vmatpush1.msra.mxu0 0.0
    %339 = vmatprep.subr.mxu0 0.0
    %340 = vmatpush1.msra.mxu0 0.0
    %341 = vmatprep.subr.mxu0 0.0
    %342 = vmatpush1.msra.mxu0 0.0
    %343 = vmatprep.subr.mxu0 0.0
    %344 = vmatpush1.msra.mxu0 0.0
    %345 = vmatprep.subr.mxu0 0.0
    %346 = vmatpush1.msra.mxu0 0.0
    %347 = vmatprep.subr.mxu0 0.0
    %348 = vmatpush1.msra.mxu0 0.0
    %349 = vmatprep.subr.mxu0 0.0
    %350 = vmatpush1.msra.mxu0 0.0
    %351 = vmatprep.subr.mxu0 0.0
    %352 = vmatpush1.msra.mxu0 %v203
    %353 = vmatprep.subr.mxu0 0.0
    %354 = vmatpush1.msra.mxu0 %v202
    %355 = vmatprep.subr.mxu0 0.0
    %356 = vmatpush1.msra.mxu0 %v201
    %357 = vmatprep.subr.mxu0 0.0
    %358 = vmatpush1.msra.mxu0 %v200
    %359 = vmatprep.subr.mxu0 0.0
    %360 = vmatpush2.msra.mxu0 0.0
    %361 = vmatprep.subr.mxu0 0.0
    %362 = vmatpush2.msra.mxu0 0.0
    %363 = vmatprep.subr.mxu0 0.0
    %364 = vmatpush2.msra.mxu0 0.0
    %365 = vmatprep.subr.mxu0 0.0
    %366 = vmatpush2.msra.mxu0 0.0
    %367 = vmatprep.subr.mxu0 0.0
    %368 = vmatpush2.msra.mxu0 0.0
    %369 = vmatprep.subr.mxu0 0.0
    %370 = vmatpush2.msra.mxu0 0.0
    %371 = vmatprep.subr.mxu0 0.0
    %372 = vmatpush2.msra.mxu0 0.0
    %373 = vmatprep.subr.mxu0 0.0
    %374 = vmatpush2.msra.mxu0 0.0
    %375 = vmatprep.subr.mxu0 0.0
    %376 = vmatpush2.msra.mxu0 0.0
    %377 = vmatprep.subr.mxu0 0.0
    %378 = vmatpush2.msra.mxu0 0.0
    %379 = vmatprep.subr.mxu0 0.0
    %380 = vmatpush2.msra.mxu0 0.0
    %381 = vmatprep.subr.mxu0 0.0
    %382 = vmatpush2.msra.mxu0 0.0
    %383 = vmatprep.subr.mxu0 0.0
    %384 = vmatpush2.msra.mxu0 0.0
    %385 = vmatprep.subr.mxu0 0.0
    %386 = vmatpush2.msra.mxu0 0.0
    %387 = vmatprep.subr.mxu0 0.0
    %388 = vmatpush2.msra.mxu0 0.0
    %389 = vmatprep.subr.mxu0 0.0
    %390 = vmatpush2.msra.mxu0 0.0
    %391 = vmatprep.mubr.f32.mxu0 0.0
    %392 = vmatmul.mubr.f32.gmra.mxu0 %v325
    %v393 = vpop.f32.mrf.mxu0
    %v394 = vadd.f32 0.0, %v393
    %v395 = vpop.f32.mrf.mxu0
    %396 = vdwg.mxu0
    %v397 = vadd.f32 %v167, %v394
    %v398 = vxor.u32 %v397, 2147483648
    %v399 = vmul.f32 %v398, 1.442695
    %v400 = vpow.pop %v399
    %v401 = vadd.f32 %v400, 1.0
    %v402 = vrcp.pop %v401
    %v403 = vmul.f32 1.0, %v402
    %v404 = vmul.f32 %v403, 2.0
    %v405 = vsub.f32 %v404, 1.0
    %v406 = vmul.f32 %v403, %v315
    %408 = vrot.lane.b32.xlu0 %v405, 64
    %v409 = vpop.permute.xlu0 %408
    %v411 = vmul.f32 %v403, %v409
    %413 = vrot.lane.b32.xlu0 %v411, 32
    %v414 = vpop.permute.xlu0 %413
    %v416 = vadd.f32 %v406, %v414
    %v417 = vtanh.pop %v416
    %419 = vrot.lane.b32.xlu0 %v417, 64
    %v420 = vpop.permute.xlu0 %419
    %v422 = vmul.f32 %v403, %v420
    %423 = vmatprep.subr.mxu0 0.0
    %424 = vmatpush1.msra.mxu0 0.0
    %425 = vmatprep.subr.mxu0 0.0
    %426 = vmatpush1.msra.mxu0 0.0
    %427 = vmatprep.subr.mxu0 0.0
    %428 = vmatpush1.msra.mxu0 0.0
    %429 = vmatprep.subr.mxu0 0.0
    %430 = vmatpush1.msra.mxu0 0.0
    %431 = vmatprep.subr.mxu0 0.0
    %432 = vmatpush1.msra.mxu0 0.0
    %433 = vmatprep.subr.mxu0 0.0
    %434 = vmatpush1.msra.mxu0 0.0
    %435 = vmatprep.subr.mxu0 0.0
    %436 = vmatpush1.msra.mxu0 0.0
    %437 = vmatprep.subr.mxu0 0.0
    %438 = vmatpush1.msra.mxu0 0.0
    %439 = vmatprep.subr.mxu0 0.0
    %440 = vmatpush1.msra.mxu0 0.0
    %441 = vmatprep.subr.mxu0 0.0
    %442 = vmatpush1.msra.mxu0 0.0
    %443 = vmatprep.subr.mxu0 0.0
    %444 = vmatpush1.msra.mxu0 0.0
    %445 = vmatprep.subr.mxu0 0.0
    %446 = vmatpush1.msra.mxu0 0.0
    %447 = vmatprep.subr.mxu0 0.0
    %448 = vmatpush1.msra.mxu0 %v207
    %449 = vmatprep.subr.mxu0 0.0
    %450 = vmatpush1.msra.mxu0 %v206
    %451 = vmatprep.subr.mxu0 0.0
    %452 = vmatpush1.msra.mxu0 %v205
    %453 = vmatprep.subr.mxu0 0.0
    %454 = vmatpush1.msra.mxu0 %v204
    %455 = vmatprep.subr.mxu0 0.0
    %456 = vmatpush2.msra.mxu0 0.0
    %457 = vmatprep.subr.mxu0 0.0
    %458 = vmatpush2.msra.mxu0 0.0
    %459 = vmatprep.subr.mxu0 0.0
    %460 = vmatpush2.msra.mxu0 0.0
    %461 = vmatprep.subr.mxu0 0.0
    %462 = vmatpush2.msra.mxu0 0.0
    %463 = vmatprep.subr.mxu0 0.0
    %464 = vmatpush2.msra.mxu0 0.0
    %465 = vmatprep.subr.mxu0 0.0
    %466 = vmatpush2.msra.mxu0 0.0
    %467 = vmatprep.subr.mxu0 0.0
    %468 = vmatpush2.msra.mxu0 0.0
    %469 = vmatprep.subr.mxu0 0.0
    %470 = vmatpush2.msra.mxu0 0.0
    %471 = vmatprep.subr.mxu0 0.0
    %472 = vmatpush2.msra.mxu0 0.0
    %473 = vmatprep.subr.mxu0 0.0
    %474 = vmatpush2.msra.mxu0 0.0
    %475 = vmatprep.subr.mxu0 0.0
    %476 = vmatpush2.msra.mxu0 0.0
    %477 = vmatprep.subr.mxu0 0.0
    %478 = vmatpush2.msra.mxu0 0.0
    %479 = vmatprep.subr.mxu0 0.0
    %480 = vmatpush2.msra.mxu0 0.0
    %481 = vmatprep.subr.mxu0 0.0
    %482 = vmatpush2.msra.mxu0 0.0
    %483 = vmatprep.subr.mxu0 0.0
    %484 = vmatpush2.msra.mxu0 0.0
    %485 = vmatprep.subr.mxu0 0.0
    %486 = vmatpush2.msra.mxu0 0.0
    %487 = vmatprep.mubr.f32.mxu0 0.0
    %488 = vmatmul.mubr.f32.gmra.mxu0 %v224
    %v489 = vpop.f32.mrf.mxu0
    %v490 = vadd.f32 0.0, %v489
    %v491 = vpop.f32.mrf.mxu0
    %492 = vdwg.mxu0
    %493 = vmatprep.subr.mxu0 0.0
    %494 = vmatpush1.msra.mxu0 0.0
    %495 = vmatprep.subr.mxu0 0.0
    %496 = vmatpush1.msra.mxu0 0.0
    %497 = vmatprep.subr.mxu0 0.0
    %498 = vmatpush1.msra.mxu0 0.0
    %499 = vmatprep.subr.mxu0 0.0
    %500 = vmatpush1.msra.mxu0 0.0
    %501 = vmatprep.subr.mxu0 0.0
    %502 = vmatpush1.msra.mxu0 0.0
    %503 = vmatprep.subr.mxu0 0.0
    %504 = vmatpush1.msra.mxu0 0.0
    %505 = vmatprep.subr.mxu0 0.0
    %506 = vmatpush1.msra.mxu0 0.0
    %507 = vmatprep.subr.mxu0 0.0
    %508 = vmatpush1.msra.mxu0 0.0
    %509 = vmatprep.subr.mxu0 0.0
    %510 = vmatpush1.msra.mxu0 0.0
    %511 = vmatprep.subr.mxu0 0.0
    %512 = vmatpush1.msra.mxu0 0.0
    %513 = vmatprep.subr.mxu0 0.0
    %514 = vmatpush1.msra.mxu0 0.0
    %515 = vmatprep.subr.mxu0 0.0
    %516 = vmatpush1.msra.mxu0 0.0
    %517 = vmatprep.subr.mxu0 0.0
    %518 = vmatpush1.msra.mxu0 %v215
    %519 = vmatprep.subr.mxu0 0.0
    %520 = vmatpush1.msra.mxu0 %v214
    %521 = vmatprep.subr.mxu0 0.0
    %522 = vmatpush1.msra.mxu0 %v213
    %523 = vmatprep.subr.mxu0 0.0
    %524 = vmatpush1.msra.mxu0 %v212
    %525 = vmatprep.subr.mxu0 0.0
    %526 = vmatpush2.msra.mxu0 0.0
    %527 = vmatprep.subr.mxu0 0.0
    %528 = vmatpush2.msra.mxu0 0.0
    %529 = vmatprep.subr.mxu0 0.0
    %530 = vmatpush2.msra.mxu0 0.0
    %531 = vmatprep.subr.mxu0 0.0
    %532 = vmatpush2.msra.mxu0 0.0
    %533 = vmatprep.subr.mxu0 0.0
    %534 = vmatpush2.msra.mxu0 0.0
    %535 = vmatprep.subr.mxu0 0.0
    %536 = vmatpush2.msra.mxu0 0.0
    %537 = vmatprep.subr.mxu0 0.0
    %538 = vmatpush2.msra.mxu0 0.0
    %539 = vmatprep.subr.mxu0 0.0
    %540 = vmatpush2.msra.mxu0 0.0
    %541 = vmatprep.subr.mxu0 0.0
    %542 = vmatpush2.msra.mxu0 0.0
    %543 = vmatprep.subr.mxu0 0.0
    %544 = vmatpush2.msra.mxu0 0.0
    %545 = vmatprep.subr.mxu0 0.0
    %546 = vmatpush2.msra.mxu0 0.0
    %547 = vmatprep.subr.mxu0 0.0
    %548 = vmatpush2.msra.mxu0 0.0
    %549 = vmatprep.subr.mxu0 0.0
    %550 = vmatpush2.msra.mxu0 0.0
    %551 = vmatprep.subr.mxu0 0.0
    %552 = vmatpush2.msra.mxu0 0.0
    %553 = vmatprep.subr.mxu0 0.0
    %554 = vmatpush2.msra.mxu0 0.0
    %555 = vmatprep.subr.mxu0 0.0
    %556 = vmatpush2.msra.mxu0 0.0
    %557 = vmatprep.mubr.f32.mxu0 0.0
    %558 = vmatmul.mubr.f32.gmra.mxu0 %v325
    %v559 = vpop.f32.mrf.mxu0
    %v560 = vadd.f32 %v490, %v559
    %v561 = vpop.f32.mrf.mxu0
    %562 = vdwg.mxu0
    %v564 = vlaneseq
    %v565 = vshrl.u32 %v564, 7
    %v566 = vsub.s32 0, %v565
    %v567 = vrot.slane %v220, %v566
    %v569 = vadd.f32 %v560, %v567
    %v570 = vxor.u32 %v569, 2147483648
    %v571 = vmul.f32 %v570, 1.442695
    %v572 = vpow.pop %v571
    %v573 = vadd.f32 %v572, 1.0
    %v574 = vrcp.pop %v573
    %v575 = vmul.f32 1.0, %v574
    %v576 = vmul.f32 %v575, 2.0
    %v577 = vsub.f32 %v576, 1.0
    %v578 = vmul.f32 %v575, 0.0
    %580 = vrot.lane.b32.xlu0 %v577, 64
    %v581 = vpop.permute.xlu0 %580
    %v583 = vmul.f32 %v575, %v581
    %585 = vrot.lane.b32.xlu0 %v583, 32
    %v586 = vpop.permute.xlu0 %585
    %v588 = vadd.f32 %v578, %v586
    %v589 = vtanh.pop %v588
    %591 = vrot.lane.b32.xlu0 %v589, 64
    %v592 = vpop.permute.xlu0 %591
    %v594 = vmul.f32 %v575, %v592
    %596 = vrot.lane.b32.xlu0 %v422, 32
    %v597 = vpop.permute.xlu0 %596
    %v598 = vsel %vm222, %v597, 0
    %600 = vmatprep.subr.mxu0 0.0
    %601 = vmatpush1.msra.mxu0 0.0
    %602 = vmatprep.subr.mxu0 0.0
    %603 = vmatpush1.msra.mxu0 0.0
    %604 = vmatprep.subr.mxu0 0.0
    %605 = vmatpush1.msra.mxu0 0.0
    %606 = vmatprep.subr.mxu0 0.0
    %607 = vmatpush1.msra.mxu0 0.0
    %608 = vmatprep.subr.mxu0 0.0
    %609 = vmatpush1.msra.mxu0 0.0
    %610 = vmatprep.subr.mxu0 0.0
    %611 = vmatpush1.msra.mxu0 0.0
    %612 = vmatprep.subr.mxu0 0.0
    %613 = vmatpush1.msra.mxu0 0.0
    %614 = vmatprep.subr.mxu0 0.0
    %615 = vmatpush1.msra.mxu0 0.0
    %616 = vmatprep.subr.mxu0 0.0
    %617 = vmatpush1.msra.mxu0 0.0
    %618 = vmatprep.subr.mxu0 0.0
    %619 = vmatpush1.msra.mxu0 0.0
    %620 = vmatprep.subr.mxu0 0.0
    %621 = vmatpush1.msra.mxu0 0.0
    %622 = vmatprep.subr.mxu0 0.0
    %623 = vmatpush1.msra.mxu0 0.0
    %624 = vmatprep.subr.mxu0 0.0
    %625 = vmatpush1.msra.mxu0 %v203
    %626 = vmatprep.subr.mxu0 0.0
    %627 = vmatpush1.msra.mxu0 %v202
    %628 = vmatprep.subr.mxu0 0.0
    %629 = vmatpush1.msra.mxu0 %v201
    %630 = vmatprep.subr.mxu0 0.0
    %631 = vmatpush1.msra.mxu0 %v200
    %632 = vmatprep.subr.mxu0 0.0
    %633 = vmatpush2.msra.mxu0 0.0
    %634 = vmatprep.subr.mxu0 0.0
    %635 = vmatpush2.msra.mxu0 0.0
    %636 = vmatprep.subr.mxu0 0.0
    %637 = vmatpush2.msra.mxu0 0.0
    %638 = vmatprep.subr.mxu0 0.0
    %639 = vmatpush2.msra.mxu0 0.0
    %640 = vmatprep.subr.mxu0 0.0
    %641 = vmatpush2.msra.mxu0 0.0
    %642 = vmatprep.subr.mxu0 0.0
    %643 = vmatpush2.msra.mxu0 0.0
    %644 = vmatprep.subr.mxu0 0.0
    %645 = vmatpush2.msra.mxu0 0.0
    %646 = vmatprep.subr.mxu0 0.0
    %647 = vmatpush2.msra.mxu0 0.0
    %648 = vmatprep.subr.mxu0 0.0
    %649 = vmatpush2.msra.mxu0 0.0
    %650 = vmatprep.subr.mxu0 0.0
    %651 = vmatpush2.msra.mxu0 0.0
    %652 = vmatprep.subr.mxu0 0.0
    %653 = vmatpush2.msra.mxu0 0.0
    %654 = vmatprep.subr.mxu0 0.0
    %655 = vmatpush2.msra.mxu0 0.0
    %656 = vmatprep.subr.mxu0 0.0
    %657 = vmatpush2.msra.mxu0 0.0
    %658 = vmatprep.subr.mxu0 0.0
    %659 = vmatpush2.msra.mxu0 0.0
    %660 = vmatprep.subr.mxu0 0.0
    %661 = vmatpush2.msra.mxu0 0.0
    %662 = vmatprep.subr.mxu0 0.0
    %663 = vmatpush2.msra.mxu0 0.0
    %664 = vmatprep.mubr.f32.mxu0 0.0
    %665 = vmatmul.mubr.f32.gmra.mxu0 %v598
    %v666 = vpop.f32.mrf.mxu0
    %v667 = vadd.f32 0.0, %v666
    %v668 = vpop.f32.mrf.mxu0
    %669 = vdwg.mxu0
    %v670 = vadd.f32 %v172, %v667
    %v671 = vxor.u32 %v670, 2147483648
    %v672 = vmul.f32 %v671, 1.442695
    %v673 = vpow.pop %v672
    %v674 = vadd.f32 %v673, 1.0
    %v675 = vrcp.pop %v674
    %v676 = vmul.f32 1.0, %v675
    %v677 = vmul.f32 %v676, 2.0
    %v678 = vsub.f32 %v677, 1.0
    %v679 = vmul.f32 %v676, %v416
    %681 = vrot.lane.b32.xlu0 %v678, 64
    %v682 = vpop.permute.xlu0 %681
    %v684 = vmul.f32 %v676, %v682
    %686 = vrot.lane.b32.xlu0 %v684, 32
    %v687 = vpop.permute.xlu0 %686
    %v689 = vadd.f32 %v679, %v687
    %v690 = vtanh.pop %v689
    %692 = vrot.lane.b32.xlu0 %v690, 64
    %v693 = vpop.permute.xlu0 %692
    %v695 = vmul.f32 %v676, %v693
    %697 = vrot.lane.b32.xlu0 %v594, 32
    %v698 = vpop.permute.xlu0 %697
    %v699 = vsel %vm222, %v698, 0
    %701 = vmatprep.subr.mxu0 0.0
    %702 = vmatpush1.msra.mxu0 0.0
    %703 = vmatprep.subr.mxu0 0.0
    %704 = vmatpush1.msra.mxu0 0.0
    %705 = vmatprep.subr.mxu0 0.0
    %706 = vmatpush1.msra.mxu0 0.0
    %707 = vmatprep.subr.mxu0 0.0
    %708 = vmatpush1.msra.mxu0 0.0
    %709 = vmatprep.subr.mxu0 0.0
    %710 = vmatpush1.msra.mxu0 0.0
    %711 = vmatprep.subr.mxu0 0.0
    %712 = vmatpush1.msra.mxu0 0.0
    %713 = vmatprep.subr.mxu0 0.0
    %714 = vmatpush1.msra.mxu0 0.0
    %715 = vmatprep.subr.mxu0 0.0
    %716 = vmatpush1.msra.mxu0 0.0
    %717 = vmatprep.subr.mxu0 0.0
    %718 = vmatpush1.msra.mxu0 0.0
    %719 = vmatprep.subr.mxu0 0.0
    %720 = vmatpush1.msra.mxu0 0.0
    %721 = vmatprep.subr.mxu0 0.0
    %722 = vmatpush1.msra.mxu0 0.0
    %723 = vmatprep.subr.mxu0 0.0
    %724 = vmatpush1.msra.mxu0 0.0
    %725 = vmatprep.subr.mxu0 0.0
    %726 = vmatpush1.msra.mxu0 %v207
    %727 = vmatprep.subr.mxu0 0.0
    %728 = vmatpush1.msra.mxu0 %v206
    %729 = vmatprep.subr.mxu0 0.0
    %730 = vmatpush1.msra.mxu0 %v205
    %731 = vmatprep.subr.mxu0 0.0
    %732 = vmatpush1.msra.mxu0 %v204
    %733 = vmatprep.subr.mxu0 0.0
    %734 = vmatpush2.msra.mxu0 0.0
    %735 = vmatprep.subr.mxu0 0.0
    %736 = vmatpush2.msra.mxu0 0.0
    %737 = vmatprep.subr.mxu0 0.0
    %738 = vmatpush2.msra.mxu0 0.0
    %739 = vmatprep.subr.mxu0 0.0
    %740 = vmatpush2.msra.mxu0 0.0
    %741 = vmatprep.subr.mxu0 0.0
    %742 = vmatpush2.msra.mxu0 0.0
    %743 = vmatprep.subr.mxu0 0.0
    %744 = vmatpush2.msra.mxu0 0.0
    %745 = vmatprep.subr.mxu0 0.0
    %746 = vmatpush2.msra.mxu0 0.0
    %747 = vmatprep.subr.mxu0 0.0
    %748 = vmatpush2.msra.mxu0 0.0
    %749 = vmatprep.subr.mxu0 0.0
    %750 = vmatpush2.msra.mxu0 0.0
    %751 = vmatprep.subr.mxu0 0.0
    %752 = vmatpush2.msra.mxu0 0.0
    %753 = vmatprep.subr.mxu0 0.0
    %754 = vmatpush2.msra.mxu0 0.0
    %755 = vmatprep.subr.mxu0 0.0
    %756 = vmatpush2.msra.mxu0 0.0
    %757 = vmatprep.subr.mxu0 0.0
    %758 = vmatpush2.msra.mxu0 0.0
    %759 = vmatprep.subr.mxu0 0.0
    %760 = vmatpush2.msra.mxu0 0.0
    %761 = vmatprep.subr.mxu0 0.0
    %762 = vmatpush2.msra.mxu0 0.0
    %763 = vmatprep.subr.mxu0 0.0
    %764 = vmatpush2.msra.mxu0 0.0
    %765 = vmatprep.mubr.f32.mxu0 0.0
    %766 = vmatmul.mubr.f32.gmra.mxu0 %v699
    %v767 = vpop.f32.mrf.mxu0
    %v768 = vadd.f32 0.0, %v767
    %v769 = vpop.f32.mrf.mxu0
    %770 = vdwg.mxu0
    %771 = vmatprep.subr.mxu0 0.0
    %772 = vmatpush1.msra.mxu0 0.0
    %773 = vmatprep.subr.mxu0 0.0
    %774 = vmatpush1.msra.mxu0 0.0
    %775 = vmatprep.subr.mxu0 0.0
    %776 = vmatpush1.msra.mxu0 0.0
    %777 = vmatprep.subr.mxu0 0.0
    %778 = vmatpush1.msra.mxu0 0.0
    %779 = vmatprep.subr.mxu0 0.0
    %780 = vmatpush1.msra.mxu0 0.0
    %781 = vmatprep.subr.mxu0 0.0
    %782 = vmatpush1.msra.mxu0 0.0
    %783 = vmatprep.subr.mxu0 0.0
    %784 = vmatpush1.msra.mxu0 0.0
    %785 = vmatprep.subr.mxu0 0.0
    %786 = vmatpush1.msra.mxu0 0.0
    %787 = vmatprep.subr.mxu0 0.0
    %788 = vmatpush1.msra.mxu0 0.0
    %789 = vmatprep.subr.mxu0 0.0
    %790 = vmatpush1.msra.mxu0 0.0
    %791 = vmatprep.subr.mxu0 0.0
    %792 = vmatpush1.msra.mxu0 0.0
    %793 = vmatprep.subr.mxu0 0.0
    %794 = vmatpush1.msra.mxu0 0.0
    %795 = vmatprep.subr.mxu0 0.0
    %796 = vmatpush1.msra.mxu0 %v215
    %797 = vmatprep.subr.mxu0 0.0
    %798 = vmatpush1.msra.mxu0 %v214
    %799 = vmatprep.subr.mxu0 0.0
    %800 = vmatpush1.msra.mxu0 %v213
    %801 = vmatprep.subr.mxu0 0.0
    %802 = vmatpush1.msra.mxu0 %v212
    %803 = vmatprep.subr.mxu0 0.0
    %804 = vmatpush2.msra.mxu0 0.0
    %805 = vmatprep.subr.mxu0 0.0
    %806 = vmatpush2.msra.mxu0 0.0
    %807 = vmatprep.subr.mxu0 0.0
    %808 = vmatpush2.msra.mxu0 0.0
    %809 = vmatprep.subr.mxu0 0.0
    %810 = vmatpush2.msra.mxu0 0.0
    %811 = vmatprep.subr.mxu0 0.0
    %812 = vmatpush2.msra.mxu0 0.0
    %813 = vmatprep.subr.mxu0 0.0
    %814 = vmatpush2.msra.mxu0 0.0
    %815 = vmatprep.subr.mxu0 0.0
    %816 = vmatpush2.msra.mxu0 0.0
    %817 = vmatprep.subr.mxu0 0.0
    %818 = vmatpush2.msra.mxu0 0.0
    %819 = vmatprep.subr.mxu0 0.0
    %820 = vmatpush2.msra.mxu0 0.0
    %821 = vmatprep.subr.mxu0 0.0
    %822 = vmatpush2.msra.mxu0 0.0
    %823 = vmatprep.subr.mxu0 0.0
    %824 = vmatpush2.msra.mxu0 0.0
    %825 = vmatprep.subr.mxu0 0.0
    %826 = vmatpush2.msra.mxu0 0.0
    %827 = vmatprep.subr.mxu0 0.0
    %828 = vmatpush2.msra.mxu0 0.0
    %829 = vmatprep.subr.mxu0 0.0
    %830 = vmatpush2.msra.mxu0 0.0
    %831 = vmatprep.subr.mxu0 0.0
    %832 = vmatpush2.msra.mxu0 0.0
    %833 = vmatprep.subr.mxu0 0.0
    %834 = vmatpush2.msra.mxu0 0.0
    %835 = vmatprep.mubr.f32.mxu0 0.0
    %836 = vmatmul.mubr.f32.gmra.mxu0 %v598
    %v837 = vpop.f32.mrf.mxu0
    %v838 = vadd.f32 %v768, %v837
    %v839 = vpop.f32.mrf.mxu0
    %840 = vdwg.mxu0
    %v841 = vadd.f32 %v838, %v567
    %v842 = vxor.u32 %v841, 2147483648
    %v843 = vmul.f32 %v842, 1.442695
    %v844 = vpow.pop %v843
    %v845 = vadd.f32 %v844, 1.0
    %v846 = vrcp.pop %v845
    %v847 = vmul.f32 1.0, %v846
    %v848 = vmul.f32 %v847, 2.0
    %v849 = vsub.f32 %v848, 1.0
    %v850 = vmul.f32 %v847, %v588
    %852 = vrot.lane.b32.xlu0 %v849, 64
    %v853 = vpop.permute.xlu0 %852
    %v855 = vmul.f32 %v847, %v853
    %857 = vrot.lane.b32.xlu0 %v855, 32
    %v858 = vpop.permute.xlu0 %857
    %v860 = vadd.f32 %v850, %v858
    %v861 = vtanh.pop %v860
    %863 = vrot.lane.b32.xlu0 %v861, 64
    %v864 = vpop.permute.xlu0 %863
    %v866 = vmul.f32 %v847, %v864
    %867 = vmatprep.subr.mxu0 0.0
    %868 = vmatpush1.msra.mxu0 0.0
    %869 = vmatprep.subr.mxu0 0.0
    %870 = vmatpush1.msra.mxu0 0.0
    %871 = vmatprep.subr.mxu0 0.0
    %872 = vmatpush1.msra.mxu0 0.0
    %873 = vmatprep.subr.mxu0 0.0
    %874 = vmatpush1.msra.mxu0 0.0
    %875 = vmatprep.subr.mxu0 0.0
    %876 = vmatpush1.msra.mxu0 0.0
    %877 = vmatprep.subr.mxu0 0.0
    %878 = vmatpush1.msra.mxu0 0.0
    %879 = vmatprep.subr.mxu0 0.0
    %880 = vmatpush1.msra.mxu0 0.0
    %881 = vmatprep.subr.mxu0 0.0
    %882 = vmatpush1.msra.mxu0 0.0
    %883 = vmatprep.subr.mxu0 0.0
    %884 = vmatpush1.msra.mxu0 0.0
    %885 = vmatprep.subr.mxu0 0.0
    %886 = vmatpush1.msra.mxu0 0.0
    %887 = vmatprep.subr.mxu0 0.0
    %888 = vmatpush1.msra.mxu0 0.0
    %889 = vmatprep.subr.mxu0 0.0
    %890 = vmatpush1.msra.mxu0 0.0
    %891 = vmatprep.subr.mxu0 0.0
    %892 = vmatpush1.msra.mxu0 %v211
    %893 = vmatprep.subr.mxu0 0.0
    %894 = vmatpush1.msra.mxu0 %v210
    %895 = vmatprep.subr.mxu0 0.0
    %896 = vmatpush1.msra.mxu0 %v209
    %897 = vmatprep.subr.mxu0 0.0
    %898 = vmatpush1.msra.mxu0 %v208
    %899 = vmatprep.subr.mxu0 0.0
    %900 = vmatpush2.msra.mxu0 0.0
    %901 = vmatprep.subr.mxu0 0.0
    %902 = vmatpush2.msra.mxu0 0.0
    %903 = vmatprep.subr.mxu0 0.0
    %904 = vmatpush2.msra.mxu0 0.0
    %905 = vmatprep.subr.mxu0 0.0
    %906 = vmatpush2.msra.mxu0 0.0
    %907 = vmatprep.subr.mxu0 0.0
    %908 = vmatpush2.msra.mxu0 0.0
    %909 = vmatprep.subr.mxu0 0.0
    %910 = vmatpush2.msra.mxu0 0.0
    %911 = vmatprep.subr.mxu0 0.0
    %912 = vmatpush2.msra.mxu0 0.0
    %913 = vmatprep.subr.mxu0 0.0
    %914 = vmatpush2.msra.mxu0 0.0
    %915 = vmatprep.subr.mxu0 0.0
    %916 = vmatpush2.msra.mxu0 0.0
    %917 = vmatprep.subr.mxu0 0.0
    %918 = vmatpush2.msra.mxu0 0.0
    %919 = vmatprep.subr.mxu0 0.0
    %920 = vmatpush2.msra.mxu0 0.0
    %921 = vmatprep.subr.mxu0 0.0
    %922 = vmatpush2.msra.mxu0 0.0
    %923 = vmatprep.subr.mxu0 0.0
    %924 = vmatpush2.msra.mxu0 0.0
    %925 = vmatprep.subr.mxu0 0.0
    %926 = vmatpush2.msra.mxu0 0.0
    %927 = vmatprep.subr.mxu0 0.0
    %928 = vmatpush2.msra.mxu0 0.0
    %929 = vmatprep.subr.mxu0 0.0
    %930 = vmatpush2.msra.mxu0 0.0
    %931 = vmatprep.mubr.f32.mxu0 0.0
    %932 = vmatmul.mubr.f32.gmra.mxu0 %v224
    %v933 = vpop.f32.mrf.mxu0
    %v934 = vadd.f32 0.0, %v933
    %v935 = vpop.f32.mrf.mxu0
    %936 = vdwg.mxu0
    %937 = vmatprep.subr.mxu0 0.0
    %938 = vmatpush1.msra.mxu0 0.0
    %939 = vmatprep.subr.mxu0 0.0
    %940 = vmatpush1.msra.mxu0 0.0
    %941 = vmatprep.subr.mxu0 0.0
    %942 = vmatpush1.msra.mxu0 0.0
    %943 = vmatprep.subr.mxu0 0.0
    %944 = vmatpush1.msra.mxu0 0.0
    %945 = vmatprep.subr.mxu0 0.0
    %946 = vmatpush1.msra.mxu0 0.0
    %947 = vmatprep.subr.mxu0 0.0
    %948 = vmatpush1.msra.mxu0 0.0
    %949 = vmatprep.subr.mxu0 0.0
    %950 = vmatpush1.msra.mxu0 0.0
    %951 = vmatprep.subr.mxu0 0.0
    %952 = vmatpush1.msra.mxu0 0.0
    %953 = vmatprep.subr.mxu0 0.0
    %954 = vmatpush1.msra.mxu0 0.0
    %955 = vmatprep.subr.mxu0 0.0
    %956 = vmatpush1.msra.mxu0 0.0
    %957 = vmatprep.subr.mxu0 0.0
    %958 = vmatpush1.msra.mxu0 0.0
    %959 = vmatprep.subr.mxu0 0.0
    %960 = vmatpush1.msra.mxu0 0.0
    %961 = vmatprep.subr.mxu0 0.0
    %962 = vmatpush1.msra.mxu0 %v219
    %963 = vmatprep.subr.mxu0 0.0
    %964 = vmatpush1.msra.mxu0 %v218
    %965 = vmatprep.subr.mxu0 0.0
    %966 = vmatpush1.msra.mxu0 %v217
    %967 = vmatprep.subr.mxu0 0.0
    %968 = vmatpush1.msra.mxu0 %v216
    %969 = vmatprep.subr.mxu0 0.0
    %970 = vmatpush2.msra.mxu0 0.0
    %971 = vmatprep.subr.mxu0 0.0
    %972 = vmatpush2.msra.mxu0 0.0
    %973 = vmatprep.subr.mxu0 0.0
    %974 = vmatpush2.msra.mxu0 0.0
    %975 = vmatprep.subr.mxu0 0.0
    %976 = vmatpush2.msra.mxu0 0.0
    %977 = vmatprep.subr.mxu0 0.0
    %978 = vmatpush2.msra.mxu0 0.0
    %979 = vmatprep.subr.mxu0 0.0
    %980 = vmatpush2.msra.mxu0 0.0
    %981 = vmatprep.subr.mxu0 0.0
    %982 = vmatpush2.msra.mxu0 0.0
    %983 = vmatprep.subr.mxu0 0.0
    %984 = vmatpush2.msra.mxu0 0.0
    %985 = vmatprep.subr.mxu0 0.0
    %986 = vmatpush2.msra.mxu0 0.0
    %987 = vmatprep.subr.mxu0 0.0
    %988 = vmatpush2.msra.mxu0 0.0
    %989 = vmatprep.subr.mxu0 0.0
    %990 = vmatpush2.msra.mxu0 0.0
    %991 = vmatprep.subr.mxu0 0.0
    %992 = vmatpush2.msra.mxu0 0.0
    %993 = vmatprep.subr.mxu0 0.0
    %994 = vmatpush2.msra.mxu0 0.0
    %995 = vmatprep.subr.mxu0 0.0
    %996 = vmatpush2.msra.mxu0 0.0
    %997 = vmatprep.subr.mxu0 0.0
    %998 = vmatpush2.msra.mxu0 0.0
    %999 = vmatprep.subr.mxu0 0.0
    %1000 = vmatpush2.msra.mxu0 0.0
    %1001 = vmatprep.mubr.f32.mxu0 0.0
    %1002 = vmatmul.mubr.f32.gmra.mxu0 %v699
    %v1003 = vpop.f32.mrf.mxu0
    %v1004 = vadd.f32 %v934, %v1003
    %v1005 = vpop.f32.mrf.mxu0
    %1006 = vdwg.mxu0
    %v1008 = vlaneseq
    %v1009 = vshrl.u32 %v1008, 7
    %v1010 = vsub.s32 0, %v1009
    %v1011 = vrot.slane %v221, %v1010
    %v1013 = vadd.f32 %v1004, %v1011
    %v1014 = vxor.u32 %v1013, 2147483648
    %v1015 = vmul.f32 %v1014, 1.442695
    %v1016 = vpow.pop %v1015
    %v1017 = vadd.f32 %v1016, 1.0
    %v1018 = vrcp.pop %v1017
    %v1019 = vmul.f32 1.0, %v1018
    %v1020 = vmul.f32 %v1019, 2.0
    %v1021 = vsub.f32 %v1020, 1.0
    %v1022 = vmul.f32 %v1019, 0.0
    %1024 = vrot.lane.b32.xlu0 %v1021, 64
    %v1025 = vpop.permute.xlu0 %1024
    %v1027 = vmul.f32 %v1019, %v1025
    %1029 = vrot.lane.b32.xlu0 %v1027, 32
    %v1030 = vpop.permute.xlu0 %1029
    %v1032 = vadd.f32 %v1022, %v1030
    %v1033 = vtanh.pop %v1032
    %1035 = vrot.lane.b32.xlu0 %v1033, 64
    %v1036 = vpop.permute.xlu0 %1035
    %v1038 = vmul.f32 %v1019, %v1036
    %1040 = vrot.lane.b32.xlu0 %v695, 32
    %v1041 = vpop.permute.xlu0 %1040
    %v1042 = vsel %vm222, %v1041, 0
    %1044 = vmatprep.subr.mxu0 0.0
    %1045 = vmatpush1.msra.mxu0 0.0
    %1046 = vmatprep.subr.mxu0 0.0
    %1047 = vmatpush1.msra.mxu0 0.0
    %1048 = vmatprep.subr.mxu0 0.0
    %1049 = vmatpush1.msra.mxu0 0.0
    %1050 = vmatprep.subr.mxu0 0.0
    %1051 = vmatpush1.msra.mxu0 0.0
    %1052 = vmatprep.subr.mxu0 0.0
    %1053 = vmatpush1.msra.mxu0 0.0
    %1054 = vmatprep.subr.mxu0 0.0
    %1055 = vmatpush1.msra.mxu0 0.0
    %1056 = vmatprep.subr.mxu0 0.0
    %1057 = vmatpush1.msra.mxu0 0.0
    %1058 = vmatprep.subr.mxu0 0.0
    %1059 = vmatpush1.msra.mxu0 0.0
    %1060 = vmatprep.subr.mxu0 0.0
    %1061 = vmatpush1.msra.mxu0 0.0
    %1062 = vmatprep.subr.mxu0 0.0
    %1063 = vmatpush1.msra.mxu0 0.0
    %1064 = vmatprep.subr.mxu0 0.0
    %1065 = vmatpush1.msra.mxu0 0.0
    %1066 = vmatprep.subr.mxu0 0.0
    %1067 = vmatpush1.msra.mxu0 0.0
    %1068 = vmatprep.subr.mxu0 0.0
    %1069 = vmatpush1.msra.mxu0 %v203
    %1070 = vmatprep.subr.mxu0 0.0
    %1071 = vmatpush1.msra.mxu0 %v202
    %1072 = vmatprep.subr.mxu0 0.0
    %1073 = vmatpush1.msra.mxu0 %v201
    %1074 = vmatprep.subr.mxu0 0.0
    %1075 = vmatpush1.msra.mxu0 %v200
    %1076 = vmatprep.subr.mxu0 0.0
    %1077 = vmatpush2.msra.mxu0 0.0
    %1078 = vmatprep.subr.mxu0 0.0
    %1079 = vmatpush2.msra.mxu0 0.0
    %1080 = vmatprep.subr.mxu0 0.0
    %1081 = vmatpush2.msra.mxu0 0.0
    %1082 = vmatprep.subr.mxu0 0.0
    %1083 = vmatpush2.msra.mxu0 0.0
    %1084 = vmatprep.subr.mxu0 0.0
    %1085 = vmatpush2.msra.mxu0 0.0
    %1086 = vmatprep.subr.mxu0 0.0
    %1087 = vmatpush2.msra.mxu0 0.0
    %1088 = vmatprep.subr.mxu0 0.0
    %1089 = vmatpush2.msra.mxu0 0.0
    %1090 = vmatprep.subr.mxu0 0.0
    %1091 = vmatpush2.msra.mxu0 0.0
    %1092 = vmatprep.subr.mxu0 0.0
    %1093 = vmatpush2.msra.mxu0 0.0
    %1094 = vmatprep.subr.mxu0 0.0
    %1095 = vmatpush2.msra.mxu0 0.0
    %1096 = vmatprep.subr.mxu0 0.0
    %1097 = vmatpush2.msra.mxu0 0.0
    %1098 = vmatprep.subr.mxu0 0.0
    %1099 = vmatpush2.msra.mxu0 0.0
    %1100 = vmatprep.subr.mxu0 0.0
    %1101 = vmatpush2.msra.mxu0 0.0
    %1102 = vmatprep.subr.mxu0 0.0
    %1103 = vmatpush2.msra.mxu0 0.0
    %1104 = vmatprep.subr.mxu0 0.0
    %1105 = vmatpush2.msra.mxu0 0.0
    %1106 = vmatprep.subr.mxu0 0.0
    %1107 = vmatpush2.msra.mxu0 0.0
    %1108 = vmatprep.mubr.f32.mxu0 0.0
    %1109 = vmatmul.mubr.f32.gmra.mxu0 %v1042
    %v1110 = vpop.f32.mrf.mxu0
    %v1111 = vadd.f32 0.0, %v1110
    %v1112 = vpop.f32.mrf.mxu0
    %1113 = vdwg.mxu0
    %v1114 = vadd.f32 %v177, %v1111
    %v1115 = vxor.u32 %v1114, 2147483648
    %v1116 = vmul.f32 %v1115, 1.442695
    %v1117 = vpow.pop %v1116
    %v1118 = vadd.f32 %v1117, 1.0
    %v1119 = vrcp.pop %v1118
    %v1120 = vmul.f32 1.0, %v1119
    %v1121 = vmul.f32 %v1120, 2.0
    %v1122 = vsub.f32 %v1121, 1.0
    %v1123 = vmul.f32 %v1120, %v689
    %1125 = vrot.lane.b32.xlu0 %v1122, 64
    %v1126 = vpop.permute.xlu0 %1125
    %v1128 = vmul.f32 %v1120, %v1126
    %1130 = vrot.lane.b32.xlu0 %v1128, 32
    %v1131 = vpop.permute.xlu0 %1130
    %v1133 = vadd.f32 %v1123, %v1131
    %v1134 = vtanh.pop %v1133
    %1136 = vrot.lane.b32.xlu0 %v1134, 64
    %v1137 = vpop.permute.xlu0 %1136
    %v1139 = vmul.f32 %v1120, %v1137
    %1141 = vrot.lane.b32.xlu0 %v866, 32
    %v1142 = vpop.permute.xlu0 %1141
    %v1143 = vsel %vm222, %v1142, 0
    %1145 = vmatprep.subr.mxu0 0.0
    %1146 = vmatpush1.msra.mxu0 0.0
    %1147 = vmatprep.subr.mxu0 0.0
    %1148 = vmatpush1.msra.mxu0 0.0
    %1149 = vmatprep.subr.mxu0 0.0
    %1150 = vmatpush1.msra.mxu0 0.0
    %1151 = vmatprep.subr.mxu0 0.0
    %1152 = vmatpush1.msra.mxu0 0.0
    %1153 = vmatprep.subr.mxu0 0.0
    %1154 = vmatpush1.msra.mxu0 0.0
    %1155 = vmatprep.subr.mxu0 0.0
    %1156 = vmatpush1.msra.mxu0 0.0
    %1157 = vmatprep.subr.mxu0 0.0
    %1158 = vmatpush1.msra.mxu0 0.0
    %1159 = vmatprep.subr.mxu0 0.0
    %1160 = vmatpush1.msra.mxu0 0.0
    %1161 = vmatprep.subr.mxu0 0.0
    %1162 = vmatpush1.msra.mxu0 0.0
    %1163 = vmatprep.subr.mxu0 0.0
    %1164 = vmatpush1.msra.mxu0 0.0
    %1165 = vmatprep.subr.mxu0 0.0
    %1166 = vmatpush1.msra.mxu0 0.0
    %1167 = vmatprep.subr.mxu0 0.0
    %1168 = vmatpush1.msra.mxu0 0.0
    %1169 = vmatprep.subr.mxu0 0.0
    %1170 = vmatpush1.msra.mxu0 %v207
    %1171 = vmatprep.subr.mxu0 0.0
    %1172 = vmatpush1.msra.mxu0 %v206
    %1173 = vmatprep.subr.mxu0 0.0
    %1174 = vmatpush1.msra.mxu0 %v205
    %1175 = vmatprep.subr.mxu0 0.0
    %1176 = vmatpush1.msra.mxu0 %v204
    %1177 = vmatprep.subr.mxu0 0.0
    %1178 = vmatpush2.msra.mxu0 0.0
    %1179 = vmatprep.subr.mxu0 0.0
    %1180 = vmatpush2.msra.mxu0 0.0
    %1181 = vmatprep.subr.mxu0 0.0
    %1182 = vmatpush2.msra.mxu0 0.0
    %1183 = vmatprep.subr.mxu0 0.0
    %1184 = vmatpush2.msra.mxu0 0.0
    %1185 = vmatprep.subr.mxu0 0.0
    %1186 = vmatpush2.msra.mxu0 0.0
    %1187 = vmatprep.subr.mxu0 0.0
    %1188 = vmatpush2.msra.mxu0 0.0
    %1189 = vmatprep.subr.mxu0 0.0
    %1190 = vmatpush2.msra.mxu0 0.0
    %1191 = vmatprep.subr.mxu0 0.0
    %1192 = vmatpush2.msra.mxu0 0.0
    %1193 = vmatprep.subr.mxu0 0.0
    %1194 = vmatpush2.msra.mxu0 0.0
    %1195 = vmatprep.subr.mxu0 0.0
    %1196 = vmatpush2.msra.mxu0 0.0
    %1197 = vmatprep.subr.mxu0 0.0
    %1198 = vmatpush2.msra.mxu0 0.0
    %1199 = vmatprep.subr.mxu0 0.0
    %1200 = vmatpush2.msra.mxu0 0.0
    %1201 = vmatprep.subr.mxu0 0.0
    %1202 = vmatpush2.msra.mxu0 0.0
    %1203 = vmatprep.subr.mxu0 0.0
    %1204 = vmatpush2.msra.mxu0 0.0
    %1205 = vmatprep.subr.mxu0 0.0
    %1206 = vmatpush2.msra.mxu0 0.0
    %1207 = vmatprep.subr.mxu0 0.0
    %1208 = vmatpush2.msra.mxu0 0.0
    %1209 = vmatprep.mubr.f32.mxu0 0.0
    %1210 = vmatmul.mubr.f32.gmra.mxu0 %v1143
    %v1211 = vpop.f32.mrf.mxu0
    %v1212 = vadd.f32 0.0, %v1211
    %v1213 = vpop.f32.mrf.mxu0
    %1214 = vdwg.mxu0
    %1215 = vmatprep.subr.mxu0 0.0
    %1216 = vmatpush1.msra.mxu0 0.0
    %1217 = vmatprep.subr.mxu0 0.0
    %1218 = vmatpush1.msra.mxu0 0.0
    %1219 = vmatprep.subr.mxu0 0.0
    %1220 = vmatpush1.msra.mxu0 0.0
    %1221 = vmatprep.subr.mxu0 0.0
    %1222 = vmatpush1.msra.mxu0 0.0
    %1223 = vmatprep.subr.mxu0 0.0
    %1224 = vmatpush1.msra.mxu0 0.0
    %1225 = vmatprep.subr.mxu0 0.0
    %1226 = vmatpush1.msra.mxu0 0.0
    %1227 = vmatprep.subr.mxu0 0.0
    %1228 = vmatpush1.msra.mxu0 0.0
    %1229 = vmatprep.subr.mxu0 0.0
    %1230 = vmatpush1.msra.mxu0 0.0
    %1231 = vmatprep.subr.mxu0 0.0
    %1232 = vmatpush1.msra.mxu0 0.0
    %1233 = vmatprep.subr.mxu0 0.0
    %1234 = vmatpush1.msra.mxu0 0.0
    %1235 = vmatprep.subr.mxu0 0.0
    %1236 = vmatpush1.msra.mxu0 0.0
    %1237 = vmatprep.subr.mxu0 0.0
    %1238 = vmatpush1.msra.mxu0 0.0
    %1239 = vmatprep.subr.mxu0 0.0
    %1240 = vmatpush1.msra.mxu0 %v215
    %1241 = vmatprep.subr.mxu0 0.0
    %1242 = vmatpush1.msra.mxu0 %v214
    %1243 = vmatprep.subr.mxu0 0.0
    %1244 = vmatpush1.msra.mxu0 %v213
    %1245 = vmatprep.subr.mxu0 0.0
    %1246 = vmatpush1.msra.mxu0 %v212
    %1247 = vmatprep.subr.mxu0 0.0
    %1248 = vmatpush2.msra.mxu0 0.0
    %1249 = vmatprep.subr.mxu0 0.0
    %1250 = vmatpush2.msra.mxu0 0.0
    %1251 = vmatprep.subr.mxu0 0.0
    %1252 = vmatpush2.msra.mxu0 0.0
    %1253 = vmatprep.subr.mxu0 0.0
    %1254 = vmatpush2.msra.mxu0 0.0
    %1255 = vmatprep.subr.mxu0 0.0
    %1256 = vmatpush2.msra.mxu0 0.0
    %1257 = vmatprep.subr.mxu0 0.0
    %1258 = vmatpush2.msra.mxu0 0.0
    %1259 = vmatprep.subr.mxu0 0.0
    %1260 = vmatpush2.msra.mxu0 0.0
    %1261 = vmatprep.subr.mxu0 0.0
    %1262 = vmatpush2.msra.mxu0 0.0
    %1263 = vmatprep.subr.mxu0 0.0
    %1264 = vmatpush2.msra.mxu0 0.0
    %1265 = vmatprep.subr.mxu0 0.0
    %1266 = vmatpush2.msra.mxu0 0.0
    %1267 = vmatprep.subr.mxu0 0.0
    %1268 = vmatpush2.msra.mxu0 0.0
    %1269 = vmatprep.subr.mxu0 0.0
    %1270 = vmatpush2.msra.mxu0 0.0
    %1271 = vmatprep.subr.mxu0 0.0
    %1272 = vmatpush2.msra.mxu0 0.0
    %1273 = vmatprep.subr.mxu0 0.0
    %1274 = vmatpush2.msra.mxu0 0.0
    %1275 = vmatprep.subr.mxu0 0.0
    %1276 = vmatpush2.msra.mxu0 0.0
    %1277 = vmatprep.subr.mxu0 0.0
    %1278 = vmatpush2.msra.mxu0 0.0
    %1279 = vmatprep.mubr.f32.mxu0 0.0
    %1280 = vmatmul.mubr.f32.gmra.mxu0 %v1042
    %v1281 = vpop.f32.mrf.mxu0
    %v1282 = vadd.f32 %v1212, %v1281
    %v1283 = vpop.f32.mrf.mxu0
    %1284 = vdwg.mxu0
    %v1285 = vadd.f32 %v1282, %v567
    %v1286 = vxor.u32 %v1285, 2147483648
    %v1287 = vmul.f32 %v1286, 1.442695
    %v1288 = vpow.pop %v1287
    %v1289 = vadd.f32 %v1288, 1.0
    %v1290 = vrcp.pop %v1289
    %v1291 = vmul.f32 1.0, %v1290
    %v1292 = vmul.f32 %v1291, 2.0
    %v1293 = vsub.f32 %v1292, 1.0
    %v1294 = vmul.f32 %v1291, %v860
    %1296 = vrot.lane.b32.xlu0 %v1293, 64
    %v1297 = vpop.permute.xlu0 %1296
    %v1299 = vmul.f32 %v1291, %v1297
    %1301 = vrot.lane.b32.xlu0 %v1299, 32
    %v1302 = vpop.permute.xlu0 %1301
    %v1304 = vadd.f32 %v1294, %v1302
    %v1305 = vtanh.pop %v1304
    %1307 = vrot.lane.b32.xlu0 %v1305, 64
    %v1308 = vpop.permute.xlu0 %1307
    %v1310 = vmul.f32 %v1291, %v1308
    %1312 = vrot.lane.b32.xlu0 %v1038, 32
    %v1313 = vpop.permute.xlu0 %1312
    %v1314 = vsel %vm222, %v1313, 0
    %1316 = vmatprep.subr.mxu0 0.0
    %1317 = vmatpush1.msra.mxu0 0.0
    %1318 = vmatprep.subr.mxu0 0.0
    %1319 = vmatpush1.msra.mxu0 0.0
    %1320 = vmatprep.subr.mxu0 0.0
    %1321 = vmatpush1.msra.mxu0 0.0
    %1322 = vmatprep.subr.mxu0 0.0
    %1323 = vmatpush1.msra.mxu0 0.0
    %1324 = vmatprep.subr.mxu0 0.0
    %1325 = vmatpush1.msra.mxu0 0.0
    %1326 = vmatprep.subr.mxu0 0.0
    %1327 = vmatpush1.msra.mxu0 0.0
    %1328 = vmatprep.subr.mxu0 0.0
    %1329 = vmatpush1.msra.mxu0 0.0
    %1330 = vmatprep.subr.mxu0 0.0
    %1331 = vmatpush1.msra.mxu0 0.0
    %1332 = vmatprep.subr.mxu0 0.0
    %1333 = vmatpush1.msra.mxu0 0.0
    %1334 = vmatprep.subr.mxu0 0.0
    %1335 = vmatpush1.msra.mxu0 0.0
    %1336 = vmatprep.subr.mxu0 0.0
    %1337 = vmatpush1.msra.mxu0 0.0
    %1338 = vmatprep.subr.mxu0 0.0
    %1339 = vmatpush1.msra.mxu0 0.0
    %1340 = vmatprep.subr.mxu0 0.0
    %1341 = vmatpush1.msra.mxu0 %v211
    %1342 = vmatprep.subr.mxu0 0.0
    %1343 = vmatpush1.msra.mxu0 %v210
    %1344 = vmatprep.subr.mxu0 0.0
    %1345 = vmatpush1.msra.mxu0 %v209
    %1346 = vmatprep.subr.mxu0 0.0
    %1347 = vmatpush1.msra.mxu0 %v208
    %1348 = vmatprep.subr.mxu0 0.0
    %1349 = vmatpush2.msra.mxu0 0.0
    %1350 = vmatprep.subr.mxu0 0.0
    %1351 = vmatpush2.msra.mxu0 0.0
    %1352 = vmatprep.subr.mxu0 0.0
    %1353 = vmatpush2.msra.mxu0 0.0
    %1354 = vmatprep.subr.mxu0 0.0
    %1355 = vmatpush2.msra.mxu0 0.0
    %1356 = vmatprep.subr.mxu0 0.0
    %1357 = vmatpush2.msra.mxu0 0.0
    %1358 = vmatprep.subr.mxu0 0.0
    %1359 = vmatpush2.msra.mxu0 0.0
    %1360 = vmatprep.subr.mxu0 0.0
    %1361 = vmatpush2.msra.mxu0 0.0
    %1362 = vmatprep.subr.mxu0 0.0
    %1363 = vmatpush2.msra.mxu0 0.0
    %1364 = vmatprep.subr.mxu0 0.0
    %1365 = vmatpush2.msra.mxu0 0.0
    %1366 = vmatprep.subr.mxu0 0.0
    %1367 = vmatpush2.msra.mxu0 0.0
    %1368 = vmatprep.subr.mxu0 0.0
    %1369 = vmatpush2.msra.mxu0 0.0
    %1370 = vmatprep.subr.mxu0 0.0
    %1371 = vmatpush2.msra.mxu0 0.0
    %1372 = vmatprep.subr.mxu0 0.0
    %1373 = vmatpush2.msra.mxu0 0.0
    %1374 = vmatprep.subr.mxu0 0.0
    %1375 = vmatpush2.msra.mxu0 0.0
    %1376 = vmatprep.subr.mxu0 0.0
    %1377 = vmatpush2.msra.mxu0 0.0
    %1378 = vmatprep.subr.mxu0 0.0
    %1379 = vmatpush2.msra.mxu0 0.0
    %1380 = vmatprep.mubr.f32.mxu0 0.0
    %1381 = vmatmul.mubr.f32.gmra.mxu0 %v1314
    %v1382 = vpop.f32.mrf.mxu0
    %v1383 = vadd.f32 0.0, %v1382
    %v1384 = vpop.f32.mrf.mxu0
    %1385 = vdwg.mxu0
    %1386 = vmatprep.subr.mxu0 0.0
    %1387 = vmatpush1.msra.mxu0 0.0
    %1388 = vmatprep.subr.mxu0 0.0
    %1389 = vmatpush1.msra.mxu0 0.0
    %1390 = vmatprep.subr.mxu0 0.0
    %1391 = vmatpush1.msra.mxu0 0.0
    %1392 = vmatprep.subr.mxu0 0.0
    %1393 = vmatpush1.msra.mxu0 0.0
    %1394 = vmatprep.subr.mxu0 0.0
    %1395 = vmatpush1.msra.mxu0 0.0
    %1396 = vmatprep.subr.mxu0 0.0
    %1397 = vmatpush1.msra.mxu0 0.0
    %1398 = vmatprep.subr.mxu0 0.0
    %1399 = vmatpush1.msra.mxu0 0.0
    %1400 = vmatprep.subr.mxu0 0.0
    %1401 = vmatpush1.msra.mxu0 0.0
    %1402 = vmatprep.subr.mxu0 0.0
    %1403 = vmatpush1.msra.mxu0 0.0
    %1404 = vmatprep.subr.mxu0 0.0
    %1405 = vmatpush1.msra.mxu0 0.0
    %1406 = vmatprep.subr.mxu0 0.0
    %1407 = vmatpush1.msra.mxu0 0.0
    %1408 = vmatprep.subr.mxu0 0.0
    %1409 = vmatpush1.msra.mxu0 0.0
    %1410 = vmatprep.subr.mxu0 0.0
    %1411 = vmatpush1.msra.mxu0 %v219
    %1412 = vmatprep.subr.mxu0 0.0
    %1413 = vmatpush1.msra.mxu0 %v218
    %1414 = vmatprep.subr.mxu0 0.0
    %1415 = vmatpush1.msra.mxu0 %v217
    %1416 = vmatprep.subr.mxu0 0.0
    %1417 = vmatpush1.msra.mxu0 %v216
    %1418 = vmatprep.subr.mxu0 0.0
    %1419 = vmatpush2.msra.mxu0 0.0
    %1420 = vmatprep.subr.mxu0 0.0
    %1421 = vmatpush2.msra.mxu0 0.0
    %1422 = vmatprep.subr.mxu0 0.0
    %1423 = vmatpush2.msra.mxu0 0.0
    %1424 = vmatprep.subr.mxu0 0.0
    %1425 = vmatpush2.msra.mxu0 0.0
    %1426 = vmatprep.subr.mxu0 0.0
    %1427 = vmatpush2.msra.mxu0 0.0
    %1428 = vmatprep.subr.mxu0 0.0
    %1429 = vmatpush2.msra.mxu0 0.0
    %1430 = vmatprep.subr.mxu0 0.0
    %1431 = vmatpush2.msra.mxu0 0.0
    %1432 = vmatprep.subr.mxu0 0.0
    %1433 = vmatpush2.msra.mxu0 0.0
    %1434 = vmatprep.subr.mxu0 0.0
    %1435 = vmatpush2.msra.mxu0 0.0
    %1436 = vmatprep.subr.mxu0 0.0
    %1437 = vmatpush2.msra.mxu0 0.0
    %1438 = vmatprep.subr.mxu0 0.0
    %1439 = vmatpush2.msra.mxu0 0.0
    %1440 = vmatprep.subr.mxu0 0.0
    %1441 = vmatpush2.msra.mxu0 0.0
    %1442 = vmatprep.subr.mxu0 0.0
    %1443 = vmatpush2.msra.mxu0 0.0
    %1444 = vmatprep.subr.mxu0 0.0
    %1445 = vmatpush2.msra.mxu0 0.0
    %1446 = vmatprep.subr.mxu0 0.0
    %1447 = vmatpush2.msra.mxu0 0.0
    %1448 = vmatprep.subr.mxu0 0.0
    %1449 = vmatpush2.msra.mxu0 0.0
    %1450 = vmatprep.mubr.f32.mxu0 0.0
    %1451 = vmatmul.mubr.f32.gmra.mxu0 %v1143
    %v1452 = vpop.f32.mrf.mxu0
    %v1453 = vadd.f32 %v1383, %v1452
    %v1454 = vpop.f32.mrf.mxu0
    %1455 = vdwg.mxu0
    %v1456 = vadd.f32 %v1453, %v1011
    %v1457 = vxor.u32 %v1456, 2147483648
    %v1458 = vmul.f32 %v1457, 1.442695
    %v1459 = vpow.pop %v1458
    %v1460 = vadd.f32 %v1459, 1.0
    %v1461 = vrcp.pop %v1460
    %v1462 = vmul.f32 1.0, %v1461
    %v1463 = vmul.f32 %v1462, 2.0
    %v1464 = vsub.f32 %v1463, 1.0
    %v1465 = vmul.f32 %v1462, %v1032
    %1467 = vrot.lane.b32.xlu0 %v1464, 64
    %v1468 = vpop.permute.xlu0 %1467
    %v1470 = vmul.f32 %v1462, %v1468
    %1472 = vrot.lane.b32.xlu0 %v1470, 32
    %v1473 = vpop.permute.xlu0 %1472
    %v1475 = vadd.f32 %v1465, %v1473
    %v1476 = vtanh.pop %v1475
    %1478 = vrot.lane.b32.xlu0 %v1476, 64
    %v1479 = vpop.permute.xlu0 %1478
    %v1481 = vmul.f32 %v1462, %v1479
    %1483 = vrot.lane.b32.xlu0 %v1139, 32
    %v1484 = vpop.permute.xlu0 %1483
    %v1485 = vsel %vm222, %v1484, 0
    %1487 = vmatprep.subr.mxu0 0.0
    %1488 = vmatpush1.msra.mxu0 0.0
    %1489 = vmatprep.subr.mxu0 0.0
    %1490 = vmatpush1.msra.mxu0 0.0
    %1491 = vmatprep.subr.mxu0 0.0
    %1492 = vmatpush1.msra.mxu0 0.0
    %1493 = vmatprep.subr.mxu0 0.0
    %1494 = vmatpush1.msra.mxu0 0.0
    %1495 = vmatprep.subr.mxu0 0.0
    %1496 = vmatpush1.msra.mxu0 0.0
    %1497 = vmatprep.subr.mxu0 0.0
    %1498 = vmatpush1.msra.mxu0 0.0
    %1499 = vmatprep.subr.mxu0 0.0
    %1500 = vmatpush1.msra.mxu0 0.0
    %1501 = vmatprep.subr.mxu0 0.0
    %1502 = vmatpush1.msra.mxu0 0.0
    %1503 = vmatprep.subr.mxu0 0.0
    %1504 = vmatpush1.msra.mxu0 0.0
    %1505 = vmatprep.subr.mxu0 0.0
    %1506 = vmatpush1.msra.mxu0 0.0
    %1507 = vmatprep.subr.mxu0 0.0
    %1508 = vmatpush1.msra.mxu0 0.0
    %1509 = vmatprep.subr.mxu0 0.0
    %1510 = vmatpush1.msra.mxu0 0.0
    %1511 = vmatprep.subr.mxu0 0.0
    %1512 = vmatpush1.msra.mxu0 %v203
    %1513 = vmatprep.subr.mxu0 0.0
    %1514 = vmatpush1.msra.mxu0 %v202
    %1515 = vmatprep.subr.mxu0 0.0
    %1516 = vmatpush1.msra.mxu0 %v201
    %1517 = vmatprep.subr.mxu0 0.0
    %1518 = vmatpush1.msra.mxu0 %v200
    %1519 = vmatprep.subr.mxu0 0.0
    %1520 = vmatpush2.msra.mxu0 0.0
    %1521 = vmatprep.subr.mxu0 0.0
    %1522 = vmatpush2.msra.mxu0 0.0
    %1523 = vmatprep.subr.mxu0 0.0
    %1524 = vmatpush2.msra.mxu0 0.0
    %1525 = vmatprep.subr.mxu0 0.0
    %1526 = vmatpush2.msra.mxu0 0.0
    %1527 = vmatprep.subr.mxu0 0.0
    %1528 = vmatpush2.msra.mxu0 0.0
    %1529 = vmatprep.subr.mxu0 0.0
    %1530 = vmatpush2.msra.mxu0 0.0
    %1531 = vmatprep.subr.mxu0 0.0
    %1532 = vmatpush2.msra.mxu0 0.0
    %1533 = vmatprep.subr.mxu0 0.0
    %1534 = vmatpush2.msra.mxu0 0.0
    %1535 = vmatprep.subr.mxu0 0.0
    %1536 = vmatpush2.msra.mxu0 0.0
    %1537 = vmatprep.subr.mxu0 0.0
    %1538 = vmatpush2.msra.mxu0 0.0
    %1539 = vmatprep.subr.mxu0 0.0
    %1540 = vmatpush2.msra.mxu0 0.0
    %1541 = vmatprep.subr.mxu0 0.0
    %1542 = vmatpush2.msra.mxu0 0.0
    %1543 = vmatprep.subr.mxu0 0.0
    %1544 = vmatpush2.msra.mxu0 0.0
    %1545 = vmatprep.subr.mxu0 0.0
    %1546 = vmatpush2.msra.mxu0 0.0
    %1547 = vmatprep.subr.mxu0 0.0
    %1548 = vmatpush2.msra.mxu0 0.0
    %1549 = vmatprep.subr.mxu0 0.0
    %1550 = vmatpush2.msra.mxu0 0.0
    %1551 = vmatprep.mubr.f32.mxu0 0.0
    %1552 = vmatmul.mubr.f32.gmra.mxu0 %v1485
    %v1553 = vpop.f32.mrf.mxu0
    %v1554 = vadd.f32 0.0, %v1553
    %v1555 = vpop.f32.mrf.mxu0
    %1556 = vdwg.mxu0
    %v1557 = vadd.f32 %v182, %v1554
    %v1558 = vxor.u32 %v1557, 2147483648
    %v1559 = vmul.f32 %v1558, 1.442695
    %v1560 = vpow.pop %v1559
    %v1561 = vadd.f32 %v1560, 1.0
    %v1562 = vrcp.pop %v1561
    %v1563 = vmul.f32 1.0, %v1562
    %v1564 = vmul.f32 %v1563, 2.0
    %v1565 = vsub.f32 %v1564, 1.0
    %v1566 = vmul.f32 %v1563, %v1133
    %1568 = vrot.lane.b32.xlu0 %v1565, 64
    %v1569 = vpop.permute.xlu0 %1568
    %v1571 = vmul.f32 %v1563, %v1569
    %1573 = vrot.lane.b32.xlu0 %v1571, 32
    %v1574 = vpop.permute.xlu0 %1573
    %v1576 = vadd.f32 %v1566, %v1574
    %v1577 = vtanh.pop %v1576
    %1579 = vrot.lane.b32.xlu0 %v1577, 64
    %v1580 = vpop.permute.xlu0 %1579
    %v1582 = vmul.f32 %v1563, %v1580
    %1584 = vrot.lane.b32.xlu0 %v1310, 32
    %v1585 = vpop.permute.xlu0 %1584
    %v1586 = vsel %vm222, %v1585, 0
    %1588 = vmatprep.subr.mxu0 0.0
    %1589 = vmatpush1.msra.mxu0 0.0
    %1590 = vmatprep.subr.mxu0 0.0
    %1591 = vmatpush1.msra.mxu0 0.0
    %1592 = vmatprep.subr.mxu0 0.0
    %1593 = vmatpush1.msra.mxu0 0.0
    %1594 = vmatprep.subr.mxu0 0.0
    %1595 = vmatpush1.msra.mxu0 0.0
    %1596 = vmatprep.subr.mxu0 0.0
    %1597 = vmatpush1.msra.mxu0 0.0
    %1598 = vmatprep.subr.mxu0 0.0
    %1599 = vmatpush1.msra.mxu0 0.0
    %1600 = vmatprep.subr.mxu0 0.0
    %1601 = vmatpush1.msra.mxu0 0.0
    %1602 = vmatprep.subr.mxu0 0.0
    %1603 = vmatpush1.msra.mxu0 0.0
    %1604 = vmatprep.subr.mxu0 0.0
    %1605 = vmatpush1.msra.mxu0 0.0
    %1606 = vmatprep.subr.mxu0 0.0
    %1607 = vmatpush1.msra.mxu0 0.0
    %1608 = vmatprep.subr.mxu0 0.0
    %1609 = vmatpush1.msra.mxu0 0.0
    %1610 = vmatprep.subr.mxu0 0.0
    %1611 = vmatpush1.msra.mxu0 0.0
    %1612 = vmatprep.subr.mxu0 0.0
    %1613 = vmatpush1.msra.mxu0 %v207
    %1614 = vmatprep.subr.mxu0 0.0
    %1615 = vmatpush1.msra.mxu0 %v206
    %1616 = vmatprep.subr.mxu0 0.0
    %1617 = vmatpush1.msra.mxu0 %v205
    %1618 = vmatprep.subr.mxu0 0.0
    %1619 = vmatpush1.msra.mxu0 %v204
    %1620 = vmatprep.subr.mxu0 0.0
    %1621 = vmatpush2.msra.mxu0 0.0
    %1622 = vmatprep.subr.mxu0 0.0
    %1623 = vmatpush2.msra.mxu0 0.0
    %1624 = vmatprep.subr.mxu0 0.0
    %1625 = vmatpush2.msra.mxu0 0.0
    %1626 = vmatprep.subr.mxu0 0.0
    %1627 = vmatpush2.msra.mxu0 0.0
    %1628 = vmatprep.subr.mxu0 0.0
    %1629 = vmatpush2.msra.mxu0 0.0
    %1630 = vmatprep.subr.mxu0 0.0
    %1631 = vmatpush2.msra.mxu0 0.0
    %1632 = vmatprep.subr.mxu0 0.0
    %1633 = vmatpush2.msra.mxu0 0.0
    %1634 = vmatprep.subr.mxu0 0.0
    %1635 = vmatpush2.msra.mxu0 0.0
    %1636 = vmatprep.subr.mxu0 0.0
    %1637 = vmatpush2.msra.mxu0 0.0
    %1638 = vmatprep.subr.mxu0 0.0
    %1639 = vmatpush2.msra.mxu0 0.0
    %1640 = vmatprep.subr.mxu0 0.0
    %1641 = vmatpush2.msra.mxu0 0.0
    %1642 = vmatprep.subr.mxu0 0.0
    %1643 = vmatpush2.msra.mxu0 0.0
    %1644 = vmatprep.subr.mxu0 0.0
    %1645 = vmatpush2.msra.mxu0 0.0
    %1646 = vmatprep.subr.mxu0 0.0
    %1647 = vmatpush2.msra.mxu0 0.0
    %1648 = vmatprep.subr.mxu0 0.0
    %1649 = vmatpush2.msra.mxu0 0.0
    %1650 = vmatprep.subr.mxu0 0.0
    %1651 = vmatpush2.msra.mxu0 0.0
    %1652 = vmatprep.mubr.f32.mxu0 0.0
    %1653 = vmatmul.mubr.f32.gmra.mxu0 %v1586
    %v1654 = vpop.f32.mrf.mxu0
    %v1655 = vadd.f32 0.0, %v1654
    %v1656 = vpop.f32.mrf.mxu0
    %1657 = vdwg.mxu0
    %1658 = vmatprep.subr.mxu0 0.0
    %1659 = vmatpush1.msra.mxu0 0.0
    %1660 = vmatprep.subr.mxu0 0.0
    %1661 = vmatpush1.msra.mxu0 0.0
    %1662 = vmatprep.subr.mxu0 0.0
    %1663 = vmatpush1.msra.mxu0 0.0
    %1664 = vmatprep.subr.mxu0 0.0
    %1665 = vmatpush1.msra.mxu0 0.0
    %1666 = vmatprep.subr.mxu0 0.0
    %1667 = vmatpush1.msra.mxu0 0.0
    %1668 = vmatprep.subr.mxu0 0.0
    %1669 = vmatpush1.msra.mxu0 0.0
    %1670 = vmatprep.subr.mxu0 0.0
    %1671 = vmatpush1.msra.mxu0 0.0
    %1672 = vmatprep.subr.mxu0 0.0
    %1673 = vmatpush1.msra.mxu0 0.0
    %1674 = vmatprep.subr.mxu0 0.0
    %1675 = vmatpush1.msra.mxu0 0.0
    %1676 = vmatprep.subr.mxu0 0.0
    %1677 = vmatpush1.msra.mxu0 0.0
    %1678 = vmatprep.subr.mxu0 0.0
    %1679 = vmatpush1.msra.mxu0 0.0
    %1680 = vmatprep.subr.mxu0 0.0
    %1681 = vmatpush1.msra.mxu0 0.0
    %1682 = vmatprep.subr.mxu0 0.0
    %1683 = vmatpush1.msra.mxu0 %v215
    %1684 = vmatprep.subr.mxu0 0.0
    %1685 = vmatpush1.msra.mxu0 %v214
    %1686 = vmatprep.subr.mxu0 0.0
    %1687 = vmatpush1.msra.mxu0 %v213
    %1688 = vmatprep.subr.mxu0 0.0
    %1689 = vmatpush1.msra.mxu0 %v212
    %1690 = vmatprep.subr.mxu0 0.0
    %1691 = vmatpush2.msra.mxu0 0.0
    %1692 = vmatprep.subr.mxu0 0.0
    %1693 = vmatpush2.msra.mxu0 0.0
    %1694 = vmatprep.subr.mxu0 0.0
    %1695 = vmatpush2.msra.mxu0 0.0
    %1696 = vmatprep.subr.mxu0 0.0
    %1697 = vmatpush2.msra.mxu0 0.0
    %1698 = vmatprep.subr.mxu0 0.0
    %1699 = vmatpush2.msra.mxu0 0.0
    %1700 = vmatprep.subr.mxu0 0.0
    %1701 = vmatpush2.msra.mxu0 0.0
    %1702 = vmatprep.subr.mxu0 0.0
    %1703 = vmatpush2.msra.mxu0 0.0
    %1704 = vmatprep.subr.mxu0 0.0
    %1705 = vmatpush2.msra.mxu0 0.0
    %1706 = vmatprep.subr.mxu0 0.0
    %1707 = vmatpush2.msra.mxu0 0.0
    %1708 = vmatprep.subr.mxu0 0.0
    %1709 = vmatpush2.msra.mxu0 0.0
    %1710 = vmatprep.subr.mxu0 0.0
    %1711 = vmatpush2.msra.mxu0 0.0
    %1712 = vmatprep.subr.mxu0 0.0
    %1713 = vmatpush2.msra.mxu0 0.0
    %1714 = vmatprep.subr.mxu0 0.0
    %1715 = vmatpush2.msra.mxu0 0.0
    %1716 = vmatprep.subr.mxu0 0.0
    %1717 = vmatpush2.msra.mxu0 0.0
    %1718 = vmatprep.subr.mxu0 0.0
    %1719 = vmatpush2.msra.mxu0 0.0
    %1720 = vmatprep.subr.mxu0 0.0
    %1721 = vmatpush2.msra.mxu0 0.0
    %1722 = vmatprep.mubr.f32.mxu0 0.0
    %1723 = vmatmul.mubr.f32.gmra.mxu0 %v1485
    %v1724 = vpop.f32.mrf.mxu0
    %v1725 = vadd.f32 %v1655, %v1724
    %v1726 = vpop.f32.mrf.mxu0
    %1727 = vdwg.mxu0
    %v1728 = vadd.f32 %v1725, %v567
    %v1729 = vxor.u32 %v1728, 2147483648
    %v1730 = vmul.f32 %v1729, 1.442695
    %v1731 = vpow.pop %v1730
    %v1732 = vadd.f32 %v1731, 1.0
    %v1733 = vrcp.pop %v1732
    %v1734 = vmul.f32 1.0, %v1733
    %v1735 = vmul.f32 %v1734, 2.0
    %v1736 = vsub.f32 %v1735, 1.0
    %v1737 = vmul.f32 %v1734, %v1304
    %1739 = vrot.lane.b32.xlu0 %v1736, 64
    %v1740 = vpop.permute.xlu0 %1739
    %v1742 = vmul.f32 %v1734, %v1740
    %1744 = vrot.lane.b32.xlu0 %v1742, 32
    %v1745 = vpop.permute.xlu0 %1744
    %v1747 = vadd.f32 %v1737, %v1745
    %v1748 = vtanh.pop %v1747
    %1750 = vrot.lane.b32.xlu0 %v1748, 64
    %v1751 = vpop.permute.xlu0 %1750
    %v1753 = vmul.f32 %v1734, %v1751
    %1755 = vrot.lane.b32.xlu0 %v1481, 32
    %v1756 = vpop.permute.xlu0 %1755
    %v1757 = vsel %vm222, %v1756, 0
    %1759 = vmatprep.subr.mxu0 0.0
    %1760 = vmatpush1.msra.mxu0 0.0
    %1761 = vmatprep.subr.mxu0 0.0
    %1762 = vmatpush1.msra.mxu0 0.0
    %1763 = vmatprep.subr.mxu0 0.0
    %1764 = vmatpush1.msra.mxu0 0.0
    %1765 = vmatprep.subr.mxu0 0.0
    %1766 = vmatpush1.msra.mxu0 0.0
    %1767 = vmatprep.subr.mxu0 0.0
    %1768 = vmatpush1.msra.mxu0 0.0
    %1769 = vmatprep.subr.mxu0 0.0
    %1770 = vmatpush1.msra.mxu0 0.0
    %1771 = vmatprep.subr.mxu0 0.0
    %1772 = vmatpush1.msra.mxu0 0.0
    %1773 = vmatprep.subr.mxu0 0.0
    %1774 = vmatpush1.msra.mxu0 0.0
    %1775 = vmatprep.subr.mxu0 0.0
    %1776 = vmatpush1.msra.mxu0 0.0
    %1777 = vmatprep.subr.mxu0 0.0
    %1778 = vmatpush1.msra.mxu0 0.0
    %1779 = vmatprep.subr.mxu0 0.0
    %1780 = vmatpush1.msra.mxu0 0.0
    %1781 = vmatprep.subr.mxu0 0.0
    %1782 = vmatpush1.msra.mxu0 0.0
    %1783 = vmatprep.subr.mxu0 0.0
    %1784 = vmatpush1.msra.mxu0 %v211
    %1785 = vmatprep.subr.mxu0 0.0
    %1786 = vmatpush1.msra.mxu0 %v210
    %1787 = vmatprep.subr.mxu0 0.0
    %1788 = vmatpush1.msra.mxu0 %v209
    %1789 = vmatprep.subr.mxu0 0.0
    %1790 = vmatpush1.msra.mxu0 %v208
    %1791 = vmatprep.subr.mxu0 0.0
    %1792 = vmatpush2.msra.mxu0 0.0
    %1793 = vmatprep.subr.mxu0 0.0
    %1794 = vmatpush2.msra.mxu0 0.0
    %1795 = vmatprep.subr.mxu0 0.0
    %1796 = vmatpush2.msra.mxu0 0.0
    %1797 = vmatprep.subr.mxu0 0.0
    %1798 = vmatpush2.msra.mxu0 0.0
    %1799 = vmatprep.subr.mxu0 0.0
    %1800 = vmatpush2.msra.mxu0 0.0
    %1801 = vmatprep.subr.mxu0 0.0
    %1802 = vmatpush2.msra.mxu0 0.0
    %1803 = vmatprep.subr.mxu0 0.0
    %1804 = vmatpush2.msra.mxu0 0.0
    %1805 = vmatprep.subr.mxu0 0.0
    %1806 = vmatpush2.msra.mxu0 0.0
    %1807 = vmatprep.subr.mxu0 0.0
    %1808 = vmatpush2.msra.mxu0 0.0
    %1809 = vmatprep.subr.mxu0 0.0
    %1810 = vmatpush2.msra.mxu0 0.0
    %1811 = vmatprep.subr.mxu0 0.0
    %1812 = vmatpush2.msra.mxu0 0.0
    %1813 = vmatprep.subr.mxu0 0.0
    %1814 = vmatpush2.msra.mxu0 0.0
    %1815 = vmatprep.subr.mxu0 0.0
    %1816 = vmatpush2.msra.mxu0 0.0
    %1817 = vmatprep.subr.mxu0 0.0
    %1818 = vmatpush2.msra.mxu0 0.0
    %1819 = vmatprep.subr.mxu0 0.0
    %1820 = vmatpush2.msra.mxu0 0.0
    %1821 = vmatprep.subr.mxu0 0.0
    %1822 = vmatpush2.msra.mxu0 0.0
    %1823 = vmatprep.mubr.f32.mxu0 0.0
    %1824 = vmatmul.mubr.f32.gmra.mxu0 %v1757
    %v1825 = vpop.f32.mrf.mxu0
    %v1826 = vadd.f32 0.0, %v1825
    %v1827 = vpop.f32.mrf.mxu0
    %1828 = vdwg.mxu0
    %1829 = vmatprep.subr.mxu0 0.0
    %1830 = vmatpush1.msra.mxu0 0.0
    %1831 = vmatprep.subr.mxu0 0.0
    %1832 = vmatpush1.msra.mxu0 0.0
    %1833 = vmatprep.subr.mxu0 0.0
    %1834 = vmatpush1.msra.mxu0 0.0
    %1835 = vmatprep.subr.mxu0 0.0
    %1836 = vmatpush1.msra.mxu0 0.0
    %1837 = vmatprep.subr.mxu0 0.0
    %1838 = vmatpush1.msra.mxu0 0.0
    %1839 = vmatprep.subr.mxu0 0.0
    %1840 = vmatpush1.msra.mxu0 0.0
    %1841 = vmatprep.subr.mxu0 0.0
    %1842 = vmatpush1.msra.mxu0 0.0
    %1843 = vmatprep.subr.mxu0 0.0
    %1844 = vmatpush1.msra.mxu0 0.0
    %1845 = vmatprep.subr.mxu0 0.0
    %1846 = vmatpush1.msra.mxu0 0.0
    %1847 = vmatprep.subr.mxu0 0.0
    %1848 = vmatpush1.msra.mxu0 0.0
    %1849 = vmatprep.subr.mxu0 0.0
    %1850 = vmatpush1.msra.mxu0 0.0
    %1851 = vmatprep.subr.mxu0 0.0
    %1852 = vmatpush1.msra.mxu0 0.0
    %1853 = vmatprep.subr.mxu0 0.0
    %1854 = vmatpush1.msra.mxu0 %v219
    %1855 = vmatprep.subr.mxu0 0.0
    %1856 = vmatpush1.msra.mxu0 %v218
    %1857 = vmatprep.subr.mxu0 0.0
    %1858 = vmatpush1.msra.mxu0 %v217
    %1859 = vmatprep.subr.mxu0 0.0
    %1860 = vmatpush1.msra.mxu0 %v216
    %1861 = vmatprep.subr.mxu0 0.0
    %1862 = vmatpush2.msra.mxu0 0.0
    %1863 = vmatprep.subr.mxu0 0.0
    %1864 = vmatpush2.msra.mxu0 0.0
    %1865 = vmatprep.subr.mxu0 0.0
    %1866 = vmatpush2.msra.mxu0 0.0
    %1867 = vmatprep.subr.mxu0 0.0
    %1868 = vmatpush2.msra.mxu0 0.0
    %1869 = vmatprep.subr.mxu0 0.0
    %1870 = vmatpush2.msra.mxu0 0.0
    %1871 = vmatprep.subr.mxu0 0.0
    %1872 = vmatpush2.msra.mxu0 0.0
    %1873 = vmatprep.subr.mxu0 0.0
    %1874 = vmatpush2.msra.mxu0 0.0
    %1875 = vmatprep.subr.mxu0 0.0
    %1876 = vmatpush2.msra.mxu0 0.0
    %1877 = vmatprep.subr.mxu0 0.0
    %1878 = vmatpush2.msra.mxu0 0.0
    %1879 = vmatprep.subr.mxu0 0.0
    %1880 = vmatpush2.msra.mxu0 0.0
    %1881 = vmatprep.subr.mxu0 0.0
    %1882 = vmatpush2.msra.mxu0 0.0
    %1883 = vmatprep.subr.mxu0 0.0
    %1884 = vmatpush2.msra.mxu0 0.0
    %1885 = vmatprep.subr.mxu0 0.0
    %1886 = vmatpush2.msra.mxu0 0.0
    %1887 = vmatprep.subr.mxu0 0.0
    %1888 = vmatpush2.msra.mxu0 0.0
    %1889 = vmatprep.subr.mxu0 0.0
    %1890 = vmatpush2.msra.mxu0 0.0
    %1891 = vmatprep.subr.mxu0 0.0
    %1892 = vmatpush2.msra.mxu0 0.0
    %1893 = vmatprep.mubr.f32.mxu0 0.0
    %1894 = vmatmul.mubr.f32.gmra.mxu0 %v1586
    %v1895 = vpop.f32.mrf.mxu0
    %v1896 = vadd.f32 %v1826, %v1895
    %v1897 = vpop.f32.mrf.mxu0
    %1898 = vdwg.mxu0
    %v1899 = vadd.f32 %v1896, %v1011
    %v1900 = vxor.u32 %v1899, 2147483648
    %v1901 = vmul.f32 %v1900, 1.442695
    %v1902 = vpow.pop %v1901
    %v1903 = vadd.f32 %v1902, 1.0
    %v1904 = vrcp.pop %v1903
    %v1905 = vmul.f32 1.0, %v1904
    %v1906 = vmul.f32 %v1905, 2.0
    %v1907 = vsub.f32 %v1906, 1.0
    %v1908 = vmul.f32 %v1905, %v1475
    %1910 = vrot.lane.b32.xlu0 %v1907, 64
    %v1911 = vpop.permute.xlu0 %1910
    %v1913 = vmul.f32 %v1905, %v1911
    %1915 = vrot.lane.b32.xlu0 %v1913, 32
    %v1916 = vpop.permute.xlu0 %1915
    %v1918 = vadd.f32 %v1908, %v1916
    %v1919 = vtanh.pop %v1918
    %1921 = vrot.lane.b32.xlu0 %v1919, 64
    %v1922 = vpop.permute.xlu0 %1921
    %v1924 = vmul.f32 %v1905, %v1922
    %1926 = vrot.lane.b32.xlu0 %v1582, 32
    %v1927 = vpop.permute.xlu0 %1926
    %v1928 = vsel %vm222, %v1927, 0
    %1930 = vmatprep.subr.mxu0 0.0
    %1931 = vmatpush1.msra.mxu0 0.0
    %1932 = vmatprep.subr.mxu0 0.0
    %1933 = vmatpush1.msra.mxu0 0.0
    %1934 = vmatprep.subr.mxu0 0.0
    %1935 = vmatpush1.msra.mxu0 0.0
    %1936 = vmatprep.subr.mxu0 0.0
    %1937 = vmatpush1.msra.mxu0 0.0
    %1938 = vmatprep.subr.mxu0 0.0
    %1939 = vmatpush1.msra.mxu0 0.0
    %1940 = vmatprep.subr.mxu0 0.0
    %1941 = vmatpush1.msra.mxu0 0.0
    %1942 = vmatprep.subr.mxu0 0.0
    %1943 = vmatpush1.msra.mxu0 0.0
    %1944 = vmatprep.subr.mxu0 0.0
    %1945 = vmatpush1.msra.mxu0 0.0
    %1946 = vmatprep.subr.mxu0 0.0
    %1947 = vmatpush1.msra.mxu0 0.0
    %1948 = vmatprep.subr.mxu0 0.0
    %1949 = vmatpush1.msra.mxu0 0.0
    %1950 = vmatprep.subr.mxu0 0.0
    %1951 = vmatpush1.msra.mxu0 0.0
    %1952 = vmatprep.subr.mxu0 0.0
    %1953 = vmatpush1.msra.mxu0 0.0
    %1954 = vmatprep.subr.mxu0 0.0
    %1955 = vmatpush1.msra.mxu0 %v203
    %1956 = vmatprep.subr.mxu0 0.0
    %1957 = vmatpush1.msra.mxu0 %v202
    %1958 = vmatprep.subr.mxu0 0.0
    %1959 = vmatpush1.msra.mxu0 %v201
    %1960 = vmatprep.subr.mxu0 0.0
    %1961 = vmatpush1.msra.mxu0 %v200
    %1962 = vmatprep.subr.mxu0 0.0
    %1963 = vmatpush2.msra.mxu0 0.0
    %1964 = vmatprep.subr.mxu0 0.0
    %1965 = vmatpush2.msra.mxu0 0.0
    %1966 = vmatprep.subr.mxu0 0.0
    %1967 = vmatpush2.msra.mxu0 0.0
    %1968 = vmatprep.subr.mxu0 0.0
    %1969 = vmatpush2.msra.mxu0 0.0
    %1970 = vmatprep.subr.mxu0 0.0
    %1971 = vmatpush2.msra.mxu0 0.0
    %1972 = vmatprep.subr.mxu0 0.0
    %1973 = vmatpush2.msra.mxu0 0.0
    %1974 = vmatprep.subr.mxu0 0.0
    %1975 = vmatpush2.msra.mxu0 0.0
    %1976 = vmatprep.subr.mxu0 0.0
    %1977 = vmatpush2.msra.mxu0 0.0
    %1978 = vmatprep.subr.mxu0 0.0
    %1979 = vmatpush2.msra.mxu0 0.0
    %1980 = vmatprep.subr.mxu0 0.0
    %1981 = vmatpush2.msra.mxu0 0.0
    %1982 = vmatprep.subr.mxu0 0.0
    %1983 = vmatpush2.msra.mxu0 0.0
    %1984 = vmatprep.subr.mxu0 0.0
    %1985 = vmatpush2.msra.mxu0 0.0
    %1986 = vmatprep.subr.mxu0 0.0
    %1987 = vmatpush2.msra.mxu0 0.0
    %1988 = vmatprep.subr.mxu0 0.0
    %1989 = vmatpush2.msra.mxu0 0.0
    %1990 = vmatprep.subr.mxu0 0.0
    %1991 = vmatpush2.msra.mxu0 0.0
    %1992 = vmatprep.subr.mxu0 0.0
    %1993 = vmatpush2.msra.mxu0 0.0
    %1994 = vmatprep.mubr.f32.mxu0 0.0
    %1995 = vmatmul.mubr.f32.gmra.mxu0 %v1928
    %v1996 = vpop.f32.mrf.mxu0
    %v1997 = vadd.f32 0.0, %v1996
    %v1998 = vpop.f32.mrf.mxu0
    %1999 = vdwg.mxu0
    %v2000 = vadd.f32 %v187, %v1997
    %v2001 = vxor.u32 %v2000, 2147483648
    %v2002 = vmul.f32 %v2001, 1.442695
    %v2003 = vpow.pop %v2002
    %v2004 = vadd.f32 %v2003, 1.0
    %v2005 = vrcp.pop %v2004
    %v2006 = vmul.f32 1.0, %v2005
    %v2007 = vmul.f32 %v2006, 2.0
    %v2008 = vsub.f32 %v2007, 1.0
    %v2009 = vmul.f32 %v2006, %v1576
    %2011 = vrot.lane.b32.xlu0 %v2008, 64
    %v2012 = vpop.permute.xlu0 %2011
    %v2014 = vmul.f32 %v2006, %v2012
    %2016 = vrot.lane.b32.xlu0 %v2014, 32
    %v2017 = vpop.permute.xlu0 %2016
    %v2019 = vadd.f32 %v2009, %v2017
    %v2020 = vtanh.pop %v2019
    %2022 = vrot.lane.b32.xlu0 %v2020, 64
    %v2023 = vpop.permute.xlu0 %2022
    %v2025 = vmul.f32 %v2006, %v2023
    %2027 = vrot.lane.b32.xlu0 %v1753, 32
    %v2028 = vpop.permute.xlu0 %2027
    %v2029 = vsel %vm222, %v2028, 0
    %2031 = vmatprep.subr.mxu0 0.0
    %2032 = vmatpush1.msra.mxu0 0.0
    %2033 = vmatprep.subr.mxu0 0.0
    %2034 = vmatpush1.msra.mxu0 0.0
    %2035 = vmatprep.subr.mxu0 0.0
    %2036 = vmatpush1.msra.mxu0 0.0
    %2037 = vmatprep.subr.mxu0 0.0
    %2038 = vmatpush1.msra.mxu0 0.0
    %2039 = vmatprep.subr.mxu0 0.0
    %2040 = vmatpush1.msra.mxu0 0.0
    %2041 = vmatprep.subr.mxu0 0.0
    %2042 = vmatpush1.msra.mxu0 0.0
    %2043 = vmatprep.subr.mxu0 0.0
    %2044 = vmatpush1.msra.mxu0 0.0
    %2045 = vmatprep.subr.mxu0 0.0
    %2046 = vmatpush1.msra.mxu0 0.0
    %2047 = vmatprep.subr.mxu0 0.0
    %2048 = vmatpush1.msra.mxu0 0.0
    %2049 = vmatprep.subr.mxu0 0.0
    %2050 = vmatpush1.msra.mxu0 0.0
    %2051 = vmatprep.subr.mxu0 0.0
    %2052 = vmatpush1.msra.mxu0 0.0
    %2053 = vmatprep.subr.mxu0 0.0
    %2054 = vmatpush1.msra.mxu0 0.0
    %2055 = vmatprep.subr.mxu0 0.0
    %2056 = vmatpush1.msra.mxu0 %v207
    %2057 = vmatprep.subr.mxu0 0.0
    %2058 = vmatpush1.msra.mxu0 %v206
    %2059 = vmatprep.subr.mxu0 0.0
    %2060 = vmatpush1.msra.mxu0 %v205
    %2061 = vmatprep.subr.mxu0 0.0
    %2062 = vmatpush1.msra.mxu0 %v204
    %2063 = vmatprep.subr.mxu0 0.0
    %2064 = vmatpush2.msra.mxu0 0.0
    %2065 = vmatprep.subr.mxu0 0.0
    %2066 = vmatpush2.msra.mxu0 0.0
    %2067 = vmatprep.subr.mxu0 0.0
    %2068 = vmatpush2.msra.mxu0 0.0
    %2069 = vmatprep.subr.mxu0 0.0
    %2070 = vmatpush2.msra.mxu0 0.0
    %2071 = vmatprep.subr.mxu0 0.0
    %2072 = vmatpush2.msra.mxu0 0.0
    %2073 = vmatprep.subr.mxu0 0.0
    %2074 = vmatpush2.msra.mxu0 0.0
    %2075 = vmatprep.subr.mxu0 0.0
    %2076 = vmatpush2.msra.mxu0 0.0
    %2077 = vmatprep.subr.mxu0 0.0
    %2078 = vmatpush2.msra.mxu0 0.0
    %2079 = vmatprep.subr.mxu0 0.0
    %2080 = vmatpush2.msra.mxu0 0.0
    %2081 = vmatprep.subr.mxu0 0.0
    %2082 = vmatpush2.msra.mxu0 0.0
    %2083 = vmatprep.subr.mxu0 0.0
    %2084 = vmatpush2.msra.mxu0 0.0
    %2085 = vmatprep.subr.mxu0 0.0
    %2086 = vmatpush2.msra.mxu0 0.0
    %2087 = vmatprep.subr.mxu0 0.0
    %2088 = vmatpush2.msra.mxu0 0.0
    %2089 = vmatprep.subr.mxu0 0.0
    %2090 = vmatpush2.msra.mxu0 0.0
    %2091 = vmatprep.subr.mxu0 0.0
    %2092 = vmatpush2.msra.mxu0 0.0
    %2093 = vmatprep.subr.mxu0 0.0
    %2094 = vmatpush2.msra.mxu0 0.0
    %2095 = vmatprep.mubr.f32.mxu0 0.0
    %2096 = vmatmul.mubr.f32.gmra.mxu0 %v2029
    %v2097 = vpop.f32.mrf.mxu0
    %v2098 = vadd.f32 0.0, %v2097
    %v2099 = vpop.f32.mrf.mxu0
    %2100 = vdwg.mxu0
    %2101 = vmatprep.subr.mxu0 0.0
    %2102 = vmatpush1.msra.mxu0 0.0
    %2103 = vmatprep.subr.mxu0 0.0
    %2104 = vmatpush1.msra.mxu0 0.0
    %2105 = vmatprep.subr.mxu0 0.0
    %2106 = vmatpush1.msra.mxu0 0.0
    %2107 = vmatprep.subr.mxu0 0.0
    %2108 = vmatpush1.msra.mxu0 0.0
    %2109 = vmatprep.subr.mxu0 0.0
    %2110 = vmatpush1.msra.mxu0 0.0
    %2111 = vmatprep.subr.mxu0 0.0
    %2112 = vmatpush1.msra.mxu0 0.0
    %2113 = vmatprep.subr.mxu0 0.0
    %2114 = vmatpush1.msra.mxu0 0.0
    %2115 = vmatprep.subr.mxu0 0.0
    %2116 = vmatpush1.msra.mxu0 0.0
    %2117 = vmatprep.subr.mxu0 0.0
    %2118 = vmatpush1.msra.mxu0 0.0
    %2119 = vmatprep.subr.mxu0 0.0
    %2120 = vmatpush1.msra.mxu0 0.0
    %2121 = vmatprep.subr.mxu0 0.0
    %2122 = vmatpush1.msra.mxu0 0.0
    %2123 = vmatprep.subr.mxu0 0.0
    %2124 = vmatpush1.msra.mxu0 0.0
    %2125 = vmatprep.subr.mxu0 0.0
    %2126 = vmatpush1.msra.mxu0 %v215
    %2127 = vmatprep.subr.mxu0 0.0
    %2128 = vmatpush1.msra.mxu0 %v214
    %2129 = vmatprep.subr.mxu0 0.0
    %2130 = vmatpush1.msra.mxu0 %v213
    %2131 = vmatprep.subr.mxu0 0.0
    %2132 = vmatpush1.msra.mxu0 %v212
    %2133 = vmatprep.subr.mxu0 0.0
    %2134 = vmatpush2.msra.mxu0 0.0
    %2135 = vmatprep.subr.mxu0 0.0
    %2136 = vmatpush2.msra.mxu0 0.0
    %2137 = vmatprep.subr.mxu0 0.0
    %2138 = vmatpush2.msra.mxu0 0.0
    %2139 = vmatprep.subr.mxu0 0.0
    %2140 = vmatpush2.msra.mxu0 0.0
    %2141 = vmatprep.subr.mxu0 0.0
    %2142 = vmatpush2.msra.mxu0 0.0
    %2143 = vmatprep.subr.mxu0 0.0
    %2144 = vmatpush2.msra.mxu0 0.0
    %2145 = vmatprep.subr.mxu0 0.0
    %2146 = vmatpush2.msra.mxu0 0.0
    %2147 = vmatprep.subr.mxu0 0.0
    %2148 = vmatpush2.msra.mxu0 0.0
    %2149 = vmatprep.subr.mxu0 0.0
    %2150 = vmatpush2.msra.mxu0 0.0
    %2151 = vmatprep.subr.mxu0 0.0
    %2152 = vmatpush2.msra.mxu0 0.0
    %2153 = vmatprep.subr.mxu0 0.0
    %2154 = vmatpush2.msra.mxu0 0.0
    %2155 = vmatprep.subr.mxu0 0.0
    %2156 = vmatpush2.msra.mxu0 0.0
    %2157 = vmatprep.subr.mxu0 0.0
    %2158 = vmatpush2.msra.mxu0 0.0
    %2159 = vmatprep.subr.mxu0 0.0
    %2160 = vmatpush2.msra.mxu0 0.0
    %2161 = vmatprep.subr.mxu0 0.0
    %2162 = vmatpush2.msra.mxu0 0.0
    %2163 = vmatprep.subr.mxu0 0.0
    %2164 = vmatpush2.msra.mxu0 0.0
    %2165 = vmatprep.mubr.f32.mxu0 0.0
    %2166 = vmatmul.mubr.f32.gmra.mxu0 %v1928
    %v2167 = vpop.f32.mrf.mxu0
    %v2168 = vadd.f32 %v2098, %v2167
    %v2169 = vpop.f32.mrf.mxu0
    %2170 = vdwg.mxu0
    %v2171 = vadd.f32 %v2168, %v567
    %v2172 = vxor.u32 %v2171, 2147483648
    %v2173 = vmul.f32 %v2172, 1.442695
    %v2174 = vpow.pop %v2173
    %v2175 = vadd.f32 %v2174, 1.0
    %v2176 = vrcp.pop %v2175
    %v2177 = vmul.f32 1.0, %v2176
    %v2178 = vmul.f32 %v2177, 2.0
    %v2179 = vsub.f32 %v2178, 1.0
    %v2180 = vmul.f32 %v2177, %v1747
    %2182 = vrot.lane.b32.xlu0 %v2179, 64
    %v2183 = vpop.permute.xlu0 %2182
    %v2185 = vmul.f32 %v2177, %v2183
    %2187 = vrot.lane.b32.xlu0 %v2185, 32
    %v2188 = vpop.permute.xlu0 %2187
    %v2190 = vadd.f32 %v2180, %v2188
    %v2191 = vtanh.pop %v2190
    %2193 = vrot.lane.b32.xlu0 %v2191, 64
    %v2194 = vpop.permute.xlu0 %2193
    %v2196 = vmul.f32 %v2177, %v2194
    %2198 = vrot.lane.b32.xlu0 %v1924, 32
    %v2199 = vpop.permute.xlu0 %2198
    %v2200 = vsel %vm222, %v2199, 0
    %2202 = vmatprep.subr.mxu0 0.0
    %2203 = vmatpush1.msra.mxu0 0.0
    %2204 = vmatprep.subr.mxu0 0.0
    %2205 = vmatpush1.msra.mxu0 0.0
    %2206 = vmatprep.subr.mxu0 0.0
    %2207 = vmatpush1.msra.mxu0 0.0
    %2208 = vmatprep.subr.mxu0 0.0
    %2209 = vmatpush1.msra.mxu0 0.0
    %2210 = vmatprep.subr.mxu0 0.0
    %2211 = vmatpush1.msra.mxu0 0.0
    %2212 = vmatprep.subr.mxu0 0.0
    %2213 = vmatpush1.msra.mxu0 0.0
    %2214 = vmatprep.subr.mxu0 0.0
    %2215 = vmatpush1.msra.mxu0 0.0
    %2216 = vmatprep.subr.mxu0 0.0
    %2217 = vmatpush1.msra.mxu0 0.0
    %2218 = vmatprep.subr.mxu0 0.0
    %2219 = vmatpush1.msra.mxu0 0.0
    %2220 = vmatprep.subr.mxu0 0.0
    %2221 = vmatpush1.msra.mxu0 0.0
    %2222 = vmatprep.subr.mxu0 0.0
    %2223 = vmatpush1.msra.mxu0 0.0
    %2224 = vmatprep.subr.mxu0 0.0
    %2225 = vmatpush1.msra.mxu0 0.0
    %2226 = vmatprep.subr.mxu0 0.0
    %2227 = vmatpush1.msra.mxu0 %v211
    %2228 = vmatprep.subr.mxu0 0.0
    %2229 = vmatpush1.msra.mxu0 %v210
    %2230 = vmatprep.subr.mxu0 0.0
    %2231 = vmatpush1.msra.mxu0 %v209
    %2232 = vmatprep.subr.mxu0 0.0
    %2233 = vmatpush1.msra.mxu0 %v208
    %2234 = vmatprep.subr.mxu0 0.0
    %2235 = vmatpush2.msra.mxu0 0.0
    %2236 = vmatprep.subr.mxu0 0.0
    %2237 = vmatpush2.msra.mxu0 0.0
    %2238 = vmatprep.subr.mxu0 0.0
    %2239 = vmatpush2.msra.mxu0 0.0
    %2240 = vmatprep.subr.mxu0 0.0
    %2241 = vmatpush2.msra.mxu0 0.0
    %2242 = vmatprep.subr.mxu0 0.0
    %2243 = vmatpush2.msra.mxu0 0.0
    %2244 = vmatprep.subr.mxu0 0.0
    %2245 = vmatpush2.msra.mxu0 0.0
    %2246 = vmatprep.subr.mxu0 0.0
    %2247 = vmatpush2.msra.mxu0 0.0
    %2248 = vmatprep.subr.mxu0 0.0
    %2249 = vmatpush2.msra.mxu0 0.0
    %2250 = vmatprep.subr.mxu0 0.0
    %2251 = vmatpush2.msra.mxu0 0.0
    %2252 = vmatprep.subr.mxu0 0.0
    %2253 = vmatpush2.msra.mxu0 0.0
    %2254 = vmatprep.subr.mxu0 0.0
    %2255 = vmatpush2.msra.mxu0 0.0
    %2256 = vmatprep.subr.mxu0 0.0
    %2257 = vmatpush2.msra.mxu0 0.0
    %2258 = vmatprep.subr.mxu0 0.0
    %2259 = vmatpush2.msra.mxu0 0.0
    %2260 = vmatprep.subr.mxu0 0.0
    %2261 = vmatpush2.msra.mxu0 0.0
    %2262 = vmatprep.subr.mxu0 0.0
    %2263 = vmatpush2.msra.mxu0 0.0
    %2264 = vmatprep.subr.mxu0 0.0
    %2265 = vmatpush2.msra.mxu0 0.0
    %2266 = vmatprep.mubr.f32.mxu0 0.0
    %2267 = vmatmul.mubr.f32.gmra.mxu0 %v2200
    %v2268 = vpop.f32.mrf.mxu0
    %v2269 = vadd.f32 0.0, %v2268
    %v2270 = vpop.f32.mrf.mxu0
    %2271 = vdwg.mxu0
    %2272 = vmatprep.subr.mxu0 0.0
    %2273 = vmatpush1.msra.mxu0 0.0
    %2274 = vmatprep.subr.mxu0 0.0
    %2275 = vmatpush1.msra.mxu0 0.0
    %2276 = vmatprep.subr.mxu0 0.0
    %2277 = vmatpush1.msra.mxu0 0.0
    %2278 = vmatprep.subr.mxu0 0.0
    %2279 = vmatpush1.msra.mxu0 0.0
    %2280 = vmatprep.subr.mxu0 0.0
    %2281 = vmatpush1.msra.mxu0 0.0
    %2282 = vmatprep.subr.mxu0 0.0
    %2283 = vmatpush1.msra.mxu0 0.0
    %2284 = vmatprep.subr.mxu0 0.0
    %2285 = vmatpush1.msra.mxu0 0.0
    %2286 = vmatprep.subr.mxu0 0.0
    %2287 = vmatpush1.msra.mxu0 0.0
    %2288 = vmatprep.subr.mxu0 0.0
    %2289 = vmatpush1.msra.mxu0 0.0
    %2290 = vmatprep.subr.mxu0 0.0
    %2291 = vmatpush1.msra.mxu0 0.0
    %2292 = vmatprep.subr.mxu0 0.0
    %2293 = vmatpush1.msra.mxu0 0.0
    %2294 = vmatprep.subr.mxu0 0.0
    %2295 = vmatpush1.msra.mxu0 0.0
    %2296 = vmatprep.subr.mxu0 0.0
    %2297 = vmatpush1.msra.mxu0 %v219
    %2298 = vmatprep.subr.mxu0 0.0
    %2299 = vmatpush1.msra.mxu0 %v218
    %2300 = vmatprep.subr.mxu0 0.0
    %2301 = vmatpush1.msra.mxu0 %v217
    %2302 = vmatprep.subr.mxu0 0.0
    %2303 = vmatpush1.msra.mxu0 %v216
    %2304 = vmatprep.subr.mxu0 0.0
    %2305 = vmatpush2.msra.mxu0 0.0
    %2306 = vmatprep.subr.mxu0 0.0
    %2307 = vmatpush2.msra.mxu0 0.0
    %2308 = vmatprep.subr.mxu0 0.0
    %2309 = vmatpush2.msra.mxu0 0.0
    %2310 = vmatprep.subr.mxu0 0.0
    %2311 = vmatpush2.msra.mxu0 0.0
    %2312 = vmatprep.subr.mxu0 0.0
    %2313 = vmatpush2.msra.mxu0 0.0
    %2314 = vmatprep.subr.mxu0 0.0
    %2315 = vmatpush2.msra.mxu0 0.0
    %2316 = vmatprep.subr.mxu0 0.0
    %2317 = vmatpush2.msra.mxu0 0.0
    %2318 = vmatprep.subr.mxu0 0.0
    %2319 = vmatpush2.msra.mxu0 0.0
    %2320 = vmatprep.subr.mxu0 0.0
    %2321 = vmatpush2.msra.mxu0 0.0
    %2322 = vmatprep.subr.mxu0 0.0
    %2323 = vmatpush2.msra.mxu0 0.0
    %2324 = vmatprep.subr.mxu0 0.0
    %2325 = vmatpush2.msra.mxu0 0.0
    %2326 = vmatprep.subr.mxu0 0.0
    %2327 = vmatpush2.msra.mxu0 0.0
    %2328 = vmatprep.subr.mxu0 0.0
    %2329 = vmatpush2.msra.mxu0 0.0
    %2330 = vmatprep.subr.mxu0 0.0
    %2331 = vmatpush2.msra.mxu0 0.0
    %2332 = vmatprep.subr.mxu0 0.0
    %2333 = vmatpush2.msra.mxu0 0.0
    %2334 = vmatprep.subr.mxu0 0.0
    %2335 = vmatpush2.msra.mxu0 0.0
    %2336 = vmatprep.mubr.f32.mxu0 0.0
    %2337 = vmatmul.mubr.f32.gmra.mxu0 %v2029
    %v2338 = vpop.f32.mrf.mxu0
    %v2339 = vadd.f32 %v2269, %v2338
    %v2340 = vpop.f32.mrf.mxu0
    %2341 = vdwg.mxu0
    %v2342 = vadd.f32 %v2339, %v1011
    %v2343 = vxor.u32 %v2342, 2147483648
    %v2344 = vmul.f32 %v2343, 1.442695
    %v2345 = vpow.pop %v2344
    %v2346 = vadd.f32 %v2345, 1.0
    %v2347 = vrcp.pop %v2346
    %v2348 = vmul.f32 1.0, %v2347
    %v2349 = vmul.f32 %v2348, 2.0
    %v2350 = vsub.f32 %v2349, 1.0
    %v2351 = vmul.f32 %v2348, %v1918
    %2353 = vrot.lane.b32.xlu0 %v2350, 64
    %v2354 = vpop.permute.xlu0 %2353
    %v2356 = vmul.f32 %v2348, %v2354
    %2358 = vrot.lane.b32.xlu0 %v2356, 32
    %v2359 = vpop.permute.xlu0 %2358
    %v2361 = vadd.f32 %v2351, %v2359
    %v2362 = vtanh.pop %v2361
    %2364 = vrot.lane.b32.xlu0 %v2362, 64
    %v2365 = vpop.permute.xlu0 %2364
    %v2367 = vmul.f32 %v2348, %v2365
    %2369 = vrot.lane.b32.xlu0 %v2025, 32
    %v2370 = vpop.permute.xlu0 %2369
    %v2371 = vsel %vm222, %v2370, 0
    %2373 = vmatprep.subr.mxu0 0.0
    %2374 = vmatpush1.msra.mxu0 0.0
    %2375 = vmatprep.subr.mxu0 0.0
    %2376 = vmatpush1.msra.mxu0 0.0
    %2377 = vmatprep.subr.mxu0 0.0
    %2378 = vmatpush1.msra.mxu0 0.0
    %2379 = vmatprep.subr.mxu0 0.0
    %2380 = vmatpush1.msra.mxu0 0.0
    %2381 = vmatprep.subr.mxu0 0.0
    %2382 = vmatpush1.msra.mxu0 0.0
    %2383 = vmatprep.subr.mxu0 0.0
    %2384 = vmatpush1.msra.mxu0 0.0
    %2385 = vmatprep.subr.mxu0 0.0
    %2386 = vmatpush1.msra.mxu0 0.0
    %2387 = vmatprep.subr.mxu0 0.0
    %2388 = vmatpush1.msra.mxu0 0.0
    %2389 = vmatprep.subr.mxu0 0.0
    %2390 = vmatpush1.msra.mxu0 0.0
    %2391 = vmatprep.subr.mxu0 0.0
    %2392 = vmatpush1.msra.mxu0 0.0
    %2393 = vmatprep.subr.mxu0 0.0
    %2394 = vmatpush1.msra.mxu0 0.0
    %2395 = vmatprep.subr.mxu0 0.0
    %2396 = vmatpush1.msra.mxu0 0.0
    %2397 = vmatprep.subr.mxu0 0.0
    %2398 = vmatpush1.msra.mxu0 %v203
    %2399 = vmatprep.subr.mxu0 0.0
    %2400 = vmatpush1.msra.mxu0 %v202
    %2401 = vmatprep.subr.mxu0 0.0
    %2402 = vmatpush1.msra.mxu0 %v201
    %2403 = vmatprep.subr.mxu0 0.0
    %2404 = vmatpush1.msra.mxu0 %v200
    %2405 = vmatprep.subr.mxu0 0.0
    %2406 = vmatpush2.msra.mxu0 0.0
    %2407 = vmatprep.subr.mxu0 0.0
    %2408 = vmatpush2.msra.mxu0 0.0
    %2409 = vmatprep.subr.mxu0 0.0
    %2410 = vmatpush2.msra.mxu0 0.0
    %2411 = vmatprep.subr.mxu0 0.0
    %2412 = vmatpush2.msra.mxu0 0.0
    %2413 = vmatprep.subr.mxu0 0.0
    %2414 = vmatpush2.msra.mxu0 0.0
    %2415 = vmatprep.subr.mxu0 0.0
    %2416 = vmatpush2.msra.mxu0 0.0
    %2417 = vmatprep.subr.mxu0 0.0
    %2418 = vmatpush2.msra.mxu0 0.0
    %2419 = vmatprep.subr.mxu0 0.0
    %2420 = vmatpush2.msra.mxu0 0.0
    %2421 = vmatprep.subr.mxu0 0.0
    %2422 = vmatpush2.msra.mxu0 0.0
    %2423 = vmatprep.subr.mxu0 0.0
    %2424 = vmatpush2.msra.mxu0 0.0
    %2425 = vmatprep.subr.mxu0 0.0
    %2426 = vmatpush2.msra.mxu0 0.0
    %2427 = vmatprep.subr.mxu0 0.0
    %2428 = vmatpush2.msra.mxu0 0.0
    %2429 = vmatprep.subr.mxu0 0.0
    %2430 = vmatpush2.msra.mxu0 0.0
    %2431 = vmatprep.subr.mxu0 0.0
    %2432 = vmatpush2.msra.mxu0 0.0
    %2433 = vmatprep.subr.mxu0 0.0
    %2434 = vmatpush2.msra.mxu0 0.0
    %2435 = vmatprep.subr.mxu0 0.0
    %2436 = vmatpush2.msra.mxu0 0.0
    %2437 = vmatprep.mubr.f32.mxu0 0.0
    %2438 = vmatmul.mubr.f32.gmra.mxu0 %v2371
    %v2439 = vpop.f32.mrf.mxu0
    %v2440 = vadd.f32 0.0, %v2439
    %v2441 = vpop.f32.mrf.mxu0
    %2442 = vdwg.mxu0
    %v2443 = vadd.f32 %v192, %v2440
    %v2444 = vxor.u32 %v2443, 2147483648
    %v2445 = vmul.f32 %v2444, 1.442695
    %v2446 = vpow.pop %v2445
    %v2447 = vadd.f32 %v2446, 1.0
    %v2448 = vrcp.pop %v2447
    %v2449 = vmul.f32 1.0, %v2448
    %v2450 = vmul.f32 %v2449, 2.0
    %v2451 = vsub.f32 %v2450, 1.0
    %v2452 = vmul.f32 %v2449, %v2019
    %2454 = vrot.lane.b32.xlu0 %v2451, 64
    %v2455 = vpop.permute.xlu0 %2454
    %v2457 = vmul.f32 %v2449, %v2455
    %2459 = vrot.lane.b32.xlu0 %v2457, 32
    %v2460 = vpop.permute.xlu0 %2459
    %v2462 = vadd.f32 %v2452, %v2460
    %v2463 = vtanh.pop %v2462
    %2465 = vrot.lane.b32.xlu0 %v2463, 64
    %v2466 = vpop.permute.xlu0 %2465
    %v2468 = vmul.f32 %v2449, %v2466
    %2470 = vrot.lane.b32.xlu0 %v2196, 32
    %v2471 = vpop.permute.xlu0 %2470
    %v2472 = vsel %vm222, %v2471, 0
    %2474 = vmatprep.subr.mxu0 0.0
    %2475 = vmatpush1.msra.mxu0 0.0
    %2476 = vmatprep.subr.mxu0 0.0
    %2477 = vmatpush1.msra.mxu0 0.0
    %2478 = vmatprep.subr.mxu0 0.0
    %2479 = vmatpush1.msra.mxu0 0.0
    %2480 = vmatprep.subr.mxu0 0.0
    %2481 = vmatpush1.msra.mxu0 0.0
    %2482 = vmatprep.subr.mxu0 0.0
    %2483 = vmatpush1.msra.mxu0 0.0
    %2484 = vmatprep.subr.mxu0 0.0
    %2485 = vmatpush1.msra.mxu0 0.0
    %2486 = vmatprep.subr.mxu0 0.0
    %2487 = vmatpush1.msra.mxu0 0.0
    %2488 = vmatprep.subr.mxu0 0.0
    %2489 = vmatpush1.msra.mxu0 0.0
    %2490 = vmatprep.subr.mxu0 0.0
    %2491 = vmatpush1.msra.mxu0 0.0
    %2492 = vmatprep.subr.mxu0 0.0
    %2493 = vmatpush1.msra.mxu0 0.0
    %2494 = vmatprep.subr.mxu0 0.0
    %2495 = vmatpush1.msra.mxu0 0.0
    %2496 = vmatprep.subr.mxu0 0.0
    %2497 = vmatpush1.msra.mxu0 0.0
    %2498 = vmatprep.subr.mxu0 0.0
    %2499 = vmatpush1.msra.mxu0 %v207
    %2500 = vmatprep.subr.mxu0 0.0
    %2501 = vmatpush1.msra.mxu0 %v206
    %2502 = vmatprep.subr.mxu0 0.0
    %2503 = vmatpush1.msra.mxu0 %v205
    %2504 = vmatprep.subr.mxu0 0.0
    %2505 = vmatpush1.msra.mxu0 %v204
    %2506 = vmatprep.subr.mxu0 0.0
    %2507 = vmatpush2.msra.mxu0 0.0
    %2508 = vmatprep.subr.mxu0 0.0
    %2509 = vmatpush2.msra.mxu0 0.0
    %2510 = vmatprep.subr.mxu0 0.0
    %2511 = vmatpush2.msra.mxu0 0.0
    %2512 = vmatprep.subr.mxu0 0.0
    %2513 = vmatpush2.msra.mxu0 0.0
    %2514 = vmatprep.subr.mxu0 0.0
    %2515 = vmatpush2.msra.mxu0 0.0
    %2516 = vmatprep.subr.mxu0 0.0
    %2517 = vmatpush2.msra.mxu0 0.0
    %2518 = vmatprep.subr.mxu0 0.0
    %2519 = vmatpush2.msra.mxu0 0.0
    %2520 = vmatprep.subr.mxu0 0.0
    %2521 = vmatpush2.msra.mxu0 0.0
    %2522 = vmatprep.subr.mxu0 0.0
    %2523 = vmatpush2.msra.mxu0 0.0
    %2524 = vmatprep.subr.mxu0 0.0
    %2525 = vmatpush2.msra.mxu0 0.0
    %2526 = vmatprep.subr.mxu0 0.0
    %2527 = vmatpush2.msra.mxu0 0.0
    %2528 = vmatprep.subr.mxu0 0.0
    %2529 = vmatpush2.msra.mxu0 0.0
    %2530 = vmatprep.subr.mxu0 0.0
    %2531 = vmatpush2.msra.mxu0 0.0
    %2532 = vmatprep.subr.mxu0 0.0
    %2533 = vmatpush2.msra.mxu0 0.0
    %2534 = vmatprep.subr.mxu0 0.0
    %2535 = vmatpush2.msra.mxu0 0.0
    %2536 = vmatprep.subr.mxu0 0.0
    %2537 = vmatpush2.msra.mxu0 0.0
    %2538 = vmatprep.mubr.f32.mxu0 0.0
    %2539 = vmatmul.mubr.f32.gmra.mxu0 %v2472
    %v2540 = vpop.f32.mrf.mxu0
    %v2541 = vadd.f32 0.0, %v2540
    %v2542 = vpop.f32.mrf.mxu0
    %2543 = vdwg.mxu0
    %2544 = vmatprep.subr.mxu0 0.0
    %2545 = vmatpush1.msra.mxu0 0.0
    %2546 = vmatprep.subr.mxu0 0.0
    %2547 = vmatpush1.msra.mxu0 0.0
    %2548 = vmatprep.subr.mxu0 0.0
    %2549 = vmatpush1.msra.mxu0 0.0
    %2550 = vmatprep.subr.mxu0 0.0
    %2551 = vmatpush1.msra.mxu0 0.0
    %2552 = vmatprep.subr.mxu0 0.0
    %2553 = vmatpush1.msra.mxu0 0.0
    %2554 = vmatprep.subr.mxu0 0.0
    %2555 = vmatpush1.msra.mxu0 0.0
    %2556 = vmatprep.subr.mxu0 0.0
    %2557 = vmatpush1.msra.mxu0 0.0
    %2558 = vmatprep.subr.mxu0 0.0
    %2559 = vmatpush1.msra.mxu0 0.0
    %2560 = vmatprep.subr.mxu0 0.0
    %2561 = vmatpush1.msra.mxu0 0.0
    %2562 = vmatprep.subr.mxu0 0.0
    %2563 = vmatpush1.msra.mxu0 0.0
    %2564 = vmatprep.subr.mxu0 0.0
    %2565 = vmatpush1.msra.mxu0 0.0
    %2566 = vmatprep.subr.mxu0 0.0
    %2567 = vmatpush1.msra.mxu0 0.0
    %2568 = vmatprep.subr.mxu0 0.0
    %2569 = vmatpush1.msra.mxu0 %v215
    %2570 = vmatprep.subr.mxu0 0.0
    %2571 = vmatpush1.msra.mxu0 %v214
    %2572 = vmatprep.subr.mxu0 0.0
    %2573 = vmatpush1.msra.mxu0 %v213
    %2574 = vmatprep.subr.mxu0 0.0
    %2575 = vmatpush1.msra.mxu0 %v212
    %2576 = vmatprep.subr.mxu0 0.0
    %2577 = vmatpush2.msra.mxu0 0.0
    %2578 = vmatprep.subr.mxu0 0.0
    %2579 = vmatpush2.msra.mxu0 0.0
    %2580 = vmatprep.subr.mxu0 0.0
    %2581 = vmatpush2.msra.mxu0 0.0
    %2582 = vmatprep.subr.mxu0 0.0
    %2583 = vmatpush2.msra.mxu0 0.0
    %2584 = vmatprep.subr.mxu0 0.0
    %2585 = vmatpush2.msra.mxu0 0.0
    %2586 = vmatprep.subr.mxu0 0.0
    %2587 = vmatpush2.msra.mxu0 0.0
    %2588 = vmatprep.subr.mxu0 0.0
    %2589 = vmatpush2.msra.mxu0 0.0
    %2590 = vmatprep.subr.mxu0 0.0
    %2591 = vmatpush2.msra.mxu0 0.0
    %2592 = vmatprep.subr.mxu0 0.0
    %2593 = vmatpush2.msra.mxu0 0.0
    %2594 = vmatprep.subr.mxu0 0.0
    %2595 = vmatpush2.msra.mxu0 0.0
    %2596 = vmatprep.subr.mxu0 0.0
    %2597 = vmatpush2.msra.mxu0 0.0
    %2598 = vmatprep.subr.mxu0 0.0
    %2599 = vmatpush2.msra.mxu0 0.0
    %2600 = vmatprep.subr.mxu0 0.0
    %2601 = vmatpush2.msra.mxu0 0.0
    %2602 = vmatprep.subr.mxu0 0.0
    %2603 = vmatpush2.msra.mxu0 0.0
    %2604 = vmatprep.subr.mxu0 0.0
    %2605 = vmatpush2.msra.mxu0 0.0
    %2606 = vmatprep.subr.mxu0 0.0
    %2607 = vmatpush2.msra.mxu0 0.0
    %2608 = vmatprep.mubr.f32.mxu0 0.0
    %2609 = vmatmul.mubr.f32.gmra.mxu0 %v2371
    %v2610 = vpop.f32.mrf.mxu0
    %v2611 = vadd.f32 %v2541, %v2610
    %v2612 = vpop.f32.mrf.mxu0
    %2613 = vdwg.mxu0
    %v2614 = vadd.f32 %v2611, %v567
    %v2615 = vxor.u32 %v2614, 2147483648
    %v2616 = vmul.f32 %v2615, 1.442695
    %v2617 = vpow.pop %v2616
    %v2618 = vadd.f32 %v2617, 1.0
    %v2619 = vrcp.pop %v2618
    %v2620 = vmul.f32 1.0, %v2619
    %v2621 = vmul.f32 %v2620, 2.0
    %v2622 = vsub.f32 %v2621, 1.0
    %v2623 = vmul.f32 %v2620, %v2190
    %2625 = vrot.lane.b32.xlu0 %v2622, 64
    %v2626 = vpop.permute.xlu0 %2625
    %v2628 = vmul.f32 %v2620, %v2626
    %2630 = vrot.lane.b32.xlu0 %v2628, 32
    %v2631 = vpop.permute.xlu0 %2630
    %v2633 = vadd.f32 %v2623, %v2631
    %v2634 = vtanh.pop %v2633
    %2636 = vrot.lane.b32.xlu0 %v2634, 64
    %v2637 = vpop.permute.xlu0 %2636
    %v2639 = vmul.f32 %v2620, %v2637
    %2641 = vrot.lane.b32.xlu0 %v2367, 32
    %v2642 = vpop.permute.xlu0 %2641
    %v2643 = vsel %vm222, %v2642, 0
    %2645 = vmatprep.subr.mxu0 0.0
    %2646 = vmatpush1.msra.mxu0 0.0
    %2647 = vmatprep.subr.mxu0 0.0
    %2648 = vmatpush1.msra.mxu0 0.0
    %2649 = vmatprep.subr.mxu0 0.0
    %2650 = vmatpush1.msra.mxu0 0.0
    %2651 = vmatprep.subr.mxu0 0.0
    %2652 = vmatpush1.msra.mxu0 0.0
    %2653 = vmatprep.subr.mxu0 0.0
    %2654 = vmatpush1.msra.mxu0 0.0
    %2655 = vmatprep.subr.mxu0 0.0
    %2656 = vmatpush1.msra.mxu0 0.0
    %2657 = vmatprep.subr.mxu0 0.0
    %2658 = vmatpush1.msra.mxu0 0.0
    %2659 = vmatprep.subr.mxu0 0.0
    %2660 = vmatpush1.msra.mxu0 0.0
    %2661 = vmatprep.subr.mxu0 0.0
    %2662 = vmatpush1.msra.mxu0 0.0
    %2663 = vmatprep.subr.mxu0 0.0
    %2664 = vmatpush1.msra.mxu0 0.0
    %2665 = vmatprep.subr.mxu0 0.0
    %2666 = vmatpush1.msra.mxu0 0.0
    %2667 = vmatprep.subr.mxu0 0.0
    %2668 = vmatpush1.msra.mxu0 0.0
    %2669 = vmatprep.subr.mxu0 0.0
    %2670 = vmatpush1.msra.mxu0 %v211
    %2671 = vmatprep.subr.mxu0 0.0
    %2672 = vmatpush1.msra.mxu0 %v210
    %2673 = vmatprep.subr.mxu0 0.0
    %2674 = vmatpush1.msra.mxu0 %v209
    %2675 = vmatprep.subr.mxu0 0.0
    %2676 = vmatpush1.msra.mxu0 %v208
    %2677 = vmatprep.subr.mxu0 0.0
    %2678 = vmatpush2.msra.mxu0 0.0
    %2679 = vmatprep.subr.mxu0 0.0
    %2680 = vmatpush2.msra.mxu0 0.0
    %2681 = vmatprep.subr.mxu0 0.0
    %2682 = vmatpush2.msra.mxu0 0.0
    %2683 = vmatprep.subr.mxu0 0.0
    %2684 = vmatpush2.msra.mxu0 0.0
    %2685 = vmatprep.subr.mxu0 0.0
    %2686 = vmatpush2.msra.mxu0 0.0
    %2687 = vmatprep.subr.mxu0 0.0
    %2688 = vmatpush2.msra.mxu0 0.0
    %2689 = vmatprep.subr.mxu0 0.0
    %2690 = vmatpush2.msra.mxu0 0.0
    %2691 = vmatprep.subr.mxu0 0.0
    %2692 = vmatpush2.msra.mxu0 0.0
    %2693 = vmatprep.subr.mxu0 0.0
    %2694 = vmatpush2.msra.mxu0 0.0
    %2695 = vmatprep.subr.mxu0 0.0
    %2696 = vmatpush2.msra.mxu0 0.0
    %2697 = vmatprep.subr.mxu0 0.0
    %2698 = vmatpush2.msra.mxu0 0.0
    %2699 = vmatprep.subr.mxu0 0.0
    %2700 = vmatpush2.msra.mxu0 0.0
    %2701 = vmatprep.subr.mxu0 0.0
    %2702 = vmatpush2.msra.mxu0 0.0
    %2703 = vmatprep.subr.mxu0 0.0
    %2704 = vmatpush2.msra.mxu0 0.0
    %2705 = vmatprep.subr.mxu0 0.0
    %2706 = vmatpush2.msra.mxu0 0.0
    %2707 = vmatprep.subr.mxu0 0.0
    %2708 = vmatpush2.msra.mxu0 0.0
    %2709 = vmatprep.mubr.f32.mxu0 0.0
    %2710 = vmatmul.mubr.f32.gmra.mxu0 %v2643
    %v2711 = vpop.f32.mrf.mxu0
    %v2712 = vadd.f32 0.0, %v2711
    %v2713 = vpop.f32.mrf.mxu0
    %2714 = vdwg.mxu0
    %2715 = vmatprep.subr.mxu0 0.0
    %2716 = vmatpush1.msra.mxu0 0.0
    %2717 = vmatprep.subr.mxu0 0.0
    %2718 = vmatpush1.msra.mxu0 0.0
    %2719 = vmatprep.subr.mxu0 0.0
    %2720 = vmatpush1.msra.mxu0 0.0
    %2721 = vmatprep.subr.mxu0 0.0
    %2722 = vmatpush1.msra.mxu0 0.0
    %2723 = vmatprep.subr.mxu0 0.0
    %2724 = vmatpush1.msra.mxu0 0.0
    %2725 = vmatprep.subr.mxu0 0.0
    %2726 = vmatpush1.msra.mxu0 0.0
    %2727 = vmatprep.subr.mxu0 0.0
    %2728 = vmatpush1.msra.mxu0 0.0
    %2729 = vmatprep.subr.mxu0 0.0
    %2730 = vmatpush1.msra.mxu0 0.0
    %2731 = vmatprep.subr.mxu0 0.0
    %2732 = vmatpush1.msra.mxu0 0.0
    %2733 = vmatprep.subr.mxu0 0.0
    %2734 = vmatpush1.msra.mxu0 0.0
    %2735 = vmatprep.subr.mxu0 0.0
    %2736 = vmatpush1.msra.mxu0 0.0
    %2737 = vmatprep.subr.mxu0 0.0
    %2738 = vmatpush1.msra.mxu0 0.0
    %2739 = vmatprep.subr.mxu0 0.0
    %2740 = vmatpush1.msra.mxu0 %v219
    %2741 = vmatprep.subr.mxu0 0.0
    %2742 = vmatpush1.msra.mxu0 %v218
    %2743 = vmatprep.subr.mxu0 0.0
    %2744 = vmatpush1.msra.mxu0 %v217
    %2745 = vmatprep.subr.mxu0 0.0
    %2746 = vmatpush1.msra.mxu0 %v216
    %2747 = vmatprep.subr.mxu0 0.0
    %2748 = vmatpush2.msra.mxu0 0.0
    %2749 = vmatprep.subr.mxu0 0.0
    %2750 = vmatpush2.msra.mxu0 0.0
    %2751 = vmatprep.subr.mxu0 0.0
    %2752 = vmatpush2.msra.mxu0 0.0
    %2753 = vmatprep.subr.mxu0 0.0
    %2754 = vmatpush2.msra.mxu0 0.0
    %2755 = vmatprep.subr.mxu0 0.0
    %2756 = vmatpush2.msra.mxu0 0.0
    %2757 = vmatprep.subr.mxu0 0.0
    %2758 = vmatpush2.msra.mxu0 0.0
    %2759 = vmatprep.subr.mxu0 0.0
    %2760 = vmatpush2.msra.mxu0 0.0
    %2761 = vmatprep.subr.mxu0 0.0
    %2762 = vmatpush2.msra.mxu0 0.0
    %2763 = vmatprep.subr.mxu0 0.0
    %2764 = vmatpush2.msra.mxu0 0.0
    %2765 = vmatprep.subr.mxu0 0.0
    %2766 = vmatpush2.msra.mxu0 0.0
    %2767 = vmatprep.subr.mxu0 0.0
    %2768 = vmatpush2.msra.mxu0 0.0
    %2769 = vmatprep.subr.mxu0 0.0
    %2770 = vmatpush2.msra.mxu0 0.0
    %2771 = vmatprep.subr.mxu0 0.0
    %2772 = vmatpush2.msra.mxu0 0.0
    %2773 = vmatprep.subr.mxu0 0.0
    %2774 = vmatpush2.msra.mxu0 0.0
    %2775 = vmatprep.subr.mxu0 0.0
    %2776 = vmatpush2.msra.mxu0 0.0
    %2777 = vmatprep.subr.mxu0 0.0
    %2778 = vmatpush2.msra.mxu0 0.0
    %2779 = vmatprep.mubr.f32.mxu0 0.0
    %2780 = vmatmul.mubr.f32.gmra.mxu0 %v2472
    %v2781 = vpop.f32.mrf.mxu0
    %v2782 = vadd.f32 %v2712, %v2781
    %v2783 = vpop.f32.mrf.mxu0
    %2784 = vdwg.mxu0
    %v2785 = vadd.f32 %v2782, %v1011
    %v2786 = vxor.u32 %v2785, 2147483648
    %v2787 = vmul.f32 %v2786, 1.442695
    %v2788 = vpow.pop %v2787
    %v2789 = vadd.f32 %v2788, 1.0
    %v2790 = vrcp.pop %v2789
    %v2791 = vmul.f32 1.0, %v2790
    %v2792 = vmul.f32 %v2791, 2.0
    %v2793 = vsub.f32 %v2792, 1.0
    %v2794 = vmul.f32 %v2791, %v2361
    %2796 = vrot.lane.b32.xlu0 %v2793, 64
    %v2797 = vpop.permute.xlu0 %2796
    %v2799 = vmul.f32 %v2791, %v2797
    %2801 = vrot.lane.b32.xlu0 %v2799, 32
    %v2802 = vpop.permute.xlu0 %2801
    %v2804 = vadd.f32 %v2794, %v2802
    %v2805 = vtanh.pop %v2804
    %2807 = vrot.lane.b32.xlu0 %v2805, 64
    %v2808 = vpop.permute.xlu0 %2807
    %v2810 = vmul.f32 %v2791, %v2808
    %2812 = vrot.lane.b32.xlu0 %v2468, 32
    %v2813 = vpop.permute.xlu0 %2812
    %v2814 = vsel %vm222, %v2813, 0
    %2816 = vmatprep.subr.mxu0 0.0
    %2817 = vmatpush1.msra.mxu0 0.0
    %2818 = vmatprep.subr.mxu0 0.0
    %2819 = vmatpush1.msra.mxu0 0.0
    %2820 = vmatprep.subr.mxu0 0.0
    %2821 = vmatpush1.msra.mxu0 0.0
    %2822 = vmatprep.subr.mxu0 0.0
    %2823 = vmatpush1.msra.mxu0 0.0
    %2824 = vmatprep.subr.mxu0 0.0
    %2825 = vmatpush1.msra.mxu0 0.0
    %2826 = vmatprep.subr.mxu0 0.0
    %2827 = vmatpush1.msra.mxu0 0.0
    %2828 = vmatprep.subr.mxu0 0.0
    %2829 = vmatpush1.msra.mxu0 0.0
    %2830 = vmatprep.subr.mxu0 0.0
    %2831 = vmatpush1.msra.mxu0 0.0
    %2832 = vmatprep.subr.mxu0 0.0
    %2833 = vmatpush1.msra.mxu0 0.0
    %2834 = vmatprep.subr.mxu0 0.0
    %2835 = vmatpush1.msra.mxu0 0.0
    %2836 = vmatprep.subr.mxu0 0.0
    %2837 = vmatpush1.msra.mxu0 0.0
    %2838 = vmatprep.subr.mxu0 0.0
    %2839 = vmatpush1.msra.mxu0 0.0
    %2840 = vmatprep.subr.mxu0 0.0
    %2841 = vmatpush1.msra.mxu0 %v203
    %2842 = vmatprep.subr.mxu0 0.0
    %2843 = vmatpush1.msra.mxu0 %v202
    %2844 = vmatprep.subr.mxu0 0.0
    %2845 = vmatpush1.msra.mxu0 %v201
    %2846 = vmatprep.subr.mxu0 0.0
    %2847 = vmatpush1.msra.mxu0 %v200
    %2848 = vmatprep.subr.mxu0 0.0
    %2849 = vmatpush2.msra.mxu0 0.0
    %2850 = vmatprep.subr.mxu0 0.0
    %2851 = vmatpush2.msra.mxu0 0.0
    %2852 = vmatprep.subr.mxu0 0.0
    %2853 = vmatpush2.msra.mxu0 0.0
    %2854 = vmatprep.subr.mxu0 0.0
    %2855 = vmatpush2.msra.mxu0 0.0
    %2856 = vmatprep.subr.mxu0 0.0
    %2857 = vmatpush2.msra.mxu0 0.0
    %2858 = vmatprep.subr.mxu0 0.0
    %2859 = vmatpush2.msra.mxu0 0.0
    %2860 = vmatprep.subr.mxu0 0.0
    %2861 = vmatpush2.msra.mxu0 0.0
    %2862 = vmatprep.subr.mxu0 0.0
    %2863 = vmatpush2.msra.mxu0 0.0
    %2864 = vmatprep.subr.mxu0 0.0
    %2865 = vmatpush2.msra.mxu0 0.0
    %2866 = vmatprep.subr.mxu0 0.0
    %2867 = vmatpush2.msra.mxu0 0.0
    %2868 = vmatprep.subr.mxu0 0.0
    %2869 = vmatpush2.msra.mxu0 0.0
    %2870 = vmatprep.subr.mxu0 0.0
    %2871 = vmatpush2.msra.mxu0 0.0
    %2872 = vmatprep.subr.mxu0 0.0
    %2873 = vmatpush2.msra.mxu0 0.0
    %2874 = vmatprep.subr.mxu0 0.0
    %2875 = vmatpush2.msra.mxu0 0.0
    %2876 = vmatprep.subr.mxu0 0.0
    %2877 = vmatpush2.msra.mxu0 0.0
    %2878 = vmatprep.subr.mxu0 0.0
    %2879 = vmatpush2.msra.mxu0 0.0
    %2880 = vmatprep.mubr.f32.mxu0 0.0
    %2881 = vmatmul.mubr.f32.gmra.mxu0 %v2814
    %v2882 = vpop.f32.mrf.mxu0
    %v2883 = vadd.f32 0.0, %v2882
    %v2884 = vpop.f32.mrf.mxu0
    %2885 = vdwg.mxu0
    %v2886 = vadd.f32 %v197, %v2883
    %v2887 = vxor.u32 %v2886, 2147483648
    %v2888 = vmul.f32 %v2887, 1.442695
    %v2889 = vpow.pop %v2888
    %v2890 = vadd.f32 %v2889, 1.0
    %v2891 = vrcp.pop %v2890
    %v2892 = vmul.f32 1.0, %v2891
    %v2893 = vmul.f32 %v2892, 2.0
    %v2894 = vsub.f32 %v2893, 1.0
    %v2895 = vmul.f32 %v2892, %v2462
    %2897 = vrot.lane.b32.xlu0 %v2894, 64
    %v2898 = vpop.permute.xlu0 %2897
    %v2900 = vmul.f32 %v2892, %v2898
    %2902 = vrot.lane.b32.xlu0 %v2900, 32
    %v2903 = vpop.permute.xlu0 %2902
    %v2905 = vadd.f32 %v2895, %v2903
    %v2906 = vtanh.pop %v2905
    %2908 = vrot.lane.b32.xlu0 %v2906, 64
    %v2909 = vpop.permute.xlu0 %2908
    %v2911 = vmul.f32 %v2892, %v2909
    %2913 = vrot.lane.b32.xlu0 %v2639, 32
    %v2914 = vpop.permute.xlu0 %2913
    %v2915 = vsel %vm222, %v2914, 0
    %2917 = vmatprep.subr.mxu0 0.0
    %2918 = vmatpush1.msra.mxu0 0.0
    %2919 = vmatprep.subr.mxu0 0.0
    %2920 = vmatpush1.msra.mxu0 0.0
    %2921 = vmatprep.subr.mxu0 0.0
    %2922 = vmatpush1.msra.mxu0 0.0
    %2923 = vmatprep.subr.mxu0 0.0
    %2924 = vmatpush1.msra.mxu0 0.0
    %2925 = vmatprep.subr.mxu0 0.0
    %2926 = vmatpush1.msra.mxu0 0.0
    %2927 = vmatprep.subr.mxu0 0.0
    %2928 = vmatpush1.msra.mxu0 0.0
    %2929 = vmatprep.subr.mxu0 0.0
    %2930 = vmatpush1.msra.mxu0 0.0
    %2931 = vmatprep.subr.mxu0 0.0
    %2932 = vmatpush1.msra.mxu0 0.0
    %2933 = vmatprep.subr.mxu0 0.0
    %2934 = vmatpush1.msra.mxu0 0.0
    %2935 = vmatprep.subr.mxu0 0.0
    %2936 = vmatpush1.msra.mxu0 0.0
    %2937 = vmatprep.subr.mxu0 0.0
    %2938 = vmatpush1.msra.mxu0 0.0
    %2939 = vmatprep.subr.mxu0 0.0
    %2940 = vmatpush1.msra.mxu0 0.0
    %2941 = vmatprep.subr.mxu0 0.0
    %2942 = vmatpush1.msra.mxu0 %v207
    %2943 = vmatprep.subr.mxu0 0.0
    %2944 = vmatpush1.msra.mxu0 %v206
    %2945 = vmatprep.subr.mxu0 0.0
    %2946 = vmatpush1.msra.mxu0 %v205
    %2947 = vmatprep.subr.mxu0 0.0
    %2948 = vmatpush1.msra.mxu0 %v204
    %2949 = vmatprep.subr.mxu0 0.0
    %2950 = vmatpush2.msra.mxu0 0.0
    %2951 = vmatprep.subr.mxu0 0.0
    %2952 = vmatpush2.msra.mxu0 0.0
    %2953 = vmatprep.subr.mxu0 0.0
    %2954 = vmatpush2.msra.mxu0 0.0
    %2955 = vmatprep.subr.mxu0 0.0
    %2956 = vmatpush2.msra.mxu0 0.0
    %2957 = vmatprep.subr.mxu0 0.0
    %2958 = vmatpush2.msra.mxu0 0.0
    %2959 = vmatprep.subr.mxu0 0.0
    %2960 = vmatpush2.msra.mxu0 0.0
    %2961 = vmatprep.subr.mxu0 0.0
    %2962 = vmatpush2.msra.mxu0 0.0
    %2963 = vmatprep.subr.mxu0 0.0
    %2964 = vmatpush2.msra.mxu0 0.0
    %2965 = vmatprep.subr.mxu0 0.0
    %2966 = vmatpush2.msra.mxu0 0.0
    %2967 = vmatprep.subr.mxu0 0.0
    %2968 = vmatpush2.msra.mxu0 0.0
    %2969 = vmatprep.subr.mxu0 0.0
    %2970 = vmatpush2.msra.mxu0 0.0
    %2971 = vmatprep.subr.mxu0 0.0
    %2972 = vmatpush2.msra.mxu0 0.0
    %2973 = vmatprep.subr.mxu0 0.0
    %2974 = vmatpush2.msra.mxu0 0.0
    %2975 = vmatprep.subr.mxu0 0.0
    %2976 = vmatpush2.msra.mxu0 0.0
    %2977 = vmatprep.subr.mxu0 0.0
    %2978 = vmatpush2.msra.mxu0 0.0
    %2979 = vmatprep.subr.mxu0 0.0
    %2980 = vmatpush2.msra.mxu0 0.0
    %2981 = vmatprep.mubr.f32.mxu0 0.0
    %2982 = vmatmul.mubr.f32.gmra.mxu0 %v2915
    %v2983 = vpop.f32.mrf.mxu0
    %v2984 = vadd.f32 0.0, %v2983
    %v2985 = vpop.f32.mrf.mxu0
    %2986 = vdwg.mxu0
    %2987 = vmatprep.subr.mxu0 0.0
    %2988 = vmatpush1.msra.mxu0 0.0
    %2989 = vmatprep.subr.mxu0 0.0
    %2990 = vmatpush1.msra.mxu0 0.0
    %2991 = vmatprep.subr.mxu0 0.0
    %2992 = vmatpush1.msra.mxu0 0.0
    %2993 = vmatprep.subr.mxu0 0.0
    %2994 = vmatpush1.msra.mxu0 0.0
    %2995 = vmatprep.subr.mxu0 0.0
    %2996 = vmatpush1.msra.mxu0 0.0
    %2997 = vmatprep.subr.mxu0 0.0
    %2998 = vmatpush1.msra.mxu0 0.0
    %2999 = vmatprep.subr.mxu0 0.0
    %3000 = vmatpush1.msra.mxu0 0.0
    %3001 = vmatprep.subr.mxu0 0.0
    %3002 = vmatpush1.msra.mxu0 0.0
    %3003 = vmatprep.subr.mxu0 0.0
    %3004 = vmatpush1.msra.mxu0 0.0
    %3005 = vmatprep.subr.mxu0 0.0
    %3006 = vmatpush1.msra.mxu0 0.0
    %3007 = vmatprep.subr.mxu0 0.0
    %3008 = vmatpush1.msra.mxu0 0.0
    %3009 = vmatprep.subr.mxu0 0.0
    %3010 = vmatpush1.msra.mxu0 0.0
    %3011 = vmatprep.subr.mxu0 0.0
    %3012 = vmatpush1.msra.mxu0 %v215
    %3013 = vmatprep.subr.mxu0 0.0
    %3014 = vmatpush1.msra.mxu0 %v214
    %3015 = vmatprep.subr.mxu0 0.0
    %3016 = vmatpush1.msra.mxu0 %v213
    %3017 = vmatprep.subr.mxu0 0.0
    %3018 = vmatpush1.msra.mxu0 %v212
    %3019 = vmatprep.subr.mxu0 0.0
    %3020 = vmatpush2.msra.mxu0 0.0
    %3021 = vmatprep.subr.mxu0 0.0
    %3022 = vmatpush2.msra.mxu0 0.0
    %3023 = vmatprep.subr.mxu0 0.0
    %3024 = vmatpush2.msra.mxu0 0.0
    %3025 = vmatprep.subr.mxu0 0.0
    %3026 = vmatpush2.msra.mxu0 0.0
    %3027 = vmatprep.subr.mxu0 0.0
    %3028 = vmatpush2.msra.mxu0 0.0
    %3029 = vmatprep.subr.mxu0 0.0
    %3030 = vmatpush2.msra.mxu0 0.0
    %3031 = vmatprep.subr.mxu0 0.0
    %3032 = vmatpush2.msra.mxu0 0.0
    %3033 = vmatprep.subr.mxu0 0.0
    %3034 = vmatpush2.msra.mxu0 0.0
    %3035 = vmatprep.subr.mxu0 0.0
    %3036 = vmatpush2.msra.mxu0 0.0
    %3037 = vmatprep.subr.mxu0 0.0
    %3038 = vmatpush2.msra.mxu0 0.0
    %3039 = vmatprep.subr.mxu0 0.0
    %3040 = vmatpush2.msra.mxu0 0.0
    %3041 = vmatprep.subr.mxu0 0.0
    %3042 = vmatpush2.msra.mxu0 0.0
    %3043 = vmatprep.subr.mxu0 0.0
    %3044 = vmatpush2.msra.mxu0 0.0
    %3045 = vmatprep.subr.mxu0 0.0
    %3046 = vmatpush2.msra.mxu0 0.0
    %3047 = vmatprep.subr.mxu0 0.0
    %3048 = vmatpush2.msra.mxu0 0.0
    %3049 = vmatprep.subr.mxu0 0.0
    %3050 = vmatpush2.msra.mxu0 0.0
    %3051 = vmatprep.mubr.f32.mxu0 0.0
    %3052 = vmatmul.mubr.f32.gmra.mxu0 %v2814
    %v3053 = vpop.f32.mrf.mxu0
    %v3054 = vadd.f32 %v2984, %v3053
    %v3055 = vpop.f32.mrf.mxu0
    %3056 = vdwg.mxu0
    %v3057 = vadd.f32 %v3054, %v567
    %v3058 = vxor.u32 %v3057, 2147483648
    %v3059 = vmul.f32 %v3058, 1.442695
    %v3060 = vpow.pop %v3059
    %v3061 = vadd.f32 %v3060, 1.0
    %v3062 = vrcp.pop %v3061
    %v3063 = vmul.f32 1.0, %v3062
    %v3064 = vmul.f32 %v3063, 2.0
    %v3065 = vsub.f32 %v3064, 1.0
    %v3066 = vmul.f32 %v3063, %v2633
    %3068 = vrot.lane.b32.xlu0 %v3065, 64
    %v3069 = vpop.permute.xlu0 %3068
    %v3071 = vmul.f32 %v3063, %v3069
    %3073 = vrot.lane.b32.xlu0 %v3071, 32
    %v3074 = vpop.permute.xlu0 %3073
    %v3076 = vadd.f32 %v3066, %v3074
    %v3077 = vtanh.pop %v3076
    %3079 = vrot.lane.b32.xlu0 %v3077, 64
    %v3080 = vpop.permute.xlu0 %3079
    %v3082 = vmul.f32 %v3063, %v3080
    %3084 = vrot.lane.b32.xlu0 %v2810, 32
    %v3085 = vpop.permute.xlu0 %3084
    %v3086 = vsel %vm222, %v3085, 0
    %3088 = vmatprep.subr.mxu0 0.0
    %3089 = vmatpush1.msra.mxu0 0.0
    %3090 = vmatprep.subr.mxu0 0.0
    %3091 = vmatpush1.msra.mxu0 0.0
    %3092 = vmatprep.subr.mxu0 0.0
    %3093 = vmatpush1.msra.mxu0 0.0
    %3094 = vmatprep.subr.mxu0 0.0
    %3095 = vmatpush1.msra.mxu0 0.0
    %3096 = vmatprep.subr.mxu0 0.0
    %3097 = vmatpush1.msra.mxu0 0.0
    %3098 = vmatprep.subr.mxu0 0.0
    %3099 = vmatpush1.msra.mxu0 0.0
    %3100 = vmatprep.subr.mxu0 0.0
    %3101 = vmatpush1.msra.mxu0 0.0
    %3102 = vmatprep.subr.mxu0 0.0
    %3103 = vmatpush1.msra.mxu0 0.0
    %3104 = vmatprep.subr.mxu0 0.0
    %3105 = vmatpush1.msra.mxu0 0.0
    %3106 = vmatprep.subr.mxu0 0.0
    %3107 = vmatpush1.msra.mxu0 0.0
    %3108 = vmatprep.subr.mxu0 0.0
    %3109 = vmatpush1.msra.mxu0 0.0
    %3110 = vmatprep.subr.mxu0 0.0
    %3111 = vmatpush1.msra.mxu0 0.0
    %3112 = vmatprep.subr.mxu0 0.0
    %3113 = vmatpush1.msra.mxu0 %v211
    %3114 = vmatprep.subr.mxu0 0.0
    %3115 = vmatpush1.msra.mxu0 %v210
    %3116 = vmatprep.subr.mxu0 0.0
    %3117 = vmatpush1.msra.mxu0 %v209
    %3118 = vmatprep.subr.mxu0 0.0
    %3119 = vmatpush1.msra.mxu0 %v208
    %3120 = vmatprep.subr.mxu0 0.0
    %3121 = vmatpush2.msra.mxu0 0.0
    %3122 = vmatprep.subr.mxu0 0.0
    %3123 = vmatpush2.msra.mxu0 0.0
    %3124 = vmatprep.subr.mxu0 0.0
    %3125 = vmatpush2.msra.mxu0 0.0
    %3126 = vmatprep.subr.mxu0 0.0
    %3127 = vmatpush2.msra.mxu0 0.0
    %3128 = vmatprep.subr.mxu0 0.0
    %3129 = vmatpush2.msra.mxu0 0.0
    %3130 = vmatprep.subr.mxu0 0.0
    %3131 = vmatpush2.msra.mxu0 0.0
    %3132 = vmatprep.subr.mxu0 0.0
    %3133 = vmatpush2.msra.mxu0 0.0
    %3134 = vmatprep.subr.mxu0 0.0
    %3135 = vmatpush2.msra.mxu0 0.0
    %3136 = vmatprep.subr.mxu0 0.0
    %3137 = vmatpush2.msra.mxu0 0.0
    %3138 = vmatprep.subr.mxu0 0.0
    %3139 = vmatpush2.msra.mxu0 0.0
    %3140 = vmatprep.subr.mxu0 0.0
    %3141 = vmatpush2.msra.mxu0 0.0
    %3142 = vmatprep.subr.mxu0 0.0
    %3143 = vmatpush2.msra.mxu0 0.0
    %3144 = vmatprep.subr.mxu0 0.0
    %3145 = vmatpush2.msra.mxu0 0.0
    %3146 = vmatprep.subr.mxu0 0.0
    %3147 = vmatpush2.msra.mxu0 0.0
    %3148 = vmatprep.subr.mxu0 0.0
    %3149 = vmatpush2.msra.mxu0 0.0
    %3150 = vmatprep.subr.mxu0 0.0
    %3151 = vmatpush2.msra.mxu0 0.0
    %3152 = vmatprep.mubr.f32.mxu0 0.0
    %3153 = vmatmul.mubr.f32.gmra.mxu0 %v3086
    %v3154 = vpop.f32.mrf.mxu0
    %v3155 = vadd.f32 0.0, %v3154
    %v3156 = vpop.f32.mrf.mxu0
    %3157 = vdwg.mxu0
    %3158 = vmatprep.subr.mxu0 0.0
    %3159 = vmatpush1.msra.mxu0 0.0
    %3160 = vmatprep.subr.mxu0 0.0
    %3161 = vmatpush1.msra.mxu0 0.0
    %3162 = vmatprep.subr.mxu0 0.0
    %3163 = vmatpush1.msra.mxu0 0.0
    %3164 = vmatprep.subr.mxu0 0.0
    %3165 = vmatpush1.msra.mxu0 0.0
    %3166 = vmatprep.subr.mxu0 0.0
    %3167 = vmatpush1.msra.mxu0 0.0
    %3168 = vmatprep.subr.mxu0 0.0
    %3169 = vmatpush1.msra.mxu0 0.0
    %3170 = vmatprep.subr.mxu0 0.0
    %3171 = vmatpush1.msra.mxu0 0.0
    %3172 = vmatprep.subr.mxu0 0.0
    %3173 = vmatpush1.msra.mxu0 0.0
    %3174 = vmatprep.subr.mxu0 0.0
    %3175 = vmatpush1.msra.mxu0 0.0
    %3176 = vmatprep.subr.mxu0 0.0
    %3177 = vmatpush1.msra.mxu0 0.0
    %3178 = vmatprep.subr.mxu0 0.0
    %3179 = vmatpush1.msra.mxu0 0.0
    %3180 = vmatprep.subr.mxu0 0.0
    %3181 = vmatpush1.msra.mxu0 0.0
    %3182 = vmatprep.subr.mxu0 0.0
    %3183 = vmatpush1.msra.mxu0 %v219
    %3184 = vmatprep.subr.mxu0 0.0
    %3185 = vmatpush1.msra.mxu0 %v218
    %3186 = vmatprep.subr.mxu0 0.0
    %3187 = vmatpush1.msra.mxu0 %v217
    %3188 = vmatprep.subr.mxu0 0.0
    %3189 = vmatpush1.msra.mxu0 %v216
    %3190 = vmatprep.subr.mxu0 0.0
    %3191 = vmatpush2.msra.mxu0 0.0
    %3192 = vmatprep.subr.mxu0 0.0
    %3193 = vmatpush2.msra.mxu0 0.0
    %3194 = vmatprep.subr.mxu0 0.0
    %3195 = vmatpush2.msra.mxu0 0.0
    %3196 = vmatprep.subr.mxu0 0.0
    %3197 = vmatpush2.msra.mxu0 0.0
    %3198 = vmatprep.subr.mxu0 0.0
    %3199 = vmatpush2.msra.mxu0 0.0
    %3200 = vmatprep.subr.mxu0 0.0
    %3201 = vmatpush2.msra.mxu0 0.0
    %3202 = vmatprep.subr.mxu0 0.0
    %3203 = vmatpush2.msra.mxu0 0.0
    %3204 = vmatprep.subr.mxu0 0.0
    %3205 = vmatpush2.msra.mxu0 0.0
    %3206 = vmatprep.subr.mxu0 0.0
    %3207 = vmatpush2.msra.mxu0 0.0
    %3208 = vmatprep.subr.mxu0 0.0
    %3209 = vmatpush2.msra.mxu0 0.0
    %3210 = vmatprep.subr.mxu0 0.0
    %3211 = vmatpush2.msra.mxu0 0.0
    %3212 = vmatprep.subr.mxu0 0.0
    %3213 = vmatpush2.msra.mxu0 0.0
    %3214 = vmatprep.subr.mxu0 0.0
    %3215 = vmatpush2.msra.mxu0 0.0
    %3216 = vmatprep.subr.mxu0 0.0
    %3217 = vmatpush2.msra.mxu0 0.0
    %3218 = vmatprep.subr.mxu0 0.0
    %3219 = vmatpush2.msra.mxu0 0.0
    %3220 = vmatprep.subr.mxu0 0.0
    %3221 = vmatpush2.msra.mxu0 0.0
    %3222 = vmatprep.mubr.f32.mxu0 0.0
    %3223 = vmatmul.mubr.f32.gmra.mxu0 %v2915
    %v3224 = vpop.f32.mrf.mxu0
    %v3225 = vadd.f32 %v3155, %v3224
    %v3226 = vpop.f32.mrf.mxu0
    %3227 = vdwg.mxu0
    %v3228 = vadd.f32 %v3225, %v1011
    %v3229 = vxor.u32 %v3228, 2147483648
    %v3230 = vmul.f32 %v3229, 1.442695
    %v3231 = vpow.pop %v3230
    %v3232 = vadd.f32 %v3231, 1.0
    %v3233 = vrcp.pop %v3232
    %v3234 = vmul.f32 1.0, %v3233
    %v3235 = vmul.f32 %v3234, 2.0
    %v3236 = vsub.f32 %v3235, 1.0
    %v3237 = vmul.f32 %v3234, %v2804
    %3239 = vrot.lane.b32.xlu0 %v3236, 64
    %v3240 = vpop.permute.xlu0 %3239
    %v3242 = vmul.f32 %v3234, %v3240
    %3244 = vrot.lane.b32.xlu0 %v3242, 32
    %v3245 = vpop.permute.xlu0 %3244
    %v3247 = vadd.f32 %v3237, %v3245
    %v3248 = vtanh.pop %v3247
    %3250 = vrot.lane.b32.xlu0 %v3248, 64
    %v3251 = vpop.permute.xlu0 %3250
    %v3253 = vmul.f32 %v3234, %v3251
    %3255 = vrot.lane.b32.xlu0 %v3082, 32
    %v3256 = vpop.permute.xlu0 %3255
    %v3257 = vsel %vm222, %v3256, 0
    %3259 = vmatprep.subr.mxu0 0.0
    %3260 = vmatpush1.msra.mxu0 0.0
    %3261 = vmatprep.subr.mxu0 0.0
    %3262 = vmatpush1.msra.mxu0 0.0
    %3263 = vmatprep.subr.mxu0 0.0
    %3264 = vmatpush1.msra.mxu0 0.0
    %3265 = vmatprep.subr.mxu0 0.0
    %3266 = vmatpush1.msra.mxu0 0.0
    %3267 = vmatprep.subr.mxu0 0.0
    %3268 = vmatpush1.msra.mxu0 0.0
    %3269 = vmatprep.subr.mxu0 0.0
    %3270 = vmatpush1.msra.mxu0 0.0
    %3271 = vmatprep.subr.mxu0 0.0
    %3272 = vmatpush1.msra.mxu0 0.0
    %3273 = vmatprep.subr.mxu0 0.0
    %3274 = vmatpush1.msra.mxu0 0.0
    %3275 = vmatprep.subr.mxu0 0.0
    %3276 = vmatpush1.msra.mxu0 0.0
    %3277 = vmatprep.subr.mxu0 0.0
    %3278 = vmatpush1.msra.mxu0 0.0
    %3279 = vmatprep.subr.mxu0 0.0
    %3280 = vmatpush1.msra.mxu0 0.0
    %3281 = vmatprep.subr.mxu0 0.0
    %3282 = vmatpush1.msra.mxu0 0.0
    %3283 = vmatprep.subr.mxu0 0.0
    %3284 = vmatpush1.msra.mxu0 %v207
    %3285 = vmatprep.subr.mxu0 0.0
    %3286 = vmatpush1.msra.mxu0 %v206
    %3287 = vmatprep.subr.mxu0 0.0
    %3288 = vmatpush1.msra.mxu0 %v205
    %3289 = vmatprep.subr.mxu0 0.0
    %3290 = vmatpush1.msra.mxu0 %v204
    %3291 = vmatprep.subr.mxu0 0.0
    %3292 = vmatpush2.msra.mxu0 0.0
    %3293 = vmatprep.subr.mxu0 0.0
    %3294 = vmatpush2.msra.mxu0 0.0
    %3295 = vmatprep.subr.mxu0 0.0
    %3296 = vmatpush2.msra.mxu0 0.0
    %3297 = vmatprep.subr.mxu0 0.0
    %3298 = vmatpush2.msra.mxu0 0.0
    %3299 = vmatprep.subr.mxu0 0.0
    %3300 = vmatpush2.msra.mxu0 0.0
    %3301 = vmatprep.subr.mxu0 0.0
    %3302 = vmatpush2.msra.mxu0 0.0
    %3303 = vmatprep.subr.mxu0 0.0
    %3304 = vmatpush2.msra.mxu0 0.0
    %3305 = vmatprep.subr.mxu0 0.0
    %3306 = vmatpush2.msra.mxu0 0.0
    %3307 = vmatprep.subr.mxu0 0.0
    %3308 = vmatpush2.msra.mxu0 0.0
    %3309 = vmatprep.subr.mxu0 0.0
    %3310 = vmatpush2.msra.mxu0 0.0
    %3311 = vmatprep.subr.mxu0 0.0
    %3312 = vmatpush2.msra.mxu0 0.0
    %3313 = vmatprep.subr.mxu0 0.0
    %3314 = vmatpush2.msra.mxu0 0.0
    %3315 = vmatprep.subr.mxu0 0.0
    %3316 = vmatpush2.msra.mxu0 0.0
    %3317 = vmatprep.subr.mxu0 0.0
    %3318 = vmatpush2.msra.mxu0 0.0
    %3319 = vmatprep.subr.mxu0 0.0
    %3320 = vmatpush2.msra.mxu0 0.0
    %3321 = vmatprep.subr.mxu0 0.0
    %3322 = vmatpush2.msra.mxu0 0.0
    %3323 = vmatprep.mubr.f32.mxu0 0.0
    %3324 = vmatmul.mubr.f32.gmra.mxu0 %v3257
    %v3325 = vpop.f32.mrf.mxu0
    %v3326 = vadd.f32 0.0, %v3325
    %v3327 = vpop.f32.mrf.mxu0
    %3328 = vdwg.mxu0
    %3330 = vrot.lane.b32.xlu0 %v2911, 32
    %v3331 = vpop.permute.xlu0 %3330
    %v3332 = vsel %vm222, %v3331, 0
    %3334 = vmatprep.subr.mxu0 0.0
    %3335 = vmatpush1.msra.mxu0 0.0
    %3336 = vmatprep.subr.mxu0 0.0
    %3337 = vmatpush1.msra.mxu0 0.0
    %3338 = vmatprep.subr.mxu0 0.0
    %3339 = vmatpush1.msra.mxu0 0.0
    %3340 = vmatprep.subr.mxu0 0.0
    %3341 = vmatpush1.msra.mxu0 0.0
    %3342 = vmatprep.subr.mxu0 0.0
    %3343 = vmatpush1.msra.mxu0 0.0
    %3344 = vmatprep.subr.mxu0 0.0
    %3345 = vmatpush1.msra.mxu0 0.0
    %3346 = vmatprep.subr.mxu0 0.0
    %3347 = vmatpush1.msra.mxu0 0.0
    %3348 = vmatprep.subr.mxu0 0.0
    %3349 = vmatpush1.msra.mxu0 0.0
    %3350 = vmatprep.subr.mxu0 0.0
    %3351 = vmatpush1.msra.mxu0 0.0
    %3352 = vmatprep.subr.mxu0 0.0
    %3353 = vmatpush1.msra.mxu0 0.0
    %3354 = vmatprep.subr.mxu0 0.0
    %3355 = vmatpush1.msra.mxu0 0.0
    %3356 = vmatprep.subr.mxu0 0.0
    %3357 = vmatpush1.msra.mxu0 0.0
    %3358 = vmatprep.subr.mxu0 0.0
    %3359 = vmatpush1.msra.mxu0 %v215
    %3360 = vmatprep.subr.mxu0 0.0
    %3361 = vmatpush1.msra.mxu0 %v214
    %3362 = vmatprep.subr.mxu0 0.0
    %3363 = vmatpush1.msra.mxu0 %v213
    %3364 = vmatprep.subr.mxu0 0.0
    %3365 = vmatpush1.msra.mxu0 %v212
    %3366 = vmatprep.subr.mxu0 0.0
    %3367 = vmatpush2.msra.mxu0 0.0
    %3368 = vmatprep.subr.mxu0 0.0
    %3369 = vmatpush2.msra.mxu0 0.0
    %3370 = vmatprep.subr.mxu0 0.0
    %3371 = vmatpush2.msra.mxu0 0.0
    %3372 = vmatprep.subr.mxu0 0.0
    %3373 = vmatpush2.msra.mxu0 0.0
    %3374 = vmatprep.subr.mxu0 0.0
    %3375 = vmatpush2.msra.mxu0 0.0
    %3376 = vmatprep.subr.mxu0 0.0
    %3377 = vmatpush2.msra.mxu0 0.0
    %3378 = vmatprep.subr.mxu0 0.0
    %3379 = vmatpush2.msra.mxu0 0.0
    %3380 = vmatprep.subr.mxu0 0.0
    %3381 = vmatpush2.msra.mxu0 0.0
    %3382 = vmatprep.subr.mxu0 0.0
    %3383 = vmatpush2.msra.mxu0 0.0
    %3384 = vmatprep.subr.mxu0 0.0
    %3385 = vmatpush2.msra.mxu0 0.0
    %3386 = vmatprep.subr.mxu0 0.0
    %3387 = vmatpush2.msra.mxu0 0.0
    %3388 = vmatprep.subr.mxu0 0.0
    %3389 = vmatpush2.msra.mxu0 0.0
    %3390 = vmatprep.subr.mxu0 0.0
    %3391 = vmatpush2.msra.mxu0 0.0
    %3392 = vmatprep.subr.mxu0 0.0
    %3393 = vmatpush2.msra.mxu0 0.0
    %3394 = vmatprep.subr.mxu0 0.0
    %3395 = vmatpush2.msra.mxu0 0.0
    %3396 = vmatprep.subr.mxu0 0.0
    %3397 = vmatpush2.msra.mxu0 0.0
    %3398 = vmatprep.mubr.f32.mxu0 0.0
    %3399 = vmatmul.mubr.f32.gmra.mxu0 %v3332
    %v3400 = vpop.f32.mrf.mxu0
    %v3401 = vadd.f32 %v3326, %v3400
    %v3402 = vpop.f32.mrf.mxu0
    %3403 = vdwg.mxu0
    %v3404 = vadd.f32 %v3401, %v567
    %v3405 = vxor.u32 %v3404, 2147483648
    %v3406 = vmul.f32 %v3405, 1.442695
    %v3407 = vpow.pop %v3406
    %v3408 = vadd.f32 %v3407, 1.0
    %v3409 = vrcp.pop %v3408
    %v3410 = vmul.f32 1.0, %v3409
    %v3411 = vmul.f32 %v3410, 2.0
    %v3412 = vsub.f32 %v3411, 1.0
    %v3413 = vmul.f32 %v3410, %v3076
    %3415 = vrot.lane.b32.xlu0 %v3412, 64
    %v3416 = vpop.permute.xlu0 %3415
    %v3418 = vmul.f32 %v3410, %v3416
    %3420 = vrot.lane.b32.xlu0 %v3418, 32
    %v3421 = vpop.permute.xlu0 %3420
    %v3423 = vadd.f32 %v3413, %v3421
    %v3424 = vtanh.pop %v3423
    %3426 = vrot.lane.b32.xlu0 %v3424, 64
    %v3427 = vpop.permute.xlu0 %3426
    %v3429 = vmul.f32 %v3410, %v3427
    %3431 = vrot.lane.b32.xlu0 %v3253, 32
    %v3432 = vpop.permute.xlu0 %3431
    %v3433 = vsel %vm222, %v3432, 0
    %3435 = vmatprep.subr.mxu0 0.0
    %3436 = vmatpush1.msra.mxu0 0.0
    %3437 = vmatprep.subr.mxu0 0.0
    %3438 = vmatpush1.msra.mxu0 0.0
    %3439 = vmatprep.subr.mxu0 0.0
    %3440 = vmatpush1.msra.mxu0 0.0
    %3441 = vmatprep.subr.mxu0 0.0
    %3442 = vmatpush1.msra.mxu0 0.0
    %3443 = vmatprep.subr.mxu0 0.0
    %3444 = vmatpush1.msra.mxu0 0.0
    %3445 = vmatprep.subr.mxu0 0.0
    %3446 = vmatpush1.msra.mxu0 0.0
    %3447 = vmatprep.subr.mxu0 0.0
    %3448 = vmatpush1.msra.mxu0 0.0
    %3449 = vmatprep.subr.mxu0 0.0
    %3450 = vmatpush1.msra.mxu0 0.0
    %3451 = vmatprep.subr.mxu0 0.0
    %3452 = vmatpush1.msra.mxu0 0.0
    %3453 = vmatprep.subr.mxu0 0.0
    %3454 = vmatpush1.msra.mxu0 0.0
    %3455 = vmatprep.subr.mxu0 0.0
    %3456 = vmatpush1.msra.mxu0 0.0
    %3457 = vmatprep.subr.mxu0 0.0
    %3458 = vmatpush1.msra.mxu0 0.0
    %3459 = vmatprep.subr.mxu0 0.0
    %3460 = vmatpush1.msra.mxu0 %v211
    %3461 = vmatprep.subr.mxu0 0.0
    %3462 = vmatpush1.msra.mxu0 %v210
    %3463 = vmatprep.subr.mxu0 0.0
    %3464 = vmatpush1.msra.mxu0 %v209
    %3465 = vmatprep.subr.mxu0 0.0
    %3466 = vmatpush1.msra.mxu0 %v208
    %3467 = vmatprep.subr.mxu0 0.0
    %3468 = vmatpush2.msra.mxu0 0.0
    %3469 = vmatprep.subr.mxu0 0.0
    %3470 = vmatpush2.msra.mxu0 0.0
    %3471 = vmatprep.subr.mxu0 0.0
    %3472 = vmatpush2.msra.mxu0 0.0
    %3473 = vmatprep.subr.mxu0 0.0
    %3474 = vmatpush2.msra.mxu0 0.0
    %3475 = vmatprep.subr.mxu0 0.0
    %3476 = vmatpush2.msra.mxu0 0.0
    %3477 = vmatprep.subr.mxu0 0.0
    %3478 = vmatpush2.msra.mxu0 0.0
    %3479 = vmatprep.subr.mxu0 0.0
    %3480 = vmatpush2.msra.mxu0 0.0
    %3481 = vmatprep.subr.mxu0 0.0
    %3482 = vmatpush2.msra.mxu0 0.0
    %3483 = vmatprep.subr.mxu0 0.0
    %3484 = vmatpush2.msra.mxu0 0.0
    %3485 = vmatprep.subr.mxu0 0.0
    %3486 = vmatpush2.msra.mxu0 0.0
    %3487 = vmatprep.subr.mxu0 0.0
    %3488 = vmatpush2.msra.mxu0 0.0
    %3489 = vmatprep.subr.mxu0 0.0
    %3490 = vmatpush2.msra.mxu0 0.0
    %3491 = vmatprep.subr.mxu0 0.0
    %3492 = vmatpush2.msra.mxu0 0.0
    %3493 = vmatprep.subr.mxu0 0.0
    %3494 = vmatpush2.msra.mxu0 0.0
    %3495 = vmatprep.subr.mxu0 0.0
    %3496 = vmatpush2.msra.mxu0 0.0
    %3497 = vmatprep.subr.mxu0 0.0
    %3498 = vmatpush2.msra.mxu0 0.0
    %3499 = vmatprep.mubr.f32.mxu0 0.0
    %3500 = vmatmul.mubr.f32.gmra.mxu0 %v3433
    %v3501 = vpop.f32.mrf.mxu0
    %v3502 = vadd.f32 0.0, %v3501
    %v3503 = vpop.f32.mrf.mxu0
    %3504 = vdwg.mxu0
    %3505 = vmatprep.subr.mxu0 0.0
    %3506 = vmatpush1.msra.mxu0 0.0
    %3507 = vmatprep.subr.mxu0 0.0
    %3508 = vmatpush1.msra.mxu0 0.0
    %3509 = vmatprep.subr.mxu0 0.0
    %3510 = vmatpush1.msra.mxu0 0.0
    %3511 = vmatprep.subr.mxu0 0.0
    %3512 = vmatpush1.msra.mxu0 0.0
    %3513 = vmatprep.subr.mxu0 0.0
    %3514 = vmatpush1.msra.mxu0 0.0
    %3515 = vmatprep.subr.mxu0 0.0
    %3516 = vmatpush1.msra.mxu0 0.0
    %3517 = vmatprep.subr.mxu0 0.0
    %3518 = vmatpush1.msra.mxu0 0.0
    %3519 = vmatprep.subr.mxu0 0.0
    %3520 = vmatpush1.msra.mxu0 0.0
    %3521 = vmatprep.subr.mxu0 0.0
    %3522 = vmatpush1.msra.mxu0 0.0
    %3523 = vmatprep.subr.mxu0 0.0
    %3524 = vmatpush1.msra.mxu0 0.0
    %3525 = vmatprep.subr.mxu0 0.0
    %3526 = vmatpush1.msra.mxu0 0.0
    %3527 = vmatprep.subr.mxu0 0.0
    %3528 = vmatpush1.msra.mxu0 0.0
    %3529 = vmatprep.subr.mxu0 0.0
    %3530 = vmatpush1.msra.mxu0 %v219
    %3531 = vmatprep.subr.mxu0 0.0
    %3532 = vmatpush1.msra.mxu0 %v218
    %3533 = vmatprep.subr.mxu0 0.0
    %3534 = vmatpush1.msra.mxu0 %v217
    %3535 = vmatprep.subr.mxu0 0.0
    %3536 = vmatpush1.msra.mxu0 %v216
    %3537 = vmatprep.subr.mxu0 0.0
    %3538 = vmatpush2.msra.mxu0 0.0
    %3539 = vmatprep.subr.mxu0 0.0
    %3540 = vmatpush2.msra.mxu0 0.0
    %3541 = vmatprep.subr.mxu0 0.0
    %3542 = vmatpush2.msra.mxu0 0.0
    %3543 = vmatprep.subr.mxu0 0.0
    %3544 = vmatpush2.msra.mxu0 0.0
    %3545 = vmatprep.subr.mxu0 0.0
    %3546 = vmatpush2.msra.mxu0 0.0
    %3547 = vmatprep.subr.mxu0 0.0
    %3548 = vmatpush2.msra.mxu0 0.0
    %3549 = vmatprep.subr.mxu0 0.0
    %3550 = vmatpush2.msra.mxu0 0.0
    %3551 = vmatprep.subr.mxu0 0.0
    %3552 = vmatpush2.msra.mxu0 0.0
    %3553 = vmatprep.subr.mxu0 0.0
    %3554 = vmatpush2.msra.mxu0 0.0
    %3555 = vmatprep.subr.mxu0 0.0
    %3556 = vmatpush2.msra.mxu0 0.0
    %3557 = vmatprep.subr.mxu0 0.0
    %3558 = vmatpush2.msra.mxu0 0.0
    %3559 = vmatprep.subr.mxu0 0.0
    %3560 = vmatpush2.msra.mxu0 0.0
    %3561 = vmatprep.subr.mxu0 0.0
    %3562 = vmatpush2.msra.mxu0 0.0
    %3563 = vmatprep.subr.mxu0 0.0
    %3564 = vmatpush2.msra.mxu0 0.0
    %3565 = vmatprep.subr.mxu0 0.0
    %3566 = vmatpush2.msra.mxu0 0.0
    %3567 = vmatprep.subr.mxu0 0.0
    %3568 = vmatpush2.msra.mxu0 0.0
    %3569 = vmatprep.mubr.f32.mxu0 0.0
    %3570 = vmatmul.mubr.f32.gmra.mxu0 %v3257
    %v3571 = vpop.f32.mrf.mxu0
    %v3572 = vadd.f32 %v3502, %v3571
    %v3573 = vpop.f32.mrf.mxu0
    %3574 = vdwg.mxu0
    %v3575 = vadd.f32 %v3572, %v1011
    %v3576 = vxor.u32 %v3575, 2147483648
    %v3577 = vmul.f32 %v3576, 1.442695
    %v3578 = vpow.pop %v3577
    %v3579 = vadd.f32 %v3578, 1.0
    %v3580 = vrcp.pop %v3579
    %v3581 = vmul.f32 1.0, %v3580
    %v3582 = vmul.f32 %v3581, 2.0
    %v3583 = vsub.f32 %v3582, 1.0
    %v3584 = vmul.f32 %v3581, %v3247
    %3586 = vrot.lane.b32.xlu0 %v3583, 64
    %v3587 = vpop.permute.xlu0 %3586
    %v3589 = vmul.f32 %v3581, %v3587
    %3591 = vrot.lane.b32.xlu0 %v3589, 32
    %v3592 = vpop.permute.xlu0 %3591
    %v3594 = vadd.f32 %v3584, %v3592
    %v3595 = vtanh.pop %v3594
    %3597 = vrot.lane.b32.xlu0 %v3595, 64
    %v3598 = vpop.permute.xlu0 %3597
    %v3600 = vmul.f32 %v3581, %v3598
    %3602 = vrot.lane.b32.xlu0 %v3600, 32
    %v3603 = vpop.permute.xlu0 %3602
    %v3604 = vsel %vm222, %v3603, 0
    %3606 = vmatprep.subr.mxu0 0.0
    %3607 = vmatpush1.msra.mxu0 0.0
    %3608 = vmatprep.subr.mxu0 0.0
    %3609 = vmatpush1.msra.mxu0 0.0
    %3610 = vmatprep.subr.mxu0 0.0
    %3611 = vmatpush1.msra.mxu0 0.0
    %3612 = vmatprep.subr.mxu0 0.0
    %3613 = vmatpush1.msra.mxu0 0.0
    %3614 = vmatprep.subr.mxu0 0.0
    %3615 = vmatpush1.msra.mxu0 0.0
    %3616 = vmatprep.subr.mxu0 0.0
    %3617 = vmatpush1.msra.mxu0 0.0
    %3618 = vmatprep.subr.mxu0 0.0
    %3619 = vmatpush1.msra.mxu0 0.0
    %3620 = vmatprep.subr.mxu0 0.0
    %3621 = vmatpush1.msra.mxu0 0.0
    %3622 = vmatprep.subr.mxu0 0.0
    %3623 = vmatpush1.msra.mxu0 0.0
    %3624 = vmatprep.subr.mxu0 0.0
    %3625 = vmatpush1.msra.mxu0 0.0
    %3626 = vmatprep.subr.mxu0 0.0
    %3627 = vmatpush1.msra.mxu0 0.0
    %3628 = vmatprep.subr.mxu0 0.0
    %3629 = vmatpush1.msra.mxu0 0.0
    %3630 = vmatprep.subr.mxu0 0.0
    %3631 = vmatpush1.msra.mxu0 %v211
    %3632 = vmatprep.subr.mxu0 0.0
    %3633 = vmatpush1.msra.mxu0 %v210
    %3634 = vmatprep.subr.mxu0 0.0
    %3635 = vmatpush1.msra.mxu0 %v209
    %3636 = vmatprep.subr.mxu0 0.0
    %3637 = vmatpush1.msra.mxu0 %v208
    %3638 = vmatprep.subr.mxu0 0.0
    %3639 = vmatpush2.msra.mxu0 0.0
    %3640 = vmatprep.subr.mxu0 0.0
    %3641 = vmatpush2.msra.mxu0 0.0
    %3642 = vmatprep.subr.mxu0 0.0
    %3643 = vmatpush2.msra.mxu0 0.0
    %3644 = vmatprep.subr.mxu0 0.0
    %3645 = vmatpush2.msra.mxu0 0.0
    %3646 = vmatprep.subr.mxu0 0.0
    %3647 = vmatpush2.msra.mxu0 0.0
    %3648 = vmatprep.subr.mxu0 0.0
    %3649 = vmatpush2.msra.mxu0 0.0
    %3650 = vmatprep.subr.mxu0 0.0
    %3651 = vmatpush2.msra.mxu0 0.0
    %3652 = vmatprep.subr.mxu0 0.0
    %3653 = vmatpush2.msra.mxu0 0.0
    %3654 = vmatprep.subr.mxu0 0.0
    %3655 = vmatpush2.msra.mxu0 0.0
    %3656 = vmatprep.subr.mxu0 0.0
    %3657 = vmatpush2.msra.mxu0 0.0
    %3658 = vmatprep.subr.mxu0 0.0
    %3659 = vmatpush2.msra.mxu0 0.0
    %3660 = vmatprep.subr.mxu0 0.0
    %3661 = vmatpush2.msra.mxu0 0.0
    %3662 = vmatprep.subr.mxu0 0.0
    %3663 = vmatpush2.msra.mxu0 0.0
    %3664 = vmatprep.subr.mxu0 0.0
    %3665 = vmatpush2.msra.mxu0 0.0
    %3666 = vmatprep.subr.mxu0 0.0
    %3667 = vmatpush2.msra.mxu0 0.0
    %3668 = vmatprep.subr.mxu0 0.0
    %3669 = vmatpush2.msra.mxu0 0.0
    %3670 = vmatprep.mubr.f32.mxu0 0.0
    %3671 = vmatmul.mubr.f32.gmra.mxu0 %v3604
    %v3672 = vpop.f32.mrf.mxu0
    %v3673 = vadd.f32 0.0, %v3672
    %v3674 = vpop.f32.mrf.mxu0
    %3675 = vdwg.mxu0
    %3677 = vrot.lane.b32.xlu0 %v3429, 32
    %v3678 = vpop.permute.xlu0 %3677
    %v3679 = vsel %vm222, %v3678, 0
    %3681 = vmatprep.subr.mxu0 0.0
    %3682 = vmatpush1.msra.mxu0 0.0
    %3683 = vmatprep.subr.mxu0 0.0
    %3684 = vmatpush1.msra.mxu0 0.0
    %3685 = vmatprep.subr.mxu0 0.0
    %3686 = vmatpush1.msra.mxu0 0.0
    %3687 = vmatprep.subr.mxu0 0.0
    %3688 = vmatpush1.msra.mxu0 0.0
    %3689 = vmatprep.subr.mxu0 0.0
    %3690 = vmatpush1.msra.mxu0 0.0
    %3691 = vmatprep.subr.mxu0 0.0
    %3692 = vmatpush1.msra.mxu0 0.0
    %3693 = vmatprep.subr.mxu0 0.0
    %3694 = vmatpush1.msra.mxu0 0.0
    %3695 = vmatprep.subr.mxu0 0.0
    %3696 = vmatpush1.msra.mxu0 0.0
    %3697 = vmatprep.subr.mxu0 0.0
    %3698 = vmatpush1.msra.mxu0 0.0
    %3699 = vmatprep.subr.mxu0 0.0
    %3700 = vmatpush1.msra.mxu0 0.0
    %3701 = vmatprep.subr.mxu0 0.0
    %3702 = vmatpush1.msra.mxu0 0.0
    %3703 = vmatprep.subr.mxu0 0.0
    %3704 = vmatpush1.msra.mxu0 0.0
    %3705 = vmatprep.subr.mxu0 0.0
    %3706 = vmatpush1.msra.mxu0 %v219
    %3707 = vmatprep.subr.mxu0 0.0
    %3708 = vmatpush1.msra.mxu0 %v218
    %3709 = vmatprep.subr.mxu0 0.0
    %3710 = vmatpush1.msra.mxu0 %v217
    %3711 = vmatprep.subr.mxu0 0.0
    %3712 = vmatpush1.msra.mxu0 %v216
    %3713 = vmatprep.subr.mxu0 0.0
    %3714 = vmatpush2.msra.mxu0 0.0
    %3715 = vmatprep.subr.mxu0 0.0
    %3716 = vmatpush2.msra.mxu0 0.0
    %3717 = vmatprep.subr.mxu0 0.0
    %3718 = vmatpush2.msra.mxu0 0.0
    %3719 = vmatprep.subr.mxu0 0.0
    %3720 = vmatpush2.msra.mxu0 0.0
    %3721 = vmatprep.subr.mxu0 0.0
    %3722 = vmatpush2.msra.mxu0 0.0
    %3723 = vmatprep.subr.mxu0 0.0
    %3724 = vmatpush2.msra.mxu0 0.0
    %3725 = vmatprep.subr.mxu0 0.0
    %3726 = vmatpush2.msra.mxu0 0.0
    %3727 = vmatprep.subr.mxu0 0.0
    %3728 = vmatpush2.msra.mxu0 0.0
    %3729 = vmatprep.subr.mxu0 0.0
    %3730 = vmatpush2.msra.mxu0 0.0
    %3731 = vmatprep.subr.mxu0 0.0
    %3732 = vmatpush2.msra.mxu0 0.0
    %3733 = vmatprep.subr.mxu0 0.0
    %3734 = vmatpush2.msra.mxu0 0.0
    %3735 = vmatprep.subr.mxu0 0.0
    %3736 = vmatpush2.msra.mxu0 0.0
    %3737 = vmatprep.subr.mxu0 0.0
    %3738 = vmatpush2.msra.mxu0 0.0
    %3739 = vmatprep.subr.mxu0 0.0
    %3740 = vmatpush2.msra.mxu0 0.0
    %3741 = vmatprep.subr.mxu0 0.0
    %3742 = vmatpush2.msra.mxu0 0.0
    %3743 = vmatprep.subr.mxu0 0.0
    %3744 = vmatpush2.msra.mxu0 0.0
    %3745 = vmatprep.mubr.f32.mxu0 0.0
    %3746 = vmatmul.mubr.f32.gmra.mxu0 %v3679
    %v3747 = vpop.f32.mrf.mxu0
    %v3748 = vadd.f32 %v3673, %v3747
    %v3749 = vpop.f32.mrf.mxu0
    %3750 = vdwg.mxu0
    %v3751 = vadd.f32 %v3748, %v1011
    %v3752 = vxor.u32 %v3751, 2147483648
    %v3753 = vmul.f32 %v3752, 1.442695
    %v3754 = vpow.pop %v3753
    %v3755 = vadd.f32 %v3754, 1.0
    %v3756 = vrcp.pop %v3755
    %v3757 = vmul.f32 1.0, %v3756
    %v3758 = vmul.f32 %v3757, 2.0
    %v3759 = vsub.f32 %v3758, 1.0
    %v3760 = vmul.f32 %v3757, %v3594
    %3762 = vrot.lane.b32.xlu0 %v3759, 64
    %v3763 = vpop.permute.xlu0 %3762
    %v3765 = vmul.f32 %v3757, %v3763
    %3767 = vrot.lane.b32.xlu0 %v3765, 32
    %v3768 = vpop.permute.xlu0 %3767
    %v3770 = vadd.f32 %v3760, %v3768
    %v3771 = vtanh.pop %v3770
    %3773 = vrot.lane.b32.xlu0 %v3771, 64
    %v3774 = vpop.permute.xlu0 %3773
    %v3776 = vmul.f32 %v3757, %v3774
    %v3777 = vld [vmem:[%s10] sm:$0xff]
    %v3778 = vld [vmem:[%s10 + $0x8] sm:$0xff]
    %v3779 = vld [vmem:[%s10 + $0x10] sm:$0xff]
    %v3780 = vld [vmem:[%s10 + $0x18] sm:$0xff]
    %v3781 = vld [vmem:[#allocation2] sm:$0x1]
    %v3783 = vlaneseq
    %v3784 = vshrl.u32 %v3783, 7
    %v3785 = vsub.s32 0, %v3784
    %v3786 = vrot.slane %v3781, %v3785
    %3789 = vrot.lane.b32.xlu0 %v3776, 32
    %v3790 = vpop.permute.xlu0 %3789
    %v3791 = vsel %vm222, %v3790, 0
    %3793 = vmatprep.subr.mxu0 0.0
    %3794 = vmatpush1.msra.mxu0 0.0
    %3795 = vmatprep.subr.mxu0 0.0
    %3796 = vmatpush1.msra.mxu0 0.0
    %3797 = vmatprep.subr.mxu0 0.0
    %3798 = vmatpush1.msra.mxu0 0.0
    %3799 = vmatprep.subr.mxu0 0.0
    %3800 = vmatpush1.msra.mxu0 0.0
    %3801 = vmatprep.subr.mxu0 0.0
    %3802 = vmatpush1.msra.mxu0 0.0
    %3803 = vmatprep.subr.mxu0 0.0
    %3804 = vmatpush1.msra.mxu0 0.0
    %3805 = vmatprep.subr.mxu0 0.0
    %3806 = vmatpush1.msra.mxu0 0.0
    %3807 = vmatprep.subr.mxu0 0.0
    %3808 = vmatpush1.msra.mxu0 0.0
    %3809 = vmatprep.subr.mxu0 0.0
    %3810 = vmatpush1.msra.mxu0 0.0
    %3811 = vmatprep.subr.mxu0 0.0
    %3812 = vmatpush1.msra.mxu0 0.0
    %3813 = vmatprep.subr.mxu0 0.0
    %3814 = vmatpush1.msra.mxu0 0.0
    %3815 = vmatprep.subr.mxu0 0.0
    %3816 = vmatpush1.msra.mxu0 0.0
    %3817 = vmatprep.subr.mxu0 0.0
    %3818 = vmatpush1.msra.mxu0 %v3780
    %3819 = vmatprep.subr.mxu0 0.0
    %3820 = vmatpush1.msra.mxu0 %v3779
    %3821 = vmatprep.subr.mxu0 0.0
    %3822 = vmatpush1.msra.mxu0 %v3778
    %3823 = vmatprep.subr.mxu0 0.0
    %3824 = vmatpush1.msra.mxu0 %v3777
    %3825 = vmatprep.subr.mxu0 0.0
    %3826 = vmatpush2.msra.mxu0 0.0
    %3827 = vmatprep.subr.mxu0 0.0
    %3828 = vmatpush2.msra.mxu0 0.0
    %3829 = vmatprep.subr.mxu0 0.0
    %3830 = vmatpush2.msra.mxu0 0.0
    %3831 = vmatprep.subr.mxu0 0.0
    %3832 = vmatpush2.msra.mxu0 0.0
    %3833 = vmatprep.subr.mxu0 0.0
    %3834 = vmatpush2.msra.mxu0 0.0
    %3835 = vmatprep.subr.mxu0 0.0
    %3836 = vmatpush2.msra.mxu0 0.0
    %3837 = vmatprep.subr.mxu0 0.0
    %3838 = vmatpush2.msra.mxu0 0.0
    %3839 = vmatprep.subr.mxu0 0.0
    %3840 = vmatpush2.msra.mxu0 0.0
    %3841 = vmatprep.subr.mxu0 0.0
    %3842 = vmatpush2.msra.mxu0 0.0
    %3843 = vmatprep.subr.mxu0 0.0
    %3844 = vmatpush2.msra.mxu0 0.0
    %3845 = vmatprep.subr.mxu0 0.0
    %3846 = vmatpush2.msra.mxu0 0.0
    %3847 = vmatprep.subr.mxu0 0.0
    %3848 = vmatpush2.msra.mxu0 0.0
    %3849 = vmatprep.subr.mxu0 0.0
    %3850 = vmatpush2.msra.mxu0 0.0
    %3851 = vmatprep.subr.mxu0 0.0
    %3852 = vmatpush2.msra.mxu0 0.0
    %3853 = vmatprep.subr.mxu0 0.0
    %3854 = vmatpush2.msra.mxu0 0.0
    %3855 = vmatprep.subr.mxu0 0.0
    %3856 = vmatpush2.msra.mxu0 0.0
    %3857 = vmatprep.mubr.f32.mxu0 0.0
    %3858 = vmatmul.mubr.f32.gmra.mxu0 %v1314
    %v3859 = vpop.f32.mrf.mxu0
    %v3860 = vadd.f32 %v3786, %v3859
    %v3861 = vpop.f32.mrf.mxu0
    %3862 = vmatprep.mubr.f32.mxu0 0.0
    %3863 = vmatmul.mubr.f32.gmra.mxu0 %v1757
    %v3864 = vpop.f32.mrf.mxu0
    %v3865 = vadd.f32 %v3786, %v3864
    %v3866 = vpop.f32.mrf.mxu0
    %3867 = vmatprep.mubr.f32.mxu0 0.0
    %3868 = vmatmul.mubr.f32.gmra.mxu0 %v2200
    %v3869 = vpop.f32.mrf.mxu0
    %v3870 = vadd.f32 %v3786, %v3869
    %v3871 = vpop.f32.mrf.mxu0
    %3872 = vmatprep.mubr.f32.mxu0 0.0
    %3873 = vmatmul.mubr.f32.gmra.mxu0 %v2643
    %v3874 = vpop.f32.mrf.mxu0
    %v3875 = vadd.f32 %v3786, %v3874
    %v3876 = vpop.f32.mrf.mxu0
    %3877 = vmatprep.mubr.f32.mxu0 0.0
    %3878 = vmatmul.mubr.f32.gmra.mxu0 %v3086
    %v3879 = vpop.f32.mrf.mxu0
    %v3880 = vadd.f32 %v3786, %v3879
    %v3881 = vpop.f32.mrf.mxu0
    %3882 = vmatprep.mubr.f32.mxu0 0.0
    %3883 = vmatmul.mubr.f32.gmra.mxu0 %v3433
    %v3884 = vpop.f32.mrf.mxu0
    %v3885 = vadd.f32 %v3786, %v3884
    %v3886 = vpop.f32.mrf.mxu0
    %3887 = vmatprep.mubr.f32.mxu0 0.0
    %3888 = vmatmul.mubr.f32.gmra.mxu0 %v3604
    %v3889 = vpop.f32.mrf.mxu0
    %v3890 = vadd.f32 %v3786, %v3889
    %v3891 = vpop.f32.mrf.mxu0
    %3892 = vmatprep.mubr.f32.mxu0 0.0
    %3893 = vmatmul.mubr.f32.gmra.mxu0 %v3791
    %v3894 = vpop.f32.mrf.mxu0
    %v3895 = vadd.f32 %v3786, %v3894
    %v3896 = vpop.f32.mrf.mxu0
    %3897 = vdwg.mxu0
    %v3898 = vxor.u32 %v3860, 2147483648
    %v3899 = vxor.u32 %v3865, 2147483648
    %v3900 = vxor.u32 %v3870, 2147483648
    %v3901 = vxor.u32 %v3875, 2147483648
    %v3902 = vxor.u32 %v3880, 2147483648
    %v3903 = vxor.u32 %v3885, 2147483648
    %v3904 = vxor.u32 %v3890, 2147483648
    %v3905 = vxor.u32 %v3895, 2147483648
    %v3906 = vmul.f32 %v3898, 1.442695
    %v3907 = vpow.pop %v3906
    %v3908 = vmul.f32 %v3899, 1.442695
    %v3909 = vpow.pop %v3908
    %v3910 = vmul.f32 %v3900, 1.442695
    %v3911 = vpow.pop %v3910
    %v3912 = vmul.f32 %v3901, 1.442695
    %v3913 = vpow.pop %v3912
    %v3914 = vmul.f32 %v3902, 1.442695
    %v3915 = vpow.pop %v3914
    %v3916 = vmul.f32 %v3903, 1.442695
    %v3917 = vpow.pop %v3916
    %v3918 = vmul.f32 %v3904, 1.442695
    %v3919 = vpow.pop %v3918
    %v3920 = vmul.f32 %v3905, 1.442695
    %v3921 = vpow.pop %v3920
    %v3922 = vadd.f32 %v3907, 1.0
    %v3923 = vadd.f32 %v3909, 1.0
    %v3924 = vadd.f32 %v3911, 1.0
    %v3925 = vadd.f32 %v3913, 1.0
    %v3926 = vadd.f32 %v3915, 1.0
    %v3927 = vadd.f32 %v3917, 1.0
    %v3928 = vadd.f32 %v3919, 1.0
    %v3929 = vadd.f32 %v3921, 1.0
    %v3930 = vrcp.pop %v3922
    %v3931 = vmul.f32 1.0, %v3930
    %v3932 = vrcp.pop %v3923
    %v3933 = vmul.f32 1.0, %v3932
    %v3934 = vrcp.pop %v3924
    %v3935 = vmul.f32 1.0, %v3934
    %v3936 = vrcp.pop %v3925
    %v3937 = vmul.f32 1.0, %v3936
    %v3938 = vrcp.pop %v3926
    %v3939 = vmul.f32 1.0, %v3938
    %v3940 = vrcp.pop %v3927
    %v3941 = vmul.f32 1.0, %v3940
    %v3942 = vrcp.pop %v3928
    %v3943 = vmul.f32 1.0, %v3942
    %v3944 = vrcp.pop %v3929
    %v3945 = vmul.f32 1.0, %v3944
    %3946 = vst [vmem:[%s12] sm:$0xff] %v3931
    %3947 = vst [vmem:[%s12 + $0x8] sm:$0xff] %v3933
    %3948 = vst [vmem:[%s12 + $0x10] sm:$0xff] %v3935
    %3949 = vst [vmem:[%s12 + $0x18] sm:$0xff] %v3937
    %3950 = vst [vmem:[%s12 + $0x20] sm:$0xff] %v3939
    %3951 = vst [vmem:[%s12 + $0x28] sm:$0xff] %v3941
    %3952 = vst [vmem:[%s12 + $0x30] sm:$0xff] %v3943
    %3953 = vst [vmem:[%s12 + $0x38] sm:$0xff] %v3945
    // Predicated region
    $region54: #{forward_self_attention_lstm.1} parent=1 // pred_check
      _
    $region55: #{forward_self_attention_lstm.1} parent=1 // pred_check_branch
      %3955 = sbr.rel (0) target = $region57
    $region56: #{forward_self_attention_lstm.1} parent=1 // pred_region
      _
    $region57: #{forward_self_attention_lstm.1} parent=1 // pred_fallthru
      _
    // Predicated region
    $region58: #{forward_self_attention_lstm.1} parent=1 // pred_check
      _
    $region59: #{forward_self_attention_lstm.1} parent=1 // pred_check_branch
      %3957 = sbr.rel (0) target = $region61
    $region60: #{forward_self_attention_lstm.1} parent=1 // pred_region
      _
    $region61: #{forward_self_attention_lstm.1} parent=1 // pred_fallthru
      _
    %3958 = vsyncpa [#allocation3], 1

</llo_original>
